<compile_context>
chip_gen: v7x
topology: tpu7x:2x2x1
jax: 0.10.0
libtpu: 0.0.40
codegen_flags: <defaults>
</compile_context>

<pallas_src>
import jax
import jax.numpy as jnp
from jax.experimental import pallas as pl
from jax.experimental.pallas import tpu as pltpu


def _concat_elu(x):
    """elu(concat([x, -x], axis=-1)) -- channel axis last (NHWC), f32 in/out."""
    y = jnp.concatenate([x, -x], axis=-1)
    return jnp.where(y > 0, y, jnp.exp(jnp.minimum(y, 0.0)) - 1.0)


def _make_fused_down_kernel(TB, H, W, F):
    """Single kernel running the full PixelCNNLayer_down resnet loop for one
    batch tile of TB images."""
    C2 = 2 * F
    N = TB * H * W
    WP = W + 16           # 8-col left pad (halo at col 7) + W interior + 8 right
    PDT = jnp.bfloat16    # pad-buffer / matmul-operand dtype
    F32 = jnp.float32

    def kernel(u0_ref, ul0_ref, us_ref, uls_ref,
               wu_in0, wu_in1, wu_nin, bu_x, wu_out, bu_out,
               wul_in0, wul_in1, wul_nin_u, wul_nin_s, bul_x, wul_out, bul_out,
               u_out_ref, ul_out_ref, pad_ref):
        i = pl.program_id(1)          # resnet step (inner, "arbitrary" carry)

        @pl.when(i == 0)
        def _init():
            # Zero ONLY the halo cells (top row + left/right halo columns);
            # the interior is fully rewritten before every read.  Done at the
            # start of every batch tile so megacore sharding of the parallel
            # batch axis stays correct.
            pad_ref[:, 0:1, :, :] = jnp.zeros((TB, 1, WP, C2), PDT)
            pad_ref[:, :, 0:8, :] = jnp.zeros((TB, H + 1, 8, C2), PDT)
            pad_ref[:, :, 8 + W:WP, :] = jnp.zeros((TB, H + 1, 8, C2), PDT)
            # Carry u/ul directly in the (VMEM-resident) output refs.
            u_out_ref[...] = u0_ref[...]
            ul_out_ref[...] = ul0_ref[...]

        def slab(dy, kw):
            """bf16 im2col slab for filter row dy: (N, kw*2F).

            Output pixel (y, x) lives at pad[(y+1), (x+8)]; the kw taps are
            columns x+7 .. x+7+kw-1 (halo column 7 / W+8 is zero)."""
            parts = [pad_ref[:, dy:dy + H, 7 + dx:7 + dx + W, :].reshape(N, C2)
                     for dx in range(kw)]
            return parts[0] if kw == 1 else jnp.concatenate(parts, axis=-1)

        def gated_resnet(og, skip_terms, kw, w_in0, w_in1, b_x, w_out, b_out):
            """og: (TB,H,W,F) f32; skip_terms: list of (act_bf16 (N,2F), w_ref)."""
            # ---- x = conv_input(concat_elu(og)) + sum_k nin_k(skip_k) ------
            pad_ref[:, 1:H + 1, 8:8 + W, :] = _concat_elu(og).astype(PDT)
            x = jnp.dot(slab(0, kw), w_in0[...], preferred_element_type=F32)
            x = x + jnp.dot(slab(1, kw), w_in1[...], preferred_element_type=F32)
            for act, w_nin in skip_terms:        # accumulated dots, no K-concat
                x = x + jnp.dot(act, w_nin[...], preferred_element_type=F32)
            x = x + b_x[...]                     # (N, F) f32

            # ---- conv_out(concat_elu(x)); dropout == identity (eval) -------
            pad_ref[:, 1:H + 1, 8:8 + W, :] = _concat_elu(
                x.reshape(TB, H, W, F)).astype(PDT)
            t0 = slab(0, kw)
            t1 = slab(1, kw)
            gates = []
            for g in range(2):                   # g=0: a-gate, g=1: b-gate
                acc = jnp.dot(t0, w_out[g], preferred_element_type=F32)
                acc = acc + jnp.dot(t1, w_out[2 + g], preferred_element_type=F32)
                gates.append(acc + b_out[g])     # (N, F) f32
            gated = gates[0] * jax.nn.sigmoid(gates[1])
            return og + gated.reshape(TB, H, W, F)

        # ---- u = u_stream[i](u, a=u_list.pop())   [down_shifted 2x3, skip=1]
        ca_us = _concat_elu(us_ref[...].astype(F32)).reshape(N, C2).astype(PDT)
        u_new = gated_resnet(u_out_ref[...], [(ca_us, wu_nin)], 3,
                             wu_in0, wu_in1, bu_x, wu_out, bu_out)
        u_out_ref[...] = u_new

        # ---- ul = ul_stream[i](ul, a=cat(u, ul_list.pop()))  [2x2, skip=2]
        # concat_elu(cat([u, s])) == cat([elu(u), elu(s), elu(-u), elu(-s)]);
        # the nin weight rows were re-ordered at pack time so the channel cat
        # becomes two accumulated dots.
        ca_u = _concat_elu(u_new).reshape(N, C2).astype(PDT)
        ca_uls = _concat_elu(uls_ref[...].astype(F32)).reshape(N, C2).astype(PDT)
        ul_new = gated_resnet(ul_out_ref[...],
                              [(ca_u, wul_nin_u), (ca_uls, wul_nin_s)], 2,
                              wul_in0, wul_in1, bul_x, wul_out, bul_out)
        ul_out_ref[...] = ul_new

    return kernel


def _pack_stream(plist, kw, F, skip):
    """Pack raw per-block params into fused, per-step-stacked arrays.

    Returns, each with a leading nr_resnet axis (weights bf16, biases f32):
      w_in0 : (nr, kw*2F, F)      conv_input dy=0 taps (merged over kx)
      w_in1 : (nr, kw*2F, F)      conv_input dy=1 taps
      nin_k : skip x (nr, 2F, F)  nin_skip weight, split per skip tensor and
                                  re-ordered to match concat_elu([x,-x]) layout
      b_x   : (nr, 1, F)          conv_input bias + nin_skip bias
      w_out : (nr, 4, kw*2F, F)   conv_out, index = dy*2 + gate (0=a, 1=b)
      b_out : (nr, 2, 1, F)
    """
    w_in0, w_in1, b_x, w_out, b_out = [], [], [], [], []
    nins = [[] for _ in range(skip)]
    for (wi, bi, wn, bn, wo, bo) in plist:
        w_in0.append(jnp.concatenate([wi[dx] for dx in range(kw)], 0))
        w_in1.append(jnp.concatenate([wi[kw + dx] for dx in range(kw)], 0))
        b_x.append((bi + bn).reshape(1, F))
        if skip == 1:
            nins[0].append(wn)                                      # (2F, F)
        else:
            # a = cat(u, s): concat_elu(a) channels = [u, s, -u, -s]
            nins[0].append(jnp.concatenate([wn[0:F], wn[2 * F:3 * F]], 0))
            nins[1].append(jnp.concatenate([wn[F:2 * F], wn[3 * F:4 * F]], 0))
        rows = []
        for dy in range(2):
            wd = jnp.concatenate([wo[dy * kw + dx] for dx in range(kw)], 0)
            rows.append(wd[:, :F])        # a-gate half
            rows.append(wd[:, F:])        # b-gate half
        w_out.append(jnp.stack(rows, axis=0))
        b_out.append(jnp.stack([bo[:F].reshape(1, F),
                                bo[F:].reshape(1, F)], axis=0))
    bf16 = lambda xs: jnp.stack(xs, 0).astype(jnp.bfloat16)
    return ((bf16(w_in0), bf16(w_in1))
            + tuple(bf16(n) for n in nins)
            + (jnp.stack(b_x, 0), bf16(w_out), jnp.stack(b_out, 0)))


def _pick_batch_tile(B, H, W, F, budget_bytes):
    """Largest batch tile whose per-tile VMEM working set fits the budget,
    keeping >= 2 tiles when possible so the parallel batch axis can be
    sharded across both v7x TensorCores."""
    def tile_bytes(tb):
        n = tb * H * W
        pad = tb * (H + 1) * (W + 16) * 2 * F * 2     # bf16 pad buffer
        state = 2 * n * F * 4                          # resident u/ul outputs
        init = 2 * 2 * n * F * 4                       # u0/ul0, double-buffered
        skips = 2 * 2 * n * F * 2                      # bf16 skips, double-buf
        tmp = 56 * n * F                               # slabs / x / gates temps
        return pad + state + init + skips + tmp
    nb_min = 2 if B >= 2 else 1
    best = 1
    for d in range(1, B + 1):
        if B % d or B // d < nb_min:
            continue
        if tile_bytes(d) <= budget_bytes:
            best = d
    return best


def pixelcnn_layer_down(u, ul, u_list, ul_list, params, nr_resnet,
                        batch_tile=None):
    """forward(u, ul, u_list, ul_list) of PixelCNNLayer_down (NHWC layout)."""
    B, H, W, F = u.shape
    f32 = jnp.float32
    assert len(u_list) == nr_resnet and len(ul_list) == nr_resnet

    # .pop() order: step i consumes the (nr_resnet - 1 - i)-th list entry.
    # Skips only feed concat_elu -> bf16 matmuls: ship them as bf16 (halves
    # their HBM DMA and double-buffered VMEM footprint).
    u_skips = jnp.stack(list(u_list)[::-1], axis=0).astype(jnp.bfloat16)
    ul_skips = jnp.stack(list(ul_list)[::-1], axis=0).astype(jnp.bfloat16)

    pu = _pack_stream(params['u'], kw=3, F=F, skip=1)    # down_shifted (2x3)
    pul = _pack_stream(params['ul'], kw=2, F=F, skip=2)  # down_right_shifted (2x2)

    # Per-generation VMEM ceiling (v7x: 64 MiB physical, v5e/v6e: 128 MiB).
    try:
        vmem_cap = int(getattr(pltpu.get_tpu_info(), "vmem_capacity_bytes",
                               64 << 20))
    except Exception:
        vmem_cap = 64 << 20
    vmem_limit = max(32 << 20, min(int(vmem_cap * 0.85), 110 << 20))

    if batch_tile is None:
        batch_tile = _pick_batch_tile(B, H, W, F, budget_bytes=vmem_limit // 2)
    TB = batch_tile
    assert B % TB == 0, "batch_tile must divide the batch"
    nb = B // TB

    kernel = _make_fused_down_kernel(TB, H, W, F)

    state_spec = pl.BlockSpec((TB, H, W, F), lambda b, i: (b, 0, 0, 0))
    skip_spec = pl.BlockSpec((None, TB, H, W, F),
                             lambda b, i: (i, b, 0, 0, 0))

    def wspec(arr):
        nd = arr.ndim - 1
        return pl.BlockSpec((None,) + arr.shape[1:],
                            lambda b, i, _nd=nd: (i,) + (0,) * _nd)

    weight_specs = [wspec(a) for a in (*pu, *pul)]

    grid_spec = pltpu.PrefetchScalarGridSpec(
        num_scalar_prefetch=0,
        # batch tiles outer ("parallel", megacore-shardable), resnet inner
        # ("arbitrary", u/ul carried in the resident output blocks).
        grid=(nb, nr_resnet),
        in_specs=[state_spec, state_spec, skip_spec, skip_spec] + weight_specs,
        out_specs=[state_spec, state_spec],
        scratch_shapes=[
            # Shared causal pad buffer (bf16, sublane-aligned interior at
            # column 8) serving both conv geometries (2x3 and 2x2).
            pltpu.VMEM((TB, H + 1, W + 16, 2 * F), jnp.bfloat16),
        ],
    )

    u_out, ul_out = pl.pallas_call(
        kernel,
        out_shape=(jax.ShapeDtypeStruct((B, H, W, F), f32),
                   jax.ShapeDtypeStruct((B, H, W, F), f32)),
        grid_spec=grid_spec,
        compiler_params=pltpu.CompilerParams(
            dimension_semantics=("parallel", "arbitrary"),
            vmem_limit_bytes=vmem_limit),
    )(u, ul, u_skips, ul_skips, *pu, *pul)
    return u_out, ul_out


def init_params(key, nr_resnet, F, scale=0.05):
    """Deterministic synthetic weights in raw (PyTorch-like) form.

    Conv weights: (kh*kw, 2F, Cout) indexed [dy*kw + dx]; nin weights (Cin, F);
    biases flat (Cout,).  weight_norm is folded into the plain conv weight.
    """
    def nrm(k, shape):
        return scale * jax.random.normal(k, shape, dtype=jnp.float32)

    params = {'u': [], 'ul': []}
    for i in range(nr_resnet):
        ks = jax.random.split(jax.random.fold_in(key, i), 12)
        # u-stream: down_shifted_conv2d (2x3), skip_connection=1
        params['u'].append((
            nrm(ks[0], (6, 2 * F, F)),        # conv_input weight
            nrm(ks[1], (F,)),                 # conv_input bias
            nrm(ks[2], (2 * F, F)),           # nin_skip weight (2*1*F -> F)
            nrm(ks[3], (F,)),                 # nin_skip bias
            nrm(ks[4], (6, 2 * F, 2 * F)),    # conv_out weight
            nrm(ks[5], (2 * F,)),             # conv_out bias
        ))
        # ul-stream: down_right_shifted_conv2d (2x2), skip_connection=2
        params['ul'].append((
            nrm(ks[6], (4, 2 * F, F)),
            nrm(ks[7], (F,)),
            nrm(ks[8], (4 * F, F)),           # nin_skip weight (2*2*F -> F)
            nrm(ks[9], (F,)),
            nrm(ks[10], (4, 2 * F, 2 * F)),
            nrm(ks[11], (2 * F,)),
        ))
    return params


if __name__ == "__main__":
    B, H, W, F = 2, 8, 8, 32      # batch, spatial, nr_filters
    nr_resnet = 2

    key = jax.random.PRNGKey(0)
    ks = jax.random.split(key, 3 + 2 * nr_resnet)
    u = jax.random.normal(ks[0], (B, H, W, F), dtype=jnp.float32)
    ul = jax.random.normal(ks[1], (B, H, W, F), dtype=jnp.float32)
    u_list = [jax.random.normal(ks[2 + i], (B, H, W, F), dtype=jnp.float32)
              for i in range(nr_resnet)]
    ul_list = [jax.random.normal(ks[2 + nr_resnet + i], (B, H, W, F),
                                 dtype=jnp.float32) for i in range(nr_resnet)]
    params = init_params(ks[-1], nr_resnet, F)

    fwd = jax.jit(pixelcnn_layer_down,
                  static_argnames=('nr_resnet', 'batch_tile'))
    u_out, ul_out = fwd(u, ul, u_list, ul_list, params, nr_resnet=nr_resnet)
    jax.block_until_ready((u_out, ul_out))

    assert u_out.shape == (B, H, W, F) and ul_out.shape == (B, H, W, F)
    assert u_out.dtype == jnp.float32 and ul_out.dtype == jnp.float32
    assert bool(jnp.all(jnp.isfinite(u_out))) and bool(jnp.all(jnp.isfinite(ul_out)))
    print("KERNEL_OK")
</pallas_src>

<mosaic_0001>
module attributes {stable_mosaic.version = 11 : i64} {
  func.func @kernel(%arg0: i32, %arg1: i32, %arg2: memref<1x8x8x32xf32, #tpu.memory_space<vmem>>, %arg3: memref<1x8x8x32xf32, #tpu.memory_space<vmem>>, %arg4: memref<1x1x8x8x32xbf16, #tpu.memory_space<vmem>>, %arg5: memref<1x1x8x8x32xbf16, #tpu.memory_space<vmem>>, %arg6: memref<1x192x32xbf16, #tpu.memory_space<vmem>>, %arg7: memref<1x192x32xbf16, #tpu.memory_space<vmem>>, %arg8: memref<1x64x32xbf16, #tpu.memory_space<vmem>>, %arg9: memref<1x1x32xf32, #tpu.memory_space<vmem>>, %arg10: memref<1x4x192x32xbf16, #tpu.memory_space<vmem>>, %arg11: memref<1x2x1x32xf32, #tpu.memory_space<vmem>>, %arg12: memref<1x128x32xbf16, #tpu.memory_space<vmem>>, %arg13: memref<1x128x32xbf16, #tpu.memory_space<vmem>>, %arg14: memref<1x64x32xbf16, #tpu.memory_space<vmem>>, %arg15: memref<1x64x32xbf16, #tpu.memory_space<vmem>>, %arg16: memref<1x1x32xf32, #tpu.memory_space<vmem>>, %arg17: memref<1x4x128x32xbf16, #tpu.memory_space<vmem>>, %arg18: memref<1x2x1x32xf32, #tpu.memory_space<vmem>>, %arg19: memref<1x8x8x32xf32, #tpu.memory_space<vmem>>, %arg20: memref<1x8x8x32xf32, #tpu.memory_space<vmem>>, %arg21: memref<1x9x24x64xbf16, #tpu.memory_space<vmem>>) attributes {dimension_semantics = [#tpu.dimension_semantics<parallel>, #tpu.dimension_semantics<arbitrary>], iteration_bounds = array<i64: 2, 2>, scalar_prefetch = 0 : i64, scratch_operands = 1 : i64, tpu.core_type = #tpu.core_type<tc>, window_params = [{transform_indices = @transform_0, window_bounds = array<i64: 1, 8, 8, 32>}, {transform_indices = @transform_1, window_bounds = array<i64: 1, 8, 8, 32>}, {transform_indices = @transform_2, window_bounds = array<i64: 1, 1, 8, 8, 32>}, {transform_indices = @transform_3, window_bounds = array<i64: 1, 1, 8, 8, 32>}, {transform_indices = @transform_4, window_bounds = array<i64: 1, 192, 32>}, {transform_indices = @transform_5, window_bounds = array<i64: 1, 192, 32>}, {transform_indices = @transform_6, window_bounds = array<i64: 1, 64, 32>}, {transform_indices = @transform_7, window_bounds = array<i64: 1, 1, 32>}, {transform_indices = @transform_8, window_bounds = array<i64: 1, 4, 192, 32>}, {transform_indices = @transform_9, window_bounds = array<i64: 1, 2, 1, 32>}, {transform_indices = @transform_10, window_bounds = array<i64: 1, 128, 32>}, {transform_indices = @transform_11, window_bounds = array<i64: 1, 128, 32>}, {transform_indices = @transform_12, window_bounds = array<i64: 1, 64, 32>}, {transform_indices = @transform_13, window_bounds = array<i64: 1, 64, 32>}, {transform_indices = @transform_14, window_bounds = array<i64: 1, 1, 32>}, {transform_indices = @transform_15, window_bounds = array<i64: 1, 4, 128, 32>}, {transform_indices = @transform_16, window_bounds = array<i64: 1, 2, 1, 32>}, {transform_indices = @transform_17, window_bounds = array<i64: 1, 8, 8, 32>}, {transform_indices = @transform_18, window_bounds = array<i64: 1, 8, 8, 32>}]} {
    %c0_i32 = arith.constant 0 : i32
    %0 = arith.cmpi eq, %arg1, %c0_i32 : i32
    %1 = arith.extui %0 : i1 to i32
    %c0_i32_0 = arith.constant 0 : i32
    %2 = arith.cmpi ne, %1, %c0_i32_0 : i32
    scf.if %2 {
      %cst_235 = arith.constant 0.000000e+00 : bf16
      %248 = vector.broadcast %cst_235 : bf16 to vector<1x1x24x64xbf16>
      %c0_236 = arith.constant 0 : index
      %c0_237 = arith.constant 0 : index
      %c0_238 = arith.constant 0 : index
      %c0_239 = arith.constant 0 : index
      %249 = vector.load %arg21[%c0_236, %c0_237, %c0_238, %c0_239] : memref<1x9x24x64xbf16, #tpu.memory_space<vmem>>, vector<1x1x24x64xbf16>
      tpu.vector_store %arg21[%c0_236, %c0_237, %c0_238, %c0_239], %248 {strides = array<i32>} : memref<1x9x24x64xbf16, #tpu.memory_space<vmem>>, vector<1x1x24x64xbf16>,
      %cst_240 = arith.constant 0.000000e+00 : bf16
      %250 = vector.broadcast %cst_240 : bf16 to vector<1x9x8x64xbf16>
      %c0_241 = arith.constant 0 : index
      %c0_242 = arith.constant 0 : index
      %c0_243 = arith.constant 0 : index
      %c0_244 = arith.constant 0 : index
      %251 = vector.load %arg21[%c0_241, %c0_242, %c0_243, %c0_244] : memref<1x9x24x64xbf16, #tpu.memory_space<vmem>>, vector<1x9x8x64xbf16>
      tpu.vector_store %arg21[%c0_241, %c0_242, %c0_243, %c0_244], %250 {strides = array<i32>} : memref<1x9x24x64xbf16, #tpu.memory_space<vmem>>, vector<1x9x8x64xbf16>,
      %cst_245 = arith.constant 0.000000e+00 : bf16
      %252 = vector.broadcast %cst_245 : bf16 to vector<1x9x8x64xbf16>
      %c0_246 = arith.constant 0 : index
      %c0_247 = arith.constant 0 : index
      %c16 = arith.constant 16 : index
      %c0_248 = arith.constant 0 : index
      %253 = vector.load %arg21[%c0_246, %c0_247, %c16, %c0_248] : memref<1x9x24x64xbf16, #tpu.memory_space<vmem>>, vector<1x9x8x64xbf16>
      tpu.vector_store %arg21[%c0_246, %c0_247, %c16, %c0_248], %252 {strides = array<i32>} : memref<1x9x24x64xbf16, #tpu.memory_space<vmem>>, vector<1x9x8x64xbf16>,
      %c0_249 = arith.constant 0 : index
      %c0_250 = arith.constant 0 : index
      %c0_251 = arith.constant 0 : index
      %c0_252 = arith.constant 0 : index
      %254 = vector.load %arg2[%c0_249, %c0_250, %c0_251, %c0_252] : memref<1x8x8x32xf32, #tpu.memory_space<vmem>>, vector<1x8x8x32xf32>
      %c0_253 = arith.constant 0 : index
      %c0_254 = arith.constant 0 : index
      %c0_255 = arith.constant 0 : index
      %c0_256 = arith.constant 0 : index
      %255 = vector.load %arg19[%c0_253, %c0_254, %c0_255, %c0_256] : memref<1x8x8x32xf32, #tpu.memory_space<vmem>>, vector<1x8x8x32xf32>
      tpu.vector_store %arg19[%c0_253, %c0_254, %c0_255, %c0_256], %254 {strides = array<i32>} : memref<1x8x8x32xf32, #tpu.memory_space<vmem>>, vector<1x8x8x32xf32>,
      %c0_257 = arith.constant 0 : index
      %c0_258 = arith.constant 0 : index
      %c0_259 = arith.constant 0 : index
      %c0_260 = arith.constant 0 : index
      %256 = vector.load %arg3[%c0_257, %c0_258, %c0_259, %c0_260] : memref<1x8x8x32xf32, #tpu.memory_space<vmem>>, vector<1x8x8x32xf32>
      %c0_261 = arith.constant 0 : index
      %c0_262 = arith.constant 0 : index
      %c0_263 = arith.constant 0 : index
      %c0_264 = arith.constant 0 : index
      %257 = vector.load %arg20[%c0_261, %c0_262, %c0_263, %c0_264] : memref<1x8x8x32xf32, #tpu.memory_space<vmem>>, vector<1x8x8x32xf32>
      tpu.vector_store %arg20[%c0_261, %c0_262, %c0_263, %c0_264], %256 {strides = array<i32>} : memref<1x8x8x32xf32, #tpu.memory_space<vmem>>, vector<1x8x8x32xf32>,
    } else {
    }
    %c0 = arith.constant 0 : index
    %c0_1 = arith.constant 0 : index
    %c0_2 = arith.constant 0 : index
    %c0_3 = arith.constant 0 : index
    %c0_4 = arith.constant 0 : index
    %3 = vector.load %arg4[%c0, %c0_1, %c0_2, %c0_3, %c0_4] : memref<1x1x8x8x32xbf16, #tpu.memory_space<vmem>>, vector<1x1x8x8x32xbf16>
    %4 = vector.shape_cast %3 : vector<1x1x8x8x32xbf16> to vector<1x8x8x32xbf16>
    %5 = arith.extf %4 : vector<1x8x8x32xbf16> to vector<1x8x8x32xf32>
    %cst = arith.constant 0.000000e+00 : f32
    %6 = vector.broadcast %cst : f32 to vector<1x8x8x32xf32>
    %7 = arith.subf %6, %5 : vector<1x8x8x32xf32>
    %8 = tpu.concatenate %5, %7 in 3 : vector<1x8x8x32xf32>, vector<1x8x8x32xf32> -> vector<1x8x8x64xf32>
    %cst_5 = arith.constant 0.000000e+00 : f32
    %9 = vector.broadcast %cst_5 : f32 to vector<1x8x8x64xf32>
    %10 = arith.cmpf ogt, %8, %9 : vector<1x8x8x64xf32>
    %cst_6 = arith.constant 0.000000e+00 : f32
    %11 = vector.broadcast %cst_6 : f32 to vector<1x8x8x64xf32>
    %12 = arith.minimumf %8, %11 : vector<1x8x8x64xf32>
    %13 = math.exp %12 : vector<1x8x8x64xf32>
    %cst_7 = arith.constant 1.000000e+00 : f32
    %14 = vector.broadcast %cst_7 : f32 to vector<1x8x8x64xf32>
    %15 = arith.subf %13, %14 : vector<1x8x8x64xf32>
    %16 = arith.select %10, %8, %15 : vector<1x8x8x64xi1>, vector<1x8x8x64xf32>
    %17 = vector.shape_cast %16 : vector<1x8x8x64xf32> to vector<64x64xf32>
    %18 = arith.truncf %17 : vector<64x64xf32> to vector<64x64xbf16>
    %c0_8 = arith.constant 0 : index
    %c0_9 = arith.constant 0 : index
    %c0_10 = arith.constant 0 : index
    %c0_11 = arith.constant 0 : index
    %19 = vector.load %arg19[%c0_8, %c0_9, %c0_10, %c0_11] : memref<1x8x8x32xf32, #tpu.memory_space<vmem>>, vector<1x8x8x32xf32>
    %cst_12 = arith.constant 0.000000e+00 : f32
    %20 = vector.broadcast %cst_12 : f32 to vector<1x8x8x32xf32>
    %21 = arith.subf %20, %19 : vector<1x8x8x32xf32>
    %22 = tpu.concatenate %19, %21 in 3 : vector<1x8x8x32xf32>, vector<1x8x8x32xf32> -> vector<1x8x8x64xf32>
    %cst_13 = arith.constant 0.000000e+00 : f32
    %23 = vector.broadcast %cst_13 : f32 to vector<1x8x8x64xf32>
    %24 = arith.cmpf ogt, %22, %23 : vector<1x8x8x64xf32>
    %cst_14 = arith.constant 0.000000e+00 : f32
    %25 = vector.broadcast %cst_14 : f32 to vector<1x8x8x64xf32>
    %26 = arith.minimumf %22, %25 : vector<1x8x8x64xf32>
    %27 = math.exp %26 : vector<1x8x8x64xf32>
    %cst_15 = arith.constant 1.000000e+00 : f32
    %28 = vector.broadcast %cst_15 : f32 to vector<1x8x8x64xf32>
    %29 = arith.subf %27, %28 : vector<1x8x8x64xf32>
    %30 = arith.select %24, %22, %29 : vector<1x8x8x64xi1>, vector<1x8x8x64xf32>
    %31 = arith.truncf %30 : vector<1x8x8x64xf32> to vector<1x8x8x64xbf16>
    %c0_16 = arith.constant 0 : index
    %c1 = arith.constant 1 : index
    %c8 = arith.constant 8 : index
    %c0_17 = arith.constant 0 : index
    %32 = vector.load %arg21[%c0_16, %c1, %c8, %c0_17] : memref<1x9x24x64xbf16, #tpu.memory_space<vmem>>, vector<1x8x8x64xbf16>
    tpu.vector_store %arg21[%c0_16, %c1, %c8, %c0_17], %31 {strides = array<i32>} : memref<1x9x24x64xbf16, #tpu.memory_space<vmem>>, vector<1x8x8x64xbf16>,
    %c0_18 = arith.constant 0 : index
    %c0_19 = arith.constant 0 : index
    %c7 = arith.constant 7 : index
    %c0_20 = arith.constant 0 : index
    %33 = vector.load %arg21[%c0_18, %c0_19, %c7, %c0_20] : memref<1x9x24x64xbf16, #tpu.memory_space<vmem>>, vector<1x8x8x64xbf16>
    %34 = vector.shape_cast %33 : vector<1x8x8x64xbf16> to vector<64x64xbf16>
    %c0_21 = arith.constant 0 : index
    %c0_22 = arith.constant 0 : index
    %c8_23 = arith.constant 8 : index
    %c0_24 = arith.constant 0 : index
    %35 = vector.load %arg21[%c0_21, %c0_22, %c8_23, %c0_24] : memref<1x9x24x64xbf16, #tpu.memory_space<vmem>>, vector<1x8x8x64xbf16>
    %36 = vector.shape_cast %35 : vector<1x8x8x64xbf16> to vector<64x64xbf16>
    %c0_25 = arith.constant 0 : index
    %c0_26 = arith.constant 0 : index
    %c9 = arith.constant 9 : index
    %c0_27 = arith.constant 0 : index
    %37 = vector.load %arg21[%c0_25, %c0_26, %c9, %c0_27] : memref<1x9x24x64xbf16, #tpu.memory_space<vmem>>, vector<1x8x8x64xbf16>
    %38 = vector.shape_cast %37 : vector<1x8x8x64xbf16> to vector<64x64xbf16>
    %39 = tpu.concatenate %34, %36, %38 in 1 : vector<64x64xbf16>, vector<64x64xbf16>, vector<64x64xbf16> -> vector<64x192xbf16>
    %c0_28 = arith.constant 0 : index
    %c0_29 = arith.constant 0 : index
    %c0_30 = arith.constant 0 : index
    %40 = vector.load %arg6[%c0_28, %c0_29, %c0_30] : memref<1x192x32xbf16, #tpu.memory_space<vmem>>, vector<1x192x32xbf16>
    %41 = vector.shape_cast %40 : vector<1x192x32xbf16> to vector<192x32xbf16>
    %cst_31 = arith.constant dense<0.000000e+00> : vector<64x32xf32>
    %42 = tpu.matmul %39, %41, %cst_31 {dimension_numbers = #tpu.dot_dimension_numbers<[1], [0], [0], [1], [0, 0, 1, 1], [], []>} : vector<64x192xbf16>, vector<192x32xbf16>, vector<64x32xf32> -> vector<64x32xf32>
    %c0_32 = arith.constant 0 : index
    %c1_33 = arith.constant 1 : index
    %c7_34 = arith.constant 7 : index
    %c0_35 = arith.constant 0 : index
    %43 = vector.load %arg21[%c0_32, %c1_33, %c7_34, %c0_35] : memref<1x9x24x64xbf16, #tpu.memory_space<vmem>>, vector<1x8x8x64xbf16>
    %44 = vector.shape_cast %43 : vector<1x8x8x64xbf16> to vector<64x64xbf16>
    %c0_36 = arith.constant 0 : index
    %c1_37 = arith.constant 1 : index
    %c8_38 = arith.constant 8 : index
    %c0_39 = arith.constant 0 : index
    %45 = vector.load %arg21[%c0_36, %c1_37, %c8_38, %c0_39] : memref<1x9x24x64xbf16, #tpu.memory_space<vmem>>, vector<1x8x8x64xbf16>
    %46 = vector.shape_cast %45 : vector<1x8x8x64xbf16> to vector<64x64xbf16>
    %c0_40 = arith.constant 0 : index
    %c1_41 = arith.constant 1 : index
    %c9_42 = arith.constant 9 : index
    %c0_43 = arith.constant 0 : index
    %47 = vector.load %arg21[%c0_40, %c1_41, %c9_42, %c0_43] : memref<1x9x24x64xbf16, #tpu.memory_space<vmem>>, vector<1x8x8x64xbf16>
    %48 = vector.shape_cast %47 : vector<1x8x8x64xbf16> to vector<64x64xbf16>
    %49 = tpu.concatenate %44, %46, %48 in 1 : vector<64x64xbf16>, vector<64x64xbf16>, vector<64x64xbf16> -> vector<64x192xbf16>
    %c0_44 = arith.constant 0 : index
    %c0_45 = arith.constant 0 : index
    %c0_46 = arith.constant 0 : index
    %50 = vector.load %arg7[%c0_44, %c0_45, %c0_46] : memref<1x192x32xbf16, #tpu.memory_space<vmem>>, vector<1x192x32xbf16>
    %51 = vector.shape_cast %50 : vector<1x192x32xbf16> to vector<192x32xbf16>
    %cst_47 = arith.constant dense<0.000000e+00> : vector<64x32xf32>
    %52 = tpu.matmul %49, %51, %cst_47 {dimension_numbers = #tpu.dot_dimension_numbers<[1], [0], [0], [1], [0, 0, 1, 1], [], []>} : vector<64x192xbf16>, vector<192x32xbf16>, vector<64x32xf32> -> vector<64x32xf32>
    %53 = arith.addf %42, %52 : vector<64x32xf32>
    %c0_48 = arith.constant 0 : index
    %c0_49 = arith.constant 0 : index
    %c0_50 = arith.constant 0 : index
    %54 = vector.load %arg8[%c0_48, %c0_49, %c0_50] : memref<1x64x32xbf16, #tpu.memory_space<vmem>>, vector<1x64x32xbf16>
    %55 = vector.shape_cast %54 : vector<1x64x32xbf16> to vector<64x32xbf16>
    %cst_51 = arith.constant dense<0.000000e+00> : vector<64x32xf32>
    %56 = tpu.matmul %18, %55, %cst_51 {dimension_numbers = #tpu.dot_dimension_numbers<[1], [0], [0], [1], [0, 0, 1, 1], [], []>} : vector<64x64xbf16>, vector<64x32xbf16>, vector<64x32xf32> -> vector<64x32xf32>
    %57 = arith.addf %53, %56 : vector<64x32xf32>
    %c0_52 = arith.constant 0 : index
    %c0_53 = arith.constant 0 : index
    %c0_54 = arith.constant 0 : index
    %58 = vector.load %arg9[%c0_52, %c0_53, %c0_54] : memref<1x1x32xf32, #tpu.memory_space<vmem>>, vector<1x1x32xf32>
    %59 = vector.shape_cast %58 : vector<1x1x32xf32> to vector<1x32xf32>
    %60 = vector.broadcast %59 : vector<1x32xf32> to vector<64x32xf32>
    %61 = arith.addf %57, %60 : vector<64x32xf32>
    %62 = vector.shape_cast %61 : vector<64x32xf32> to vector<1x8x8x32xf32>
    %cst_55 = arith.constant 0.000000e+00 : f32
    %63 = vector.broadcast %cst_55 : f32 to vector<1x8x8x32xf32>
    %64 = arith.subf %63, %62 : vector<1x8x8x32xf32>
    %65 = tpu.concatenate %62, %64 in 3 : vector<1x8x8x32xf32>, vector<1x8x8x32xf32> -> vector<1x8x8x64xf32>
    %cst_56 = arith.constant 0.000000e+00 : f32
    %66 = vector.broadcast %cst_56 : f32 to vector<1x8x8x64xf32>
    %67 = arith.cmpf ogt, %65, %66 : vector<1x8x8x64xf32>
    %cst_57 = arith.constant 0.000000e+00 : f32
    %68 = vector.broadcast %cst_57 : f32 to vector<1x8x8x64xf32>
    %69 = arith.minimumf %65, %68 : vector<1x8x8x64xf32>
    %70 = math.exp %69 : vector<1x8x8x64xf32>
    %cst_58 = arith.constant 1.000000e+00 : f32
    %71 = vector.broadcast %cst_58 : f32 to vector<1x8x8x64xf32>
    %72 = arith.subf %70, %71 : vector<1x8x8x64xf32>
    %73 = arith.select %67, %65, %72 : vector<1x8x8x64xi1>, vector<1x8x8x64xf32>
    %74 = arith.truncf %73 : vector<1x8x8x64xf32> to vector<1x8x8x64xbf16>
    %c0_59 = arith.constant 0 : index
    %c1_60 = arith.constant 1 : index
    %c8_61 = arith.constant 8 : index
    %c0_62 = arith.constant 0 : index
    %75 = vector.load %arg21[%c0_59, %c1_60, %c8_61, %c0_62] : memref<1x9x24x64xbf16, #tpu.memory_space<vmem>>, vector<1x8x8x64xbf16>
    tpu.vector_store %arg21[%c0_59, %c1_60, %c8_61, %c0_62], %74 {strides = array<i32>} : memref<1x9x24x64xbf16, #tpu.memory_space<vmem>>, vector<1x8x8x64xbf16>,
    %c0_63 = arith.constant 0 : index
    %c0_64 = arith.constant 0 : index
    %c7_65 = arith.constant 7 : index
    %c0_66 = arith.constant 0 : index
    %76 = vector.load %arg21[%c0_63, %c0_64, %c7_65, %c0_66] : memref<1x9x24x64xbf16, #tpu.memory_space<vmem>>, vector<1x8x8x64xbf16>
    %77 = vector.shape_cast %76 : vector<1x8x8x64xbf16> to vector<64x64xbf16>
    %c0_67 = arith.constant 0 : index
    %c0_68 = arith.constant 0 : index
    %c8_69 = arith.constant 8 : index
    %c0_70 = arith.constant 0 : index
    %78 = vector.load %arg21[%c0_67, %c0_68, %c8_69, %c0_70] : memref<1x9x24x64xbf16, #tpu.memory_space<vmem>>, vector<1x8x8x64xbf16>
    %79 = vector.shape_cast %78 : vector<1x8x8x64xbf16> to vector<64x64xbf16>
    %c0_71 = arith.constant 0 : index
    %c0_72 = arith.constant 0 : index
    %c9_73 = arith.constant 9 : index
    %c0_74 = arith.constant 0 : index
    %80 = vector.load %arg21[%c0_71, %c0_72, %c9_73, %c0_74] : memref<1x9x24x64xbf16, #tpu.memory_space<vmem>>, vector<1x8x8x64xbf16>
    %81 = vector.shape_cast %80 : vector<1x8x8x64xbf16> to vector<64x64xbf16>
    %82 = tpu.concatenate %77, %79, %81 in 1 : vector<64x64xbf16>, vector<64x64xbf16>, vector<64x64xbf16> -> vector<64x192xbf16>
    %c0_75 = arith.constant 0 : index
    %c1_76 = arith.constant 1 : index
    %c7_77 = arith.constant 7 : index
    %c0_78 = arith.constant 0 : index
    %83 = vector.load %arg21[%c0_75, %c1_76, %c7_77, %c0_78] : memref<1x9x24x64xbf16, #tpu.memory_space<vmem>>, vector<1x8x8x64xbf16>
    %84 = vector.shape_cast %83 : vector<1x8x8x64xbf16> to vector<64x64xbf16>
    %c0_79 = arith.constant 0 : index
    %c1_80 = arith.constant 1 : index
    %c8_81 = arith.constant 8 : index
    %c0_82 = arith.constant 0 : index
    %85 = vector.load %arg21[%c0_79, %c1_80, %c8_81, %c0_82] : memref<1x9x24x64xbf16, #tpu.memory_space<vmem>>, vector<1x8x8x64xbf16>
    %86 = vector.shape_cast %85 : vector<1x8x8x64xbf16> to vector<64x64xbf16>
    %c0_83 = arith.constant 0 : index
    %c1_84 = arith.constant 1 : index
    %c9_85 = arith.constant 9 : index
    %c0_86 = arith.constant 0 : index
    %87 = vector.load %arg21[%c0_83, %c1_84, %c9_85, %c0_86] : memref<1x9x24x64xbf16, #tpu.memory_space<vmem>>, vector<1x8x8x64xbf16>
    %88 = vector.shape_cast %87 : vector<1x8x8x64xbf16> to vector<64x64xbf16>
    %89 = tpu.concatenate %84, %86, %88 in 1 : vector<64x64xbf16>, vector<64x64xbf16>, vector<64x64xbf16> -> vector<64x192xbf16>
    %c0_87 = arith.constant 0 : index
    %c0_88 = arith.constant 0 : index
    %c0_89 = arith.constant 0 : index
    %c0_90 = arith.constant 0 : index
    %90 = vector.load %arg10[%c0_87, %c0_88, %c0_89, %c0_90] : memref<1x4x192x32xbf16, #tpu.memory_space<vmem>>, vector<1x1x192x32xbf16>
    %91 = vector.shape_cast %90 : vector<1x1x192x32xbf16> to vector<192x32xbf16>
    %cst_91 = arith.constant dense<0.000000e+00> : vector<64x32xf32>
    %92 = tpu.matmul %82, %91, %cst_91 {dimension_numbers = #tpu.dot_dimension_numbers<[1], [0], [0], [1], [0, 0, 1, 1], [], []>} : vector<64x192xbf16>, vector<192x32xbf16>, vector<64x32xf32> -> vector<64x32xf32>
    %c0_92 = arith.constant 0 : index
    %c2 = arith.constant 2 : index
    %c0_93 = arith.constant 0 : index
    %c0_94 = arith.constant 0 : index
    %93 = vector.load %arg10[%c0_92, %c2, %c0_93, %c0_94] : memref<1x4x192x32xbf16, #tpu.memory_space<vmem>>, vector<1x1x192x32xbf16>
    %94 = vector.shape_cast %93 : vector<1x1x192x32xbf16> to vector<192x32xbf16>
    %cst_95 = arith.constant dense<0.000000e+00> : vector<64x32xf32>
    %95 = tpu.matmul %89, %94, %cst_95 {dimension_numbers = #tpu.dot_dimension_numbers<[1], [0], [0], [1], [0, 0, 1, 1], [], []>} : vector<64x192xbf16>, vector<192x32xbf16>, vector<64x32xf32> -> vector<64x32xf32>
    %96 = arith.addf %92, %95 : vector<64x32xf32>
    %c0_96 = arith.constant 0 : index
    %c0_97 = arith.constant 0 : index
    %c0_98 = arith.constant 0 : index
    %c0_99 = arith.constant 0 : index
    %97 = vector.load %arg11[%c0_96, %c0_97, %c0_98, %c0_99] : memref<1x2x1x32xf32, #tpu.memory_space<vmem>>, vector<1x1x1x32xf32>
    %98 = vector.shape_cast %97 : vector<1x1x1x32xf32> to vector<1x32xf32>
    %99 = vector.broadcast %98 : vector<1x32xf32> to vector<64x32xf32>
    %100 = arith.addf %96, %99 : vector<64x32xf32>
    %c0_100 = arith.constant 0 : index
    %c1_101 = arith.constant 1 : index
    %c0_102 = arith.constant 0 : index
    %c0_103 = arith.constant 0 : index
    %101 = vector.load %arg10[%c0_100, %c1_101, %c0_102, %c0_103] : memref<1x4x192x32xbf16, #tpu.memory_space<vmem>>, vector<1x1x192x32xbf16>
    %102 = vector.shape_cast %101 : vector<1x1x192x32xbf16> to vector<192x32xbf16>
    %cst_104 = arith.constant dense<0.000000e+00> : vector<64x32xf32>
    %103 = tpu.matmul %82, %102, %cst_104 {dimension_numbers = #tpu.dot_dimension_numbers<[1], [0], [0], [1], [0, 0, 1, 1], [], []>} : vector<64x192xbf16>, vector<192x32xbf16>, vector<64x32xf32> -> vector<64x32xf32>
    %c0_105 = arith.constant 0 : index
    %c3 = arith.constant 3 : index
    %c0_106 = arith.constant 0 : index
    %c0_107 = arith.constant 0 : index
    %104 = vector.load %arg10[%c0_105, %c3, %c0_106, %c0_107] : memref<1x4x192x32xbf16, #tpu.memory_space<vmem>>, vector<1x1x192x32xbf16>
    %105 = vector.shape_cast %104 : vector<1x1x192x32xbf16> to vector<192x32xbf16>
    %cst_108 = arith.constant dense<0.000000e+00> : vector<64x32xf32>
    %106 = tpu.matmul %89, %105, %cst_108 {dimension_numbers = #tpu.dot_dimension_numbers<[1], [0], [0], [1], [0, 0, 1, 1], [], []>} : vector<64x192xbf16>, vector<192x32xbf16>, vector<64x32xf32> -> vector<64x32xf32>
    %107 = arith.addf %103, %106 : vector<64x32xf32>
    %c0_109 = arith.constant 0 : index
    %c1_110 = arith.constant 1 : index
    %c0_111 = arith.constant 0 : index
    %c0_112 = arith.constant 0 : index
    %108 = vector.load %arg11[%c0_109, %c1_110, %c0_111, %c0_112] : memref<1x2x1x32xf32, #tpu.memory_space<vmem>>, vector<1x1x1x32xf32>
    %109 = vector.shape_cast %108 : vector<1x1x1x32xf32> to vector<1x32xf32>
    %110 = vector.broadcast %109 : vector<1x32xf32> to vector<64x32xf32>
    %111 = arith.addf %107, %110 : vector<64x32xf32>
    %112 = arith.negf %111 : vector<64x32xf32>
    %113 = math.exp %112 : vector<64x32xf32>
    %cst_113 = arith.constant 1.000000e+00 : f32
    %114 = vector.broadcast %cst_113 : f32 to vector<64x32xf32>
    %115 = arith.addf %114, %113 : vector<64x32xf32>
    %116 = arith.divf %114, %115 : vector<64x32xf32>
    %117 = arith.mulf %100, %116 : vector<64x32xf32>
    %118 = vector.shape_cast %117 : vector<64x32xf32> to vector<1x8x8x32xf32>
    %119 = arith.addf %19, %118 : vector<1x8x8x32xf32>
    %c0_114 = arith.constant 0 : index
    %c0_115 = arith.constant 0 : index
    %c0_116 = arith.constant 0 : index
    %c0_117 = arith.constant 0 : index
    %120 = vector.load %arg19[%c0_114, %c0_115, %c0_116, %c0_117] : memref<1x8x8x32xf32, #tpu.memory_space<vmem>>, vector<1x8x8x32xf32>
    tpu.vector_store %arg19[%c0_114, %c0_115, %c0_116, %c0_117], %119 {strides = array<i32>} : memref<1x8x8x32xf32, #tpu.memory_space<vmem>>, vector<1x8x8x32xf32>,
    %cst_118 = arith.constant 0.000000e+00 : f32
    %121 = vector.broadcast %cst_118 : f32 to vector<1x8x8x32xf32>
    %122 = arith.subf %121, %119 : vector<1x8x8x32xf32>
    %123 = tpu.concatenate %119, %122 in 3 : vector<1x8x8x32xf32>, vector<1x8x8x32xf32> -> vector<1x8x8x64xf32>
    %cst_119 = arith.constant 0.000000e+00 : f32
    %124 = vector.broadcast %cst_119 : f32 to vector<1x8x8x64xf32>
    %125 = arith.cmpf ogt, %123, %124 : vector<1x8x8x64xf32>
    %cst_120 = arith.constant 0.000000e+00 : f32
    %126 = vector.broadcast %cst_120 : f32 to vector<1x8x8x64xf32>
    %127 = arith.minimumf %123, %126 : vector<1x8x8x64xf32>
    %128 = math.exp %127 : vector<1x8x8x64xf32>
    %cst_121 = arith.constant 1.000000e+00 : f32
    %129 = vector.broadcast %cst_121 : f32 to vector<1x8x8x64xf32>
    %130 = arith.subf %128, %129 : vector<1x8x8x64xf32>
    %131 = arith.select %125, %123, %130 : vector<1x8x8x64xi1>, vector<1x8x8x64xf32>
    %132 = vector.shape_cast %131 : vector<1x8x8x64xf32> to vector<64x64xf32>
    %133 = arith.truncf %132 : vector<64x64xf32> to vector<64x64xbf16>
    %c0_122 = arith.constant 0 : index
    %c0_123 = arith.constant 0 : index
    %c0_124 = arith.constant 0 : index
    %c0_125 = arith.constant 0 : index
    %c0_126 = arith.constant 0 : index
    %134 = vector.load %arg5[%c0_122, %c0_123, %c0_124, %c0_125, %c0_126] : memref<1x1x8x8x32xbf16, #tpu.memory_space<vmem>>, vector<1x1x8x8x32xbf16>
    %135 = vector.shape_cast %134 : vector<1x1x8x8x32xbf16> to vector<1x8x8x32xbf16>
    %136 = arith.extf %135 : vector<1x8x8x32xbf16> to vector<1x8x8x32xf32>
    %cst_127 = arith.constant 0.000000e+00 : f32
    %137 = vector.broadcast %cst_127 : f32 to vector<1x8x8x32xf32>
    %138 = arith.subf %137, %136 : vector<1x8x8x32xf32>
    %139 = tpu.concatenate %136, %138 in 3 : vector<1x8x8x32xf32>, vector<1x8x8x32xf32> -> vector<1x8x8x64xf32>
    %cst_128 = arith.constant 0.000000e+00 : f32
    %140 = vector.broadcast %cst_128 : f32 to vector<1x8x8x64xf32>
    %141 = arith.cmpf ogt, %139, %140 : vector<1x8x8x64xf32>
    %cst_129 = arith.constant 0.000000e+00 : f32
    %142 = vector.broadcast %cst_129 : f32 to vector<1x8x8x64xf32>
    %143 = arith.minimumf %139, %142 : vector<1x8x8x64xf32>
    %144 = math.exp %143 : vector<1x8x8x64xf32>
    %cst_130 = arith.constant 1.000000e+00 : f32
    %145 = vector.broadcast %cst_130 : f32 to vector<1x8x8x64xf32>
    %146 = arith.subf %144, %145 : vector<1x8x8x64xf32>
    %147 = arith.select %141, %139, %146 : vector<1x8x8x64xi1>, vector<1x8x8x64xf32>
    %148 = vector.shape_cast %147 : vector<1x8x8x64xf32> to vector<64x64xf32>
    %149 = arith.truncf %148 : vector<64x64xf32> to vector<64x64xbf16>
    %c0_131 = arith.constant 0 : index
    %c0_132 = arith.constant 0 : index
    %c0_133 = arith.constant 0 : index
    %c0_134 = arith.constant 0 : index
    %150 = vector.load %arg20[%c0_131, %c0_132, %c0_133, %c0_134] : memref<1x8x8x32xf32, #tpu.memory_space<vmem>>, vector<1x8x8x32xf32>
    %cst_135 = arith.constant 0.000000e+00 : f32
    %151 = vector.broadcast %cst_135 : f32 to vector<1x8x8x32xf32>
    %152 = arith.subf %151, %150 : vector<1x8x8x32xf32>
    %153 = tpu.concatenate %150, %152 in 3 : vector<1x8x8x32xf32>, vector<1x8x8x32xf32> -> vector<1x8x8x64xf32>
    %cst_136 = arith.constant 0.000000e+00 : f32
    %154 = vector.broadcast %cst_136 : f32 to vector<1x8x8x64xf32>
    %155 = arith.cmpf ogt, %153, %154 : vector<1x8x8x64xf32>
    %cst_137 = arith.constant 0.000000e+00 : f32
    %156 = vector.broadcast %cst_137 : f32 to vector<1x8x8x64xf32>
    %157 = arith.minimumf %153, %156 : vector<1x8x8x64xf32>
    %158 = math.exp %157 : vector<1x8x8x64xf32>
    %cst_138 = arith.constant 1.000000e+00 : f32
    %159 = vector.broadcast %cst_138 : f32 to vector<1x8x8x64xf32>
    %160 = arith.subf %158, %159 : vector<1x8x8x64xf32>
    %161 = arith.select %155, %153, %160 : vector<1x8x8x64xi1>, vector<1x8x8x64xf32>
    %162 = arith.truncf %161 : vector<1x8x8x64xf32> to vector<1x8x8x64xbf16>
    %c0_139 = arith.constant 0 : index
    %c1_140 = arith.constant 1 : index
    %c8_141 = arith.constant 8 : index
    %c0_142 = arith.constant 0 : index
    %163 = vector.load %arg21[%c0_139, %c1_140, %c8_141, %c0_142] : memref<1x9x24x64xbf16, #tpu.memory_space<vmem>>, vector<1x8x8x64xbf16>
    tpu.vector_store %arg21[%c0_139, %c1_140, %c8_141, %c0_142], %162 {strides = array<i32>} : memref<1x9x24x64xbf16, #tpu.memory_space<vmem>>, vector<1x8x8x64xbf16>,
    %c0_143 = arith.constant 0 : index
    %c0_144 = arith.constant 0 : index
    %c7_145 = arith.constant 7 : index
    %c0_146 = arith.constant 0 : index
    %164 = vector.load %arg21[%c0_143, %c0_144, %c7_145, %c0_146] : memref<1x9x24x64xbf16, #tpu.memory_space<vmem>>, vector<1x8x8x64xbf16>
    %165 = vector.shape_cast %164 : vector<1x8x8x64xbf16> to vector<64x64xbf16>
    %c0_147 = arith.constant 0 : index
    %c0_148 = arith.constant 0 : index
    %c8_149 = arith.constant 8 : index
    %c0_150 = arith.constant 0 : index
    %166 = vector.load %arg21[%c0_147, %c0_148, %c8_149, %c0_150] : memref<1x9x24x64xbf16, #tpu.memory_space<vmem>>, vector<1x8x8x64xbf16>
    %167 = vector.shape_cast %166 : vector<1x8x8x64xbf16> to vector<64x64xbf16>
    %168 = tpu.concatenate %165, %167 in 1 : vector<64x64xbf16>, vector<64x64xbf16> -> vector<64x128xbf16>
    %c0_151 = arith.constant 0 : index
    %c0_152 = arith.constant 0 : index
    %c0_153 = arith.constant 0 : index
    %169 = vector.load %arg12[%c0_151, %c0_152, %c0_153] : memref<1x128x32xbf16, #tpu.memory_space<vmem>>, vector<1x128x32xbf16>
    %170 = vector.shape_cast %169 : vector<1x128x32xbf16> to vector<128x32xbf16>
    %cst_154 = arith.constant dense<0.000000e+00> : vector<64x32xf32>
    %171 = tpu.matmul %168, %170, %cst_154 {dimension_numbers = #tpu.dot_dimension_numbers<[1], [0], [0], [1], [0, 0, 1, 1], [], []>} : vector<64x128xbf16>, vector<128x32xbf16>, vector<64x32xf32> -> vector<64x32xf32>
    %c0_155 = arith.constant 0 : index
    %c1_156 = arith.constant 1 : index
    %c7_157 = arith.constant 7 : index
    %c0_158 = arith.constant 0 : index
    %172 = vector.load %arg21[%c0_155, %c1_156, %c7_157, %c0_158] : memref<1x9x24x64xbf16, #tpu.memory_space<vmem>>, vector<1x8x8x64xbf16>
    %173 = vector.shape_cast %172 : vector<1x8x8x64xbf16> to vector<64x64xbf16>
    %c0_159 = arith.constant 0 : index
    %c1_160 = arith.constant 1 : index
    %c8_161 = arith.constant 8 : index
    %c0_162 = arith.constant 0 : index
    %174 = vector.load %arg21[%c0_159, %c1_160, %c8_161, %c0_162] : memref<1x9x24x64xbf16, #tpu.memory_space<vmem>>, vector<1x8x8x64xbf16>
    %175 = vector.shape_cast %174 : vector<1x8x8x64xbf16> to vector<64x64xbf16>
    %176 = tpu.concatenate %173, %175 in 1 : vector<64x64xbf16>, vector<64x64xbf16> -> vector<64x128xbf16>
    %c0_163 = arith.constant 0 : index
    %c0_164 = arith.constant 0 : index
    %c0_165 = arith.constant 0 : index
    %177 = vector.load %arg13[%c0_163, %c0_164, %c0_165] : memref<1x128x32xbf16, #tpu.memory_space<vmem>>, vector<1x128x32xbf16>
    %178 = vector.shape_cast %177 : vector<1x128x32xbf16> to vector<128x32xbf16>
    %cst_166 = arith.constant dense<0.000000e+00> : vector<64x32xf32>
    %179 = tpu.matmul %176, %178, %cst_166 {dimension_numbers = #tpu.dot_dimension_numbers<[1], [0], [0], [1], [0, 0, 1, 1], [], []>} : vector<64x128xbf16>, vector<128x32xbf16>, vector<64x32xf32> -> vector<64x32xf32>
    %180 = arith.addf %171, %179 : vector<64x32xf32>
    %c0_167 = arith.constant 0 : index
    %c0_168 = arith.constant 0 : index
    %c0_169 = arith.constant 0 : index
    %181 = vector.load %arg14[%c0_167, %c0_168, %c0_169] : memref<1x64x32xbf16, #tpu.memory_space<vmem>>, vector<1x64x32xbf16>
    %182 = vector.shape_cast %181 : vector<1x64x32xbf16> to vector<64x32xbf16>
    %cst_170 = arith.constant dense<0.000000e+00> : vector<64x32xf32>
    %183 = tpu.matmul %133, %182, %cst_170 {dimension_numbers = #tpu.dot_dimension_numbers<[1], [0], [0], [1], [0, 0, 1, 1], [], []>} : vector<64x64xbf16>, vector<64x32xbf16>, vector<64x32xf32> -> vector<64x32xf32>
    %184 = arith.addf %180, %183 : vector<64x32xf32>
    %c0_171 = arith.constant 0 : index
    %c0_172 = arith.constant 0 : index
    %c0_173 = arith.constant 0 : index
    %185 = vector.load %arg15[%c0_171, %c0_172, %c0_173] : memref<1x64x32xbf16, #tpu.memory_space<vmem>>, vector<1x64x32xbf16>
    %186 = vector.shape_cast %185 : vector<1x64x32xbf16> to vector<64x32xbf16>
    %cst_174 = arith.constant dense<0.000000e+00> : vector<64x32xf32>
    %187 = tpu.matmul %149, %186, %cst_174 {dimension_numbers = #tpu.dot_dimension_numbers<[1], [0], [0], [1], [0, 0, 1, 1], [], []>} : vector<64x64xbf16>, vector<64x32xbf16>, vector<64x32xf32> -> vector<64x32xf32>
    %188 = arith.addf %184, %187 : vector<64x32xf32>
    %c0_175 = arith.constant 0 : index
    %c0_176 = arith.constant 0 : index
    %c0_177 = arith.constant 0 : index
    %189 = vector.load %arg16[%c0_175, %c0_176, %c0_177] : memref<1x1x32xf32, #tpu.memory_space<vmem>>, vector<1x1x32xf32>
    %190 = vector.shape_cast %189 : vector<1x1x32xf32> to vector<1x32xf32>
    %191 = vector.broadcast %190 : vector<1x32xf32> to vector<64x32xf32>
    %192 = arith.addf %188, %191 : vector<64x32xf32>
    %193 = vector.shape_cast %192 : vector<64x32xf32> to vector<1x8x8x32xf32>
    %cst_178 = arith.constant 0.000000e+00 : f32
    %194 = vector.broadcast %cst_178 : f32 to vector<1x8x8x32xf32>
    %195 = arith.subf %194, %193 : vector<1x8x8x32xf32>
    %196 = tpu.concatenate %193, %195 in 3 : vector<1x8x8x32xf32>, vector<1x8x8x32xf32> -> vector<1x8x8x64xf32>
    %cst_179 = arith.constant 0.000000e+00 : f32
    %197 = vector.broadcast %cst_179 : f32 to vector<1x8x8x64xf32>
    %198 = arith.cmpf ogt, %196, %197 : vector<1x8x8x64xf32>
    %cst_180 = arith.constant 0.000000e+00 : f32
    %199 = vector.broadcast %cst_180 : f32 to vector<1x8x8x64xf32>
    %200 = arith.minimumf %196, %199 : vector<1x8x8x64xf32>
    %201 = math.exp %200 : vector<1x8x8x64xf32>
    %cst_181 = arith.constant 1.000000e+00 : f32
    %202 = vector.broadcast %cst_181 : f32 to vector<1x8x8x64xf32>
    %203 = arith.subf %201, %202 : vector<1x8x8x64xf32>
    %204 = arith.select %198, %196, %203 : vector<1x8x8x64xi1>, vector<1x8x8x64xf32>
    %205 = arith.truncf %204 : vector<1x8x8x64xf32> to vector<1x8x8x64xbf16>
    %c0_182 = arith.constant 0 : index
    %c1_183 = arith.constant 1 : index
    %c8_184 = arith.constant 8 : index
    %c0_185 = arith.constant 0 : index
    %206 = vector.load %arg21[%c0_182, %c1_183, %c8_184, %c0_185] : memref<1x9x24x64xbf16, #tpu.memory_space<vmem>>, vector<1x8x8x64xbf16>
    tpu.vector_store %arg21[%c0_182, %c1_183, %c8_184, %c0_185], %205 {strides = array<i32>} : memref<1x9x24x64xbf16, #tpu.memory_space<vmem>>, vector<1x8x8x64xbf16>,
    %c0_186 = arith.constant 0 : index
    %c0_187 = arith.constant 0 : index
    %c7_188 = arith.constant 7 : index
    %c0_189 = arith.constant 0 : index
    %207 = vector.load %arg21[%c0_186, %c0_187, %c7_188, %c0_189] : memref<1x9x24x64xbf16, #tpu.memory_space<vmem>>, vector<1x8x8x64xbf16>
    %208 = vector.shape_cast %207 : vector<1x8x8x64xbf16> to vector<64x64xbf16>
    %c0_190 = arith.constant 0 : index
    %c0_191 = arith.constant 0 : index
    %c8_192 = arith.constant 8 : index
    %c0_193 = arith.constant 0 : index
    %209 = vector.load %arg21[%c0_190, %c0_191, %c8_192, %c0_193] : memref<1x9x24x64xbf16, #tpu.memory_space<vmem>>, vector<1x8x8x64xbf16>
    %210 = vector.shape_cast %209 : vector<1x8x8x64xbf16> to vector<64x64xbf16>
    %211 = tpu.concatenate %208, %210 in 1 : vector<64x64xbf16>, vector<64x64xbf16> -> vector<64x128xbf16>
    %c0_194 = arith.constant 0 : index
    %c1_195 = arith.constant 1 : index
    %c7_196 = arith.constant 7 : index
    %c0_197 = arith.constant 0 : index
    %212 = vector.load %arg21[%c0_194, %c1_195, %c7_196, %c0_197] : memref<1x9x24x64xbf16, #tpu.memory_space<vmem>>, vector<1x8x8x64xbf16>
    %213 = vector.shape_cast %212 : vector<1x8x8x64xbf16> to vector<64x64xbf16>
    %c0_198 = arith.constant 0 : index
    %c1_199 = arith.constant 1 : index
    %c8_200 = arith.constant 8 : index
    %c0_201 = arith.constant 0 : index
    %214 = vector.load %arg21[%c0_198, %c1_199, %c8_200, %c0_201] : memref<1x9x24x64xbf16, #tpu.memory_space<vmem>>, vector<1x8x8x64xbf16>
    %215 = vector.shape_cast %214 : vector<1x8x8x64xbf16> to vector<64x64xbf16>
    %216 = tpu.concatenate %213, %215 in 1 : vector<64x64xbf16>, vector<64x64xbf16> -> vector<64x128xbf16>
    %c0_202 = arith.constant 0 : index
    %c0_203 = arith.constant 0 : index
    %c0_204 = arith.constant 0 : index
    %c0_205 = arith.constant 0 : index
    %217 = vector.load %arg17[%c0_202, %c0_203, %c0_204, %c0_205] : memref<1x4x128x32xbf16, #tpu.memory_space<vmem>>, vector<1x1x128x32xbf16>
    %218 = vector.shape_cast %217 : vector<1x1x128x32xbf16> to vector<128x32xbf16>
    %cst_206 = arith.constant dense<0.000000e+00> : vector<64x32xf32>
    %219 = tpu.matmul %211, %218, %cst_206 {dimension_numbers = #tpu.dot_dimension_numbers<[1], [0], [0], [1], [0, 0, 1, 1], [], []>} : vector<64x128xbf16>, vector<128x32xbf16>, vector<64x32xf32> -> vector<64x32xf32>
    %c0_207 = arith.constant 0 : index
    %c2_208 = arith.constant 2 : index
    %c0_209 = arith.constant 0 : index
    %c0_210 = arith.constant 0 : index
    %220 = vector.load %arg17[%c0_207, %c2_208, %c0_209, %c0_210] : memref<1x4x128x32xbf16, #tpu.memory_space<vmem>>, vector<1x1x128x32xbf16>
    %221 = vector.shape_cast %220 : vector<1x1x128x32xbf16> to vector<128x32xbf16>
    %cst_211 = arith.constant dense<0.000000e+00> : vector<64x32xf32>
    %222 = tpu.matmul %216, %221, %cst_211 {dimension_numbers = #tpu.dot_dimension_numbers<[1], [0], [0], [1], [0, 0, 1, 1], [], []>} : vector<64x128xbf16>, vector<128x32xbf16>, vector<64x32xf32> -> vector<64x32xf32>
    %223 = arith.addf %219, %222 : vector<64x32xf32>
    %c0_212 = arith.constant 0 : index
    %c0_213 = arith.constant 0 : index
    %c0_214 = arith.constant 0 : index
    %c0_215 = arith.constant 0 : index
    %224 = vector.load %arg18[%c0_212, %c0_213, %c0_214, %c0_215] : memref<1x2x1x32xf32, #tpu.memory_space<vmem>>, vector<1x1x1x32xf32>
    %225 = vector.shape_cast %224 : vector<1x1x1x32xf32> to vector<1x32xf32>
    %226 = vector.broadcast %225 : vector<1x32xf32> to vector<64x32xf32>
    %227 = arith.addf %223, %226 : vector<64x32xf32>
    %c0_216 = arith.constant 0 : index
    %c1_217 = arith.constant 1 : index
    %c0_218 = arith.constant 0 : index
    %c0_219 = arith.constant 0 : index
    %228 = vector.load %arg17[%c0_216, %c1_217, %c0_218, %c0_219] : memref<1x4x128x32xbf16, #tpu.memory_space<vmem>>, vector<1x1x128x32xbf16>
    %229 = vector.shape_cast %228 : vector<1x1x128x32xbf16> to vector<128x32xbf16>
    %cst_220 = arith.constant dense<0.000000e+00> : vector<64x32xf32>
    %230 = tpu.matmul %211, %229, %cst_220 {dimension_numbers = #tpu.dot_dimension_numbers<[1], [0], [0], [1], [0, 0, 1, 1], [], []>} : vector<64x128xbf16>, vector<128x32xbf16>, vector<64x32xf32> -> vector<64x32xf32>
    %c0_221 = arith.constant 0 : index
    %c3_222 = arith.constant 3 : index
    %c0_223 = arith.constant 0 : index
    %c0_224 = arith.constant 0 : index
    %231 = vector.load %arg17[%c0_221, %c3_222, %c0_223, %c0_224] : memref<1x4x128x32xbf16, #tpu.memory_space<vmem>>, vector<1x1x128x32xbf16>
    %232 = vector.shape_cast %231 : vector<1x1x128x32xbf16> to vector<128x32xbf16>
    %cst_225 = arith.constant dense<0.000000e+00> : vector<64x32xf32>
    %233 = tpu.matmul %216, %232, %cst_225 {dimension_numbers = #tpu.dot_dimension_numbers<[1], [0], [0], [1], [0, 0, 1, 1], [], []>} : vector<64x128xbf16>, vector<128x32xbf16>, vector<64x32xf32> -> vector<64x32xf32>
    %234 = arith.addf %230, %233 : vector<64x32xf32>
    %c0_226 = arith.constant 0 : index
    %c1_227 = arith.constant 1 : index
    %c0_228 = arith.constant 0 : index
    %c0_229 = arith.constant 0 : index
    %235 = vector.load %arg18[%c0_226, %c1_227, %c0_228, %c0_229] : memref<1x2x1x32xf32, #tpu.memory_space<vmem>>, vector<1x1x1x32xf32>
    %236 = vector.shape_cast %235 : vector<1x1x1x32xf32> to vector<1x32xf32>
    %237 = vector.broadcast %236 : vector<1x32xf32> to vector<64x32xf32>
    %238 = arith.addf %234, %237 : vector<64x32xf32>
    %239 = arith.negf %238 : vector<64x32xf32>
    %240 = math.exp %239 : vector<64x32xf32>
    %cst_230 = arith.constant 1.000000e+00 : f32
    %241 = vector.broadcast %cst_230 : f32 to vector<64x32xf32>
    %242 = arith.addf %241, %240 : vector<64x32xf32>
    %243 = arith.divf %241, %242 : vector<64x32xf32>
    %244 = arith.mulf %227, %243 : vector<64x32xf32>
    %245 = vector.shape_cast %244 : vector<64x32xf32> to vector<1x8x8x32xf32>
    %246 = arith.addf %150, %245 : vector<1x8x8x32xf32>
    %c0_231 = arith.constant 0 : index
    %c0_232 = arith.constant 0 : index
    %c0_233 = arith.constant 0 : index
    %c0_234 = arith.constant 0 : index
    %247 = vector.load %arg20[%c0_231, %c0_232, %c0_233, %c0_234] : memref<1x8x8x32xf32, #tpu.memory_space<vmem>>, vector<1x8x8x32xf32>
    tpu.vector_store %arg20[%c0_231, %c0_232, %c0_233, %c0_234], %246 {strides = array<i32>} : memref<1x8x8x32xf32, #tpu.memory_space<vmem>>, vector<1x8x8x32xf32>,
    return
  }
  func.func @transform_0(%arg0: i32, %arg1: i32) -> (i32, i32, i32, i32) {
    %c0_i32 = arith.constant 0 : i32
    %c0_i32_0 = arith.constant 0 : i32
    %c0_i32_1 = arith.constant 0 : i32
    %c0_i32_2 = arith.constant 0 : i32
    return %arg0, %c0_i32, %c0_i32_0, %c0_i32_1 : i32, i32, i32, i32
  }
  func.func @transform_1(%arg0: i32, %arg1: i32) -> (i32, i32, i32, i32) {
    %c0_i32 = arith.constant 0 : i32
    %c0_i32_0 = arith.constant 0 : i32
    %c0_i32_1 = arith.constant 0 : i32
    %c0_i32_2 = arith.constant 0 : i32
    return %arg0, %c0_i32, %c0_i32_0, %c0_i32_1 : i32, i32, i32, i32
  }
  func.func @transform_2(%arg0: i32, %arg1: i32) -> (i32, i32, i32, i32, i32) {
    %c0_i32 = arith.constant 0 : i32
    %c0_i32_0 = arith.constant 0 : i32
    %c0_i32_1 = arith.constant 0 : i32
    %c0_i32_2 = arith.constant 0 : i32
    return %arg1, %arg0, %c0_i32, %c0_i32_0, %c0_i32_1 : i32, i32, i32, i32, i32
  }
  func.func @transform_3(%arg0: i32, %arg1: i32) -> (i32, i32, i32, i32, i32) {
    %c0_i32 = arith.constant 0 : i32
    %c0_i32_0 = arith.constant 0 : i32
    %c0_i32_1 = arith.constant 0 : i32
    %c0_i32_2 = arith.constant 0 : i32
    return %arg1, %arg0, %c0_i32, %c0_i32_0, %c0_i32_1 : i32, i32, i32, i32, i32
  }
  func.func @transform_4(%arg0: i32, %arg1: i32) -> (i32, i32, i32) {
    %c0_i32 = arith.constant 0 : i32
    %c0_i32_0 = arith.constant 0 : i32
    %c0_i32_1 = arith.constant 0 : i32
    return %arg1, %c0_i32, %c0_i32_0 : i32, i32, i32
  }
  func.func @transform_5(%arg0: i32, %arg1: i32) -> (i32, i32, i32) {
    %c0_i32 = arith.constant 0 : i32
    %c0_i32_0 = arith.constant 0 : i32
    %c0_i32_1 = arith.constant 0 : i32
    return %arg1, %c0_i32, %c0_i32_0 : i32, i32, i32
  }
  func.func @transform_6(%arg0: i32, %arg1: i32) -> (i32, i32, i32) {
    %c0_i32 = arith.constant 0 : i32
    %c0_i32_0 = arith.constant 0 : i32
    %c0_i32_1 = arith.constant 0 : i32
    return %arg1, %c0_i32, %c0_i32_0 : i32, i32, i32
  }
  func.func @transform_7(%arg0: i32, %arg1: i32) -> (i32, i32, i32) {
    %c0_i32 = arith.constant 0 : i32
    %c0_i32_0 = arith.constant 0 : i32
    %c0_i32_1 = arith.constant 0 : i32
    return %arg1, %c0_i32, %c0_i32_0 : i32, i32, i32
  }
  func.func @transform_8(%arg0: i32, %arg1: i32) -> (i32, i32, i32, i32) {
    %c0_i32 = arith.constant 0 : i32
    %c0_i32_0 = arith.constant 0 : i32
    %c0_i32_1 = arith.constant 0 : i32
    %c0_i32_2 = arith.constant 0 : i32
    return %arg1, %c0_i32, %c0_i32_0, %c0_i32_1 : i32, i32, i32, i32
  }
  func.func @transform_9(%arg0: i32, %arg1: i32) -> (i32, i32, i32, i32) {
    %c0_i32 = arith.constant 0 : i32
    %c0_i32_0 = arith.constant 0 : i32
    %c0_i32_1 = arith.constant 0 : i32
    %c0_i32_2 = arith.constant 0 : i32
    return %arg1, %c0_i32, %c0_i32_0, %c0_i32_1 : i32, i32, i32, i32
  }
  func.func @transform_10(%arg0: i32, %arg1: i32) -> (i32, i32, i32) {
    %c0_i32 = arith.constant 0 : i32
    %c0_i32_0 = arith.constant 0 : i32
    %c0_i32_1 = arith.constant 0 : i32
    return %arg1, %c0_i32, %c0_i32_0 : i32, i32, i32
  }
  func.func @transform_11(%arg0: i32, %arg1: i32) -> (i32, i32, i32) {
    %c0_i32 = arith.constant 0 : i32
    %c0_i32_0 = arith.constant 0 : i32
    %c0_i32_1 = arith.constant 0 : i32
    return %arg1, %c0_i32, %c0_i32_0 : i32, i32, i32
  }
  func.func @transform_12(%arg0: i32, %arg1: i32) -> (i32, i32, i32) {
    %c0_i32 = arith.constant 0 : i32
    %c0_i32_0 = arith.constant 0 : i32
    %c0_i32_1 = arith.constant 0 : i32
    return %arg1, %c0_i32, %c0_i32_0 : i32, i32, i32
  }
  func.func @transform_13(%arg0: i32, %arg1: i32) -> (i32, i32, i32) {
    %c0_i32 = arith.constant 0 : i32
    %c0_i32_0 = arith.constant 0 : i32
    %c0_i32_1 = arith.constant 0 : i32
    return %arg1, %c0_i32, %c0_i32_0 : i32, i32, i32
  }
  func.func @transform_14(%arg0: i32, %arg1: i32) -> (i32, i32, i32) {
    %c0_i32 = arith.constant 0 : i32
    %c0_i32_0 = arith.constant 0 : i32
    %c0_i32_1 = arith.constant 0 : i32
    return %arg1, %c0_i32, %c0_i32_0 : i32, i32, i32
  }
  func.func @transform_15(%arg0: i32, %arg1: i32) -> (i32, i32, i32, i32) {
    %c0_i32 = arith.constant 0 : i32
    %c0_i32_0 = arith.constant 0 : i32
    %c0_i32_1 = arith.constant 0 : i32
    %c0_i32_2 = arith.constant 0 : i32
    return %arg1, %c0_i32, %c0_i32_0, %c0_i32_1 : i32, i32, i32, i32
  }
  func.func @transform_16(%arg0: i32, %arg1: i32) -> (i32, i32, i32, i32) {
    %c0_i32 = arith.constant 0 : i32
    %c0_i32_0 = arith.constant 0 : i32
    %c0_i32_1 = arith.constant 0 : i32
    %c0_i32_2 = arith.constant 0 : i32
    return %arg1, %c0_i32, %c0_i32_0, %c0_i32_1 : i32, i32, i32, i32
  }
  func.func @transform_17(%arg0: i32, %arg1: i32) -> (i32, i32, i32, i32) {
    %c0_i32 = arith.constant 0 : i32
    %c0_i32_0 = arith.constant 0 : i32
    %c0_i32_1 = arith.constant 0 : i32
    %c0_i32_2 = arith.constant 0 : i32
    return %arg0, %c0_i32, %c0_i32_0, %c0_i32_1 : i32, i32, i32, i32
  }
  func.func @transform_18(%arg0: i32, %arg1: i32) -> (i32, i32, i32, i32) {
    %c0_i32 = arith.constant 0 : i32
    %c0_i32_0 = arith.constant 0 : i32
    %c0_i32_1 = arith.constant 0 : i32
    %c0_i32_2 = arith.constant 0 : i32
    return %arg0, %c0_i32, %c0_i32_0, %c0_i32_1 : i32, i32, i32, i32
  }
}

</mosaic_0001>

<llo_original>
// kernel: pixelcnn_layer_down.1
$region0: #{pixelcnn_layer_down.1}
  #allocation0 [shape = 'u32[]', space=smem, size = 0x4, offset = 0x4, fixed_abs, tag = 'smem constant byte address 0x4 - core index']
  #allocation1 [shape = 'u32[144,128]{1,0:T(1,128)}', space=vmem, size = 0x12000, scoped, tag = 'internal scratch']
  #allocation2 [shape = 'bf16[1,9,24,64]{3,2,1,0:T(8,128)(2,1)}', space=vmem, size = 0xd800, scoped, tag = 'scratch operand']
  %s0 = inlined_call_operand.vmem [shape: f32[2,8,8,32], index: 0, kind: input, shape index: {}]
  %s1 = inlined_call_operand.vmem [shape: f32[2,8,8,32], index: 1, kind: input, shape index: {}]
  %s2 = inlined_call_operand.vmem [shape: bf16[2,2,8,8,32], index: 2, kind: input, shape index: {}]
  %s3 = inlined_call_operand.vmem [shape: bf16[2,2,8,8,32], index: 3, kind: input, shape index: {}]
  %s4 = inlined_call_operand.vmem [shape: bf16[2,192,32], index: 4, kind: input, shape index: {}]
  %s5 = inlined_call_operand.vmem [shape: bf16[2,192,32], index: 5, kind: input, shape index: {}]
  %s6 = inlined_call_operand.vmem [shape: bf16[2,64,32], index: 6, kind: input, shape index: {}]
  %s7 = inlined_call_operand.vmem [shape: f32[2,1,32], index: 7, kind: input, shape index: {}]
  %s8 = inlined_call_operand.vmem [shape: bf16[2,4,192,32], index: 8, kind: input, shape index: {}]
  %s9 = inlined_call_operand.vmem [shape: f32[2,2,1,32], index: 9, kind: input, shape index: {}]
  %s10 = inlined_call_operand.vmem [shape: bf16[2,128,32], index: 10, kind: input, shape index: {}]
  %s11 = inlined_call_operand.vmem [shape: bf16[2,128,32], index: 11, kind: input, shape index: {}]
  %s12 = inlined_call_operand.vmem [shape: bf16[2,64,32], index: 12, kind: input, shape index: {}]
  %s13 = inlined_call_operand.vmem [shape: bf16[2,64,32], index: 13, kind: input, shape index: {}]
  %s14 = inlined_call_operand.vmem [shape: f32[2,1,32], index: 14, kind: input, shape index: {}]
  %s15 = inlined_call_operand.vmem [shape: bf16[2,4,128,32], index: 15, kind: input, shape index: {}]
  %s16 = inlined_call_operand.vmem [shape: f32[2,2,1,32], index: 16, kind: input, shape index: {}]
  %s17 = inlined_call_operand.hbm [shape: f32[2,8,8,32], index: 17, kind: output, shape index: {0}]
  %s18 = inlined_call_operand.hbm [shape: f32[2,8,8,32], index: 18, kind: output, shape index: {1}]
  %19 = xla_tuple %s17, %s18
  %s20 = sld [smem:[#allocation0]]
  $region113: #{pixelcnn_layer_down.1} parent=0
    _
  %s22 = ssub.s32 1, %s20
  %s23 = scalar_select 0, %s22, %s20
  $region1: #{pixelcnn_layer_down.1} parent=0
    #allocation3 [shape = 'u8[65536]{0}', space=vmem, size = 0x10000, scoped, tag = 'output window, operand 0']
    #allocation4 [shape = 's32[2]{0}', space=sflag, size = 0x8, scoped, tag = 'scoped memory for pixelcnn_layer_down.1']
    #allocation5 [shape = 'u8[65536]{0}', space=vmem, size = 0x10000, scoped, tag = 'output window, operand 1']
    #allocation6 [shape = 's32[2]{0}', space=sflag, size = 0x8, scoped, tag = 'scoped memory for pixelcnn_layer_down.1']
    %24 = vsyncpa [#allocation4], 0
    %s25 = scalar_lea.sflag [#allocation4], 1
    %26 = vsyncpa %s25, 0
    %27 = vsyncpa [#allocation6], 0
    %s28 = scalar_lea.sflag [#allocation6], 1
    %29 = vsyncpa %s28, 0
    loop: start=0, step=1, limit=6
    $region2: #{pixelcnn_layer_down.1} parent=1 // loop_pre_header
      _
    $region3: #{pixelcnn_layer_down.1} parent=1 // loop_header
      %s31 = sphi 0, %s35
      %p32 = scmp.ge.s32.totalorder %s31, 6
      %s38 = sphi 0, %s50
      %s39 = sphi 0, %s46
      %s40 = sphi 0, %s38
      %s41 = sphi 0, %s39
      %s42 = sphi 0, %s40
      %s43 = sphi 0, %s41
      %s53 = sphi 0, %s55
      %s56 = sphi 0, %s53
      %s57 = sphi 0, %s56
      %s73 = sphi 0, %s57
      %s79 = sphi 0, %s81
      %s82 = sphi 0, %s79
      %s83 = sphi 0, %s82
      %s99 = sphi 0, %s83
      %s107 = sphi 0, %s109
      %s110 = sphi 0, %s107
      %s111 = sphi 0, %s110
      %s127 = sphi 0, %s111
      %s135 = sphi 0, %s137
      %s138 = sphi 0, %s135
      %s139 = sphi 0, %s138
      %s155 = sphi 0, %s139
      %s161 = sphi 0, %s163
      %s164 = sphi 0, %s161
      %s165 = sphi 0, %s164
      %s181 = sphi 0, %s165
      %s187 = sphi 0, %s189
      %s190 = sphi 0, %s187
      %s191 = sphi 0, %s190
      %s207 = sphi 0, %s191
      %s213 = sphi 0, %s215
      %s216 = sphi 0, %s213
      %s217 = sphi 0, %s216
      %s233 = sphi 0, %s217
      %s239 = sphi 0, %s241
      %s242 = sphi 0, %s239
      %s243 = sphi 0, %s242
      %s259 = sphi 0, %s243
      %s265 = sphi 0, %s267
      %s268 = sphi 0, %s265
      %s269 = sphi 0, %s268
      %s285 = sphi 0, %s269
      %s291 = sphi 0, %s293
      %s294 = sphi 0, %s291
      %s295 = sphi 0, %s294
      %s311 = sphi 0, %s295
      %s317 = sphi 0, %s319
      %s320 = sphi 0, %s317
      %s321 = sphi 0, %s320
      %s337 = sphi 0, %s321
      %s343 = sphi 0, %s345
      %s346 = sphi 0, %s343
      %s347 = sphi 0, %s346
      %s363 = sphi 0, %s347
      %s369 = sphi 0, %s371
      %s372 = sphi 0, %s369
      %s373 = sphi 0, %s372
      %s389 = sphi 0, %s373
      %s395 = sphi 0, %s397
      %s398 = sphi 0, %s395
      %s399 = sphi 0, %s398
      %s415 = sphi 0, %s399
      %s421 = sphi 0, %s423
      %s424 = sphi 0, %s421
      %s425 = sphi 0, %s424
      %s441 = sphi 0, %s425
      %s447 = sphi 0, %s449
      %s450 = sphi 0, %s447
      %s451 = sphi 0, %s450
      %s467 = sphi 0, %s451
      %s473 = sphi 0, %s475
      %s476 = sphi 0, %s473
      %s477 = sphi 0, %s476
      %s493 = sphi 0, %s477
      %s499 = sphi 0, %s501
      %s502 = sphi 0, %s499
      %s503 = sphi 0, %s502
      %s519 = sphi 0, %s503
      %s525 = sphi 0, %s527
      %s528 = sphi 0, %s525
      %s529 = sphi 0, %s528
      %s545 = sphi 0, %s529
    $region4: #{pixelcnn_layer_down.1} parent=1 // loop_header_branch
      %34 = sbr.rel (%p32) target = $region8
    $region5: #{pixelcnn_layer_down.1} parent=1 // loop_body
      %s36 = ssub.s32 %s31, 1
      %s37 = ssub.s32 %s31, 2
      %s44 = sadd.s32 1, %s39
      %p45 = scmp.ge.s32.totalorder %s44, 2
      %s46 = scalar_select %p45, 0, %s44
      %s47 = sadd.s32 1, %s38
      %s48 = scalar_select %p45, %s47, %s38
      %p49 = scmp.ge.s32.totalorder %s48, 2
      %s50 = scalar_select %p49, 0, %s48
      %s51 = ssub.s32 %s38, %s50
      %p52 = scmp.eq.s32.totalorder %s51, 0
      %s54 = sadd.s32 %s53, 1
      %s55 = scalar_select %p52, %s53, %s54
      %p58 = pneg %p52
      %p59 = scmp.eq.s32.totalorder %s31, 3
      %p60 = por %p58, %p59
      %p61 = scmp.ne.s32.totalorder %s53, %s56
      %p62 = scmp.eq.s32.totalorder %s31, 0
      %p63 = por %p61, %p62
      %p64 = scmp.ne.s32.totalorder %s53, %s56
      %p65 = scmp.eq.s32.totalorder %s36, 3
      %p66 = por %p64, %p65
      %p67 = scmp.ne.s32.totalorder %s56, %s57
      %p68 = scmp.eq.s32.totalorder %s36, 0
      %p69 = por %p67, %p68
      %p70 = scmp.ne.s32.totalorder %s56, %s57
      %p71 = scmp.eq.s32.totalorder %s37, 3
      %p72 = por %p70, %p71
      %p74 = scmp.ne.s32.totalorder %s57, %s73
      %p75 = scmp.eq.s32.totalorder %s37, 0
      %p76 = por %p74, %p75
      %s77 = ssub.s32 %s38, %s50
      %p78 = scmp.eq.s32.totalorder %s77, 0
      %s80 = sadd.s32 %s79, 1
      %s81 = scalar_select %p78, %s79, %s80
      %p84 = pneg %p78
      %p85 = scmp.eq.s32.totalorder %s31, 3
      %p86 = por %p84, %p85
      %p87 = scmp.ne.s32.totalorder %s79, %s82
      %p88 = scmp.eq.s32.totalorder %s31, 0
      %p89 = por %p87, %p88
      %p90 = scmp.ne.s32.totalorder %s79, %s82
      %p91 = scmp.eq.s32.totalorder %s36, 3
      %p92 = por %p90, %p91
      %p93 = scmp.ne.s32.totalorder %s82, %s83
      %p94 = scmp.eq.s32.totalorder %s36, 0
      %p95 = por %p93, %p94
      %p96 = scmp.ne.s32.totalorder %s82, %s83
      %p97 = scmp.eq.s32.totalorder %s37, 3
      %p98 = por %p96, %p97
      %p100 = scmp.ne.s32.totalorder %s83, %s99
      %p101 = scmp.eq.s32.totalorder %s37, 0
      %p102 = por %p100, %p101
      %s103 = ssub.s32 %s39, %s46
      %s104 = ssub.s32 %s38, %s50
      %s105 = sor.u32 %s103, %s104
      %p106 = scmp.eq.s32.totalorder %s105, 0
      %s108 = sadd.s32 %s107, 1
      %s109 = scalar_select %p106, %s107, %s108
      %p112 = pneg %p106
      %p113 = scmp.eq.s32.totalorder %s31, 3
      %p114 = por %p112, %p113
      %p115 = scmp.ne.s32.totalorder %s107, %s110
      %p116 = scmp.eq.s32.totalorder %s31, 0
      %p117 = por %p115, %p116
      %p118 = scmp.ne.s32.totalorder %s107, %s110
      %p119 = scmp.eq.s32.totalorder %s36, 3
      %p120 = por %p118, %p119
      %p121 = scmp.ne.s32.totalorder %s110, %s111
      %p122 = scmp.eq.s32.totalorder %s36, 0
      %p123 = por %p121, %p122
      %p124 = scmp.ne.s32.totalorder %s110, %s111
      %p125 = scmp.eq.s32.totalorder %s37, 3
      %p126 = por %p124, %p125
      %p128 = scmp.ne.s32.totalorder %s111, %s127
      %p129 = scmp.eq.s32.totalorder %s37, 0
      %p130 = por %p128, %p129
      %s131 = ssub.s32 %s39, %s46
      %s132 = ssub.s32 %s38, %s50
      %s133 = sor.u32 %s131, %s132
      %p134 = scmp.eq.s32.totalorder %s133, 0
      %s136 = sadd.s32 %s135, 1
      %s137 = scalar_select %p134, %s135, %s136
      %p140 = pneg %p134
      %p141 = scmp.eq.s32.totalorder %s31, 3
      %p142 = por %p140, %p141
      %p143 = scmp.ne.s32.totalorder %s135, %s138
      %p144 = scmp.eq.s32.totalorder %s31, 0
      %p145 = por %p143, %p144
      %p146 = scmp.ne.s32.totalorder %s135, %s138
      %p147 = scmp.eq.s32.totalorder %s36, 3
      %p148 = por %p146, %p147
      %p149 = scmp.ne.s32.totalorder %s138, %s139
      %p150 = scmp.eq.s32.totalorder %s36, 0
      %p151 = por %p149, %p150
      %p152 = scmp.ne.s32.totalorder %s138, %s139
      %p153 = scmp.eq.s32.totalorder %s37, 3
      %p154 = por %p152, %p153
      %p156 = scmp.ne.s32.totalorder %s139, %s155
      %p157 = scmp.eq.s32.totalorder %s37, 0
      %p158 = por %p156, %p157
      %s159 = ssub.s32 %s39, %s46
      %p160 = scmp.eq.s32.totalorder %s159, 0
      %s162 = sadd.s32 %s161, 1
      %s163 = scalar_select %p160, %s161, %s162
      %p166 = pneg %p160
      %p167 = scmp.eq.s32.totalorder %s31, 3
      %p168 = por %p166, %p167
      %p169 = scmp.ne.s32.totalorder %s161, %s164
      %p170 = scmp.eq.s32.totalorder %s31, 0
      %p171 = por %p169, %p170
      %p172 = scmp.ne.s32.totalorder %s161, %s164
      %p173 = scmp.eq.s32.totalorder %s36, 3
      %p174 = por %p172, %p173
      %p175 = scmp.ne.s32.totalorder %s164, %s165
      %p176 = scmp.eq.s32.totalorder %s36, 0
      %p177 = por %p175, %p176
      %p178 = scmp.ne.s32.totalorder %s164, %s165
      %p179 = scmp.eq.s32.totalorder %s37, 3
      %p180 = por %p178, %p179
      %p182 = scmp.ne.s32.totalorder %s165, %s181
      %p183 = scmp.eq.s32.totalorder %s37, 0
      %p184 = por %p182, %p183
      %s185 = ssub.s32 %s39, %s46
      %p186 = scmp.eq.s32.totalorder %s185, 0
      %s188 = sadd.s32 %s187, 1
      %s189 = scalar_select %p186, %s187, %s188
      %p192 = pneg %p186
      %p193 = scmp.eq.s32.totalorder %s31, 3
      %p194 = por %p192, %p193
      %p195 = scmp.ne.s32.totalorder %s187, %s190
      %p196 = scmp.eq.s32.totalorder %s31, 0
      %p197 = por %p195, %p196
      %p198 = scmp.ne.s32.totalorder %s187, %s190
      %p199 = scmp.eq.s32.totalorder %s36, 3
      %p200 = por %p198, %p199
      %p201 = scmp.ne.s32.totalorder %s190, %s191
      %p202 = scmp.eq.s32.totalorder %s36, 0
      %p203 = por %p201, %p202
      %p204 = scmp.ne.s32.totalorder %s190, %s191
      %p205 = scmp.eq.s32.totalorder %s37, 3
      %p206 = por %p204, %p205
      %p208 = scmp.ne.s32.totalorder %s191, %s207
      %p209 = scmp.eq.s32.totalorder %s37, 0
      %p210 = por %p208, %p209
      %s211 = ssub.s32 %s39, %s46
      %p212 = scmp.eq.s32.totalorder %s211, 0
      %s214 = sadd.s32 %s213, 1
      %s215 = scalar_select %p212, %s213, %s214
      %p218 = pneg %p212
      %p219 = scmp.eq.s32.totalorder %s31, 3
      %p220 = por %p218, %p219
      %p221 = scmp.ne.s32.totalorder %s213, %s216
      %p222 = scmp.eq.s32.totalorder %s31, 0
      %p223 = por %p221, %p222
      %p224 = scmp.ne.s32.totalorder %s213, %s216
      %p225 = scmp.eq.s32.totalorder %s36, 3
      %p226 = por %p224, %p225
      %p227 = scmp.ne.s32.totalorder %s216, %s217
      %p228 = scmp.eq.s32.totalorder %s36, 0
      %p229 = por %p227, %p228
      %p230 = scmp.ne.s32.totalorder %s216, %s217
      %p231 = scmp.eq.s32.totalorder %s37, 3
      %p232 = por %p230, %p231
      %p234 = scmp.ne.s32.totalorder %s217, %s233
      %p235 = scmp.eq.s32.totalorder %s37, 0
      %p236 = por %p234, %p235
      %s237 = ssub.s32 %s39, %s46
      %p238 = scmp.eq.s32.totalorder %s237, 0
      %s240 = sadd.s32 %s239, 1
      %s241 = scalar_select %p238, %s239, %s240
      %p244 = pneg %p238
      %p245 = scmp.eq.s32.totalorder %s31, 3
      %p246 = por %p244, %p245
      %p247 = scmp.ne.s32.totalorder %s239, %s242
      %p248 = scmp.eq.s32.totalorder %s31, 0
      %p249 = por %p247, %p248
      %p250 = scmp.ne.s32.totalorder %s239, %s242
      %p251 = scmp.eq.s32.totalorder %s36, 3
      %p252 = por %p250, %p251
      %p253 = scmp.ne.s32.totalorder %s242, %s243
      %p254 = scmp.eq.s32.totalorder %s36, 0
      %p255 = por %p253, %p254
      %p256 = scmp.ne.s32.totalorder %s242, %s243
      %p257 = scmp.eq.s32.totalorder %s37, 3
      %p258 = por %p256, %p257
      %p260 = scmp.ne.s32.totalorder %s243, %s259
      %p261 = scmp.eq.s32.totalorder %s37, 0
      %p262 = por %p260, %p261
      %s263 = ssub.s32 %s39, %s46
      %p264 = scmp.eq.s32.totalorder %s263, 0
      %s266 = sadd.s32 %s265, 1
      %s267 = scalar_select %p264, %s265, %s266
      %p270 = pneg %p264
      %p271 = scmp.eq.s32.totalorder %s31, 3
      %p272 = por %p270, %p271
      %p273 = scmp.ne.s32.totalorder %s265, %s268
      %p274 = scmp.eq.s32.totalorder %s31, 0
      %p275 = por %p273, %p274
      %p276 = scmp.ne.s32.totalorder %s265, %s268
      %p277 = scmp.eq.s32.totalorder %s36, 3
      %p278 = por %p276, %p277
      %p279 = scmp.ne.s32.totalorder %s268, %s269
      %p280 = scmp.eq.s32.totalorder %s36, 0
      %p281 = por %p279, %p280
      %p282 = scmp.ne.s32.totalorder %s268, %s269
      %p283 = scmp.eq.s32.totalorder %s37, 3
      %p284 = por %p282, %p283
      %p286 = scmp.ne.s32.totalorder %s269, %s285
      %p287 = scmp.eq.s32.totalorder %s37, 0
      %p288 = por %p286, %p287
      %s289 = ssub.s32 %s39, %s46
      %p290 = scmp.eq.s32.totalorder %s289, 0
      %s292 = sadd.s32 %s291, 1
      %s293 = scalar_select %p290, %s291, %s292
      %p296 = pneg %p290
      %p297 = scmp.eq.s32.totalorder %s31, 3
      %p298 = por %p296, %p297
      %p299 = scmp.ne.s32.totalorder %s291, %s294
      %p300 = scmp.eq.s32.totalorder %s31, 0
      %p301 = por %p299, %p300
      %p302 = scmp.ne.s32.totalorder %s291, %s294
      %p303 = scmp.eq.s32.totalorder %s36, 3
      %p304 = por %p302, %p303
      %p305 = scmp.ne.s32.totalorder %s294, %s295
      %p306 = scmp.eq.s32.totalorder %s36, 0
      %p307 = por %p305, %p306
      %p308 = scmp.ne.s32.totalorder %s294, %s295
      %p309 = scmp.eq.s32.totalorder %s37, 3
      %p310 = por %p308, %p309
      %p312 = scmp.ne.s32.totalorder %s295, %s311
      %p313 = scmp.eq.s32.totalorder %s37, 0
      %p314 = por %p312, %p313
      %s315 = ssub.s32 %s39, %s46
      %p316 = scmp.eq.s32.totalorder %s315, 0
      %s318 = sadd.s32 %s317, 1
      %s319 = scalar_select %p316, %s317, %s318
      %p322 = pneg %p316
      %p323 = scmp.eq.s32.totalorder %s31, 3
      %p324 = por %p322, %p323
      %p325 = scmp.ne.s32.totalorder %s317, %s320
      %p326 = scmp.eq.s32.totalorder %s31, 0
      %p327 = por %p325, %p326
      %p328 = scmp.ne.s32.totalorder %s317, %s320
      %p329 = scmp.eq.s32.totalorder %s36, 3
      %p330 = por %p328, %p329
      %p331 = scmp.ne.s32.totalorder %s320, %s321
      %p332 = scmp.eq.s32.totalorder %s36, 0
      %p333 = por %p331, %p332
      %p334 = scmp.ne.s32.totalorder %s320, %s321
      %p335 = scmp.eq.s32.totalorder %s37, 3
      %p336 = por %p334, %p335
      %p338 = scmp.ne.s32.totalorder %s321, %s337
      %p339 = scmp.eq.s32.totalorder %s37, 0
      %p340 = por %p338, %p339
      %s341 = ssub.s32 %s39, %s46
      %p342 = scmp.eq.s32.totalorder %s341, 0
      %s344 = sadd.s32 %s343, 1
      %s345 = scalar_select %p342, %s343, %s344
      %p348 = pneg %p342
      %p349 = scmp.eq.s32.totalorder %s31, 3
      %p350 = por %p348, %p349
      %p351 = scmp.ne.s32.totalorder %s343, %s346
      %p352 = scmp.eq.s32.totalorder %s31, 0
      %p353 = por %p351, %p352
      %p354 = scmp.ne.s32.totalorder %s343, %s346
      %p355 = scmp.eq.s32.totalorder %s36, 3
      %p356 = por %p354, %p355
      %p357 = scmp.ne.s32.totalorder %s346, %s347
      %p358 = scmp.eq.s32.totalorder %s36, 0
      %p359 = por %p357, %p358
      %p360 = scmp.ne.s32.totalorder %s346, %s347
      %p361 = scmp.eq.s32.totalorder %s37, 3
      %p362 = por %p360, %p361
      %p364 = scmp.ne.s32.totalorder %s347, %s363
      %p365 = scmp.eq.s32.totalorder %s37, 0
      %p366 = por %p364, %p365
      %s367 = ssub.s32 %s39, %s46
      %p368 = scmp.eq.s32.totalorder %s367, 0
      %s370 = sadd.s32 %s369, 1
      %s371 = scalar_select %p368, %s369, %s370
      %p374 = pneg %p368
      %p375 = scmp.eq.s32.totalorder %s31, 3
      %p376 = por %p374, %p375
      %p377 = scmp.ne.s32.totalorder %s369, %s372
      %p378 = scmp.eq.s32.totalorder %s31, 0
      %p379 = por %p377, %p378
      %p380 = scmp.ne.s32.totalorder %s369, %s372
      %p381 = scmp.eq.s32.totalorder %s36, 3
      %p382 = por %p380, %p381
      %p383 = scmp.ne.s32.totalorder %s372, %s373
      %p384 = scmp.eq.s32.totalorder %s36, 0
      %p385 = por %p383, %p384
      %p386 = scmp.ne.s32.totalorder %s372, %s373
      %p387 = scmp.eq.s32.totalorder %s37, 3
      %p388 = por %p386, %p387
      %p390 = scmp.ne.s32.totalorder %s373, %s389
      %p391 = scmp.eq.s32.totalorder %s37, 0
      %p392 = por %p390, %p391
      %s393 = ssub.s32 %s39, %s46
      %p394 = scmp.eq.s32.totalorder %s393, 0
      %s396 = sadd.s32 %s395, 1
      %s397 = scalar_select %p394, %s395, %s396
      %p400 = pneg %p394
      %p401 = scmp.eq.s32.totalorder %s31, 3
      %p402 = por %p400, %p401
      %p403 = scmp.ne.s32.totalorder %s395, %s398
      %p404 = scmp.eq.s32.totalorder %s31, 0
      %p405 = por %p403, %p404
      %p406 = scmp.ne.s32.totalorder %s395, %s398
      %p407 = scmp.eq.s32.totalorder %s36, 3
      %p408 = por %p406, %p407
      %p409 = scmp.ne.s32.totalorder %s398, %s399
      %p410 = scmp.eq.s32.totalorder %s36, 0
      %p411 = por %p409, %p410
      %p412 = scmp.ne.s32.totalorder %s398, %s399
      %p413 = scmp.eq.s32.totalorder %s37, 3
      %p414 = por %p412, %p413
      %p416 = scmp.ne.s32.totalorder %s399, %s415
      %p417 = scmp.eq.s32.totalorder %s37, 0
      %p418 = por %p416, %p417
      %s419 = ssub.s32 %s39, %s46
      %p420 = scmp.eq.s32.totalorder %s419, 0
      %s422 = sadd.s32 %s421, 1
      %s423 = scalar_select %p420, %s421, %s422
      %p426 = pneg %p420
      %p427 = scmp.eq.s32.totalorder %s31, 3
      %p428 = por %p426, %p427
      %p429 = scmp.ne.s32.totalorder %s421, %s424
      %p430 = scmp.eq.s32.totalorder %s31, 0
      %p431 = por %p429, %p430
      %p432 = scmp.ne.s32.totalorder %s421, %s424
      %p433 = scmp.eq.s32.totalorder %s36, 3
      %p434 = por %p432, %p433
      %p435 = scmp.ne.s32.totalorder %s424, %s425
      %p436 = scmp.eq.s32.totalorder %s36, 0
      %p437 = por %p435, %p436
      %p438 = scmp.ne.s32.totalorder %s424, %s425
      %p439 = scmp.eq.s32.totalorder %s37, 3
      %p440 = por %p438, %p439
      %p442 = scmp.ne.s32.totalorder %s425, %s441
      %p443 = scmp.eq.s32.totalorder %s37, 0
      %p444 = por %p442, %p443
      %s445 = ssub.s32 %s39, %s46
      %p446 = scmp.eq.s32.totalorder %s445, 0
      %s448 = sadd.s32 %s447, 1
      %s449 = scalar_select %p446, %s447, %s448
      %p452 = pneg %p446
      %p453 = scmp.eq.s32.totalorder %s31, 3
      %p454 = por %p452, %p453
      %p455 = scmp.ne.s32.totalorder %s447, %s450
      %p456 = scmp.eq.s32.totalorder %s31, 0
      %p457 = por %p455, %p456
      %p458 = scmp.ne.s32.totalorder %s447, %s450
      %p459 = scmp.eq.s32.totalorder %s36, 3
      %p460 = por %p458, %p459
      %p461 = scmp.ne.s32.totalorder %s450, %s451
      %p462 = scmp.eq.s32.totalorder %s36, 0
      %p463 = por %p461, %p462
      %p464 = scmp.ne.s32.totalorder %s450, %s451
      %p465 = scmp.eq.s32.totalorder %s37, 3
      %p466 = por %p464, %p465
      %p468 = scmp.ne.s32.totalorder %s451, %s467
      %p469 = scmp.eq.s32.totalorder %s37, 0
      %p470 = por %p468, %p469
      %s471 = ssub.s32 %s39, %s46
      %p472 = scmp.eq.s32.totalorder %s471, 0
      %s474 = sadd.s32 %s473, 1
      %s475 = scalar_select %p472, %s473, %s474
      %p478 = pneg %p472
      %p479 = scmp.eq.s32.totalorder %s31, 3
      %p480 = por %p478, %p479
      %p481 = scmp.ne.s32.totalorder %s473, %s476
      %p482 = scmp.eq.s32.totalorder %s31, 0
      %p483 = por %p481, %p482
      %p484 = scmp.ne.s32.totalorder %s473, %s476
      %p485 = scmp.eq.s32.totalorder %s36, 3
      %p486 = por %p484, %p485
      %p487 = scmp.ne.s32.totalorder %s476, %s477
      %p488 = scmp.eq.s32.totalorder %s36, 0
      %p489 = por %p487, %p488
      %p490 = scmp.ne.s32.totalorder %s476, %s477
      %p491 = scmp.eq.s32.totalorder %s37, 3
      %p492 = por %p490, %p491
      %p494 = scmp.ne.s32.totalorder %s477, %s493
      %p495 = scmp.eq.s32.totalorder %s37, 0
      %p496 = por %p494, %p495
      %s497 = ssub.s32 %s38, %s50
      %p498 = scmp.eq.s32.totalorder %s497, 0
      %s500 = sadd.s32 %s499, 1
      %s501 = scalar_select %p498, %s499, %s500
      %p504 = pneg %p498
      %p505 = scmp.eq.s32.totalorder %s31, 3
      %p506 = por %p504, %p505
      %p507 = scmp.ne.s32.totalorder %s499, %s502
      %p508 = scmp.eq.s32.totalorder %s31, 0
      %p509 = por %p507, %p508
      %p510 = scmp.ne.s32.totalorder %s499, %s502
      %p511 = scmp.eq.s32.totalorder %s36, 3
      %p512 = por %p510, %p511
      %p513 = scmp.ne.s32.totalorder %s502, %s503
      %p514 = scmp.eq.s32.totalorder %s36, 0
      %p515 = por %p513, %p514
      %p516 = scmp.ne.s32.totalorder %s502, %s503
      %p517 = scmp.eq.s32.totalorder %s37, 3
      %p518 = por %p516, %p517
      %p520 = scmp.ne.s32.totalorder %s503, %s519
      %p521 = scmp.eq.s32.totalorder %s37, 0
      %p522 = por %p520, %p521
      %s523 = ssub.s32 %s38, %s50
      %p524 = scmp.eq.s32.totalorder %s523, 0
      %s526 = sadd.s32 %s525, 1
      %s527 = scalar_select %p524, %s525, %s526
      %p530 = pneg %p524
      %p531 = scmp.eq.s32.totalorder %s31, 3
      %p532 = por %p530, %p531
      %p533 = scmp.ne.s32.totalorder %s525, %s528
      %p534 = scmp.eq.s32.totalorder %s31, 0
      %p535 = por %p533, %p534
      %p536 = scmp.ne.s32.totalorder %s525, %s528
      %p537 = scmp.eq.s32.totalorder %s36, 3
      %p538 = por %p536, %p537
      %p539 = scmp.ne.s32.totalorder %s528, %s529
      %p540 = scmp.eq.s32.totalorder %s36, 0
      %p541 = por %p539, %p540
      %p542 = scmp.ne.s32.totalorder %s528, %s529
      %p543 = scmp.eq.s32.totalorder %s37, 3
      %p544 = por %p542, %p543
      %p546 = scmp.ne.s32.totalorder %s529, %s545
      %p547 = scmp.eq.s32.totalorder %s37, 0
      %p548 = por %p546, %p547
      %p549 = scmp.le.s32.totalorder 1, %s31
      %p550 = scmp.lt.s32.totalorder %s31, 5
      %p551 = pnand %p549, %p550
      %p552 = pneg %p551
      // Predicated region
      $region9: #{pixelcnn_layer_down.1} parent=5 // pred_check
        _
      $region10: #{pixelcnn_layer_down.1} parent=5 // pred_check_branch
        %554 = sbr.rel (%p551) target = $region12
      $region11: #{pixelcnn_layer_down.1} parent=5 // pred_region
        %s555 = ssub.s32 %s31, 1
      $region12: #{pixelcnn_layer_down.1} parent=5 // pred_fallthru
        _
      %p556 = scmp.lt.s32.totalorder %s31, 4
      // Predicated region
      $region13: #{pixelcnn_layer_down.1} parent=5 // pred_check
        %p557 = pneg %p556
      $region14: #{pixelcnn_layer_down.1} parent=5 // pred_check_branch
        %559 = sbr.rel (%p557) target = $region16
      $region15: #{pixelcnn_layer_down.1} parent=5 // pred_region
        // Predicated region
        $region17: #{pixelcnn_layer_down.1} parent=15 // pred_check
          %p560 = pneg %p63
        $region18: #{pixelcnn_layer_down.1} parent=15 // pred_check_branch
          %562 = sbr.rel (%p560) target = $region20
        $region19: #{pixelcnn_layer_down.1} parent=15 // pred_region
          %p563 = scmp.lt.s32.totalorder %s38, 1
          %s564 = scalar_select %p563, %s38, 1
          %s565 = smul.addr %s564, 8
          %s566 = smul.addr %s565, 8
          %s567 = scalar_lea.vmem %s0, %s566
        $region20: #{pixelcnn_layer_down.1} parent=15 // pred_fallthru
          _
        // Predicated region
        $region21: #{pixelcnn_layer_down.1} parent=15 // pred_check
          %p568 = pneg %p89
        $region22: #{pixelcnn_layer_down.1} parent=15 // pred_check_branch
          %570 = sbr.rel (%p568) target = $region24
        $region23: #{pixelcnn_layer_down.1} parent=15 // pred_region
          %p571 = scmp.lt.s32.totalorder %s38, 1
          %s572 = scalar_select %p571, %s38, 1
          %s573 = smul.addr %s572, 8
          %s574 = smul.addr %s573, 8
          %s575 = scalar_lea.vmem %s1, %s574
        $region24: #{pixelcnn_layer_down.1} parent=15 // pred_fallthru
          _
        // Predicated region
        $region25: #{pixelcnn_layer_down.1} parent=15 // pred_check
          %p576 = pneg %p117
        $region26: #{pixelcnn_layer_down.1} parent=15 // pred_check_branch
          %578 = sbr.rel (%p576) target = $region28
        $region27: #{pixelcnn_layer_down.1} parent=15 // pred_region
          %p579 = scmp.lt.s32.totalorder %s39, 1
          %s580 = scalar_select %p579, %s39, 1
          %p581 = scmp.lt.s32.totalorder %s38, 1
          %s582 = scalar_select %p581, %s38, 1
          %s583 = smul.addr %s582, 8
          %s584 = smul.addr %s580, 16
          %s585 = sadd.s32 %s583, %s584
          %s586 = smul.addr %s585, 4
          %s587 = scalar_lea.vmem %s2, %s586
        $region28: #{pixelcnn_layer_down.1} parent=15 // pred_fallthru
          _
        // Predicated region
        $region29: #{pixelcnn_layer_down.1} parent=15 // pred_check
          %p588 = pneg %p145
        $region30: #{pixelcnn_layer_down.1} parent=15 // pred_check_branch
          %590 = sbr.rel (%p588) target = $region32
        $region31: #{pixelcnn_layer_down.1} parent=15 // pred_region
          %p591 = scmp.lt.s32.totalorder %s39, 1
          %s592 = scalar_select %p591, %s39, 1
          %p593 = scmp.lt.s32.totalorder %s38, 1
          %s594 = scalar_select %p593, %s38, 1
          %s595 = smul.addr %s594, 8
          %s596 = smul.addr %s592, 16
          %s597 = sadd.s32 %s595, %s596
          %s598 = smul.addr %s597, 4
          %s599 = scalar_lea.vmem %s3, %s598
        $region32: #{pixelcnn_layer_down.1} parent=15 // pred_fallthru
          _
        // Predicated region
        $region33: #{pixelcnn_layer_down.1} parent=15 // pred_check
          %p600 = pneg %p171
        $region34: #{pixelcnn_layer_down.1} parent=15 // pred_check_branch
          %602 = sbr.rel (%p600) target = $region36
        $region35: #{pixelcnn_layer_down.1} parent=15 // pred_region
          %p603 = scmp.lt.s32.totalorder %s39, 1
          %s604 = scalar_select %p603, %s39, 1
          %s605 = smul.addr %s604, 24
          %s606 = smul.addr %s605, 4
          %s607 = scalar_lea.vmem %s4, %s606
        $region36: #{pixelcnn_layer_down.1} parent=15 // pred_fallthru
          _
        // Predicated region
        $region37: #{pixelcnn_layer_down.1} parent=15 // pred_check
          %p608 = pneg %p197
        $region38: #{pixelcnn_layer_down.1} parent=15 // pred_check_branch
          %610 = sbr.rel (%p608) target = $region40
        $region39: #{pixelcnn_layer_down.1} parent=15 // pred_region
          %p611 = scmp.lt.s32.totalorder %s39, 1
          %s612 = scalar_select %p611, %s39, 1
          %s613 = smul.addr %s612, 24
          %s614 = smul.addr %s613, 4
          %s615 = scalar_lea.vmem %s5, %s614
        $region40: #{pixelcnn_layer_down.1} parent=15 // pred_fallthru
          _
        // Predicated region
        $region41: #{pixelcnn_layer_down.1} parent=15 // pred_check
          %p616 = pneg %p223
        $region42: #{pixelcnn_layer_down.1} parent=15 // pred_check_branch
          %618 = sbr.rel (%p616) target = $region44
        $region43: #{pixelcnn_layer_down.1} parent=15 // pred_region
          %p619 = scmp.lt.s32.totalorder %s39, 1
          %s620 = scalar_select %p619, %s39, 1
          %s621 = smul.addr %s620, 8
          %s622 = smul.addr %s621, 4
          %s623 = scalar_lea.vmem %s6, %s622
        $region44: #{pixelcnn_layer_down.1} parent=15 // pred_fallthru
          _
        // Predicated region
        $region45: #{pixelcnn_layer_down.1} parent=15 // pred_check
          %p624 = pneg %p249
        $region46: #{pixelcnn_layer_down.1} parent=15 // pred_check_branch
          %626 = sbr.rel (%p624) target = $region48
        $region47: #{pixelcnn_layer_down.1} parent=15 // pred_region
          %p627 = scmp.lt.s32.totalorder %s39, 1
          %s628 = scalar_select %p627, %s39, 1
          %s629 = scalar_lea.vmem %s7, %s628
        $region48: #{pixelcnn_layer_down.1} parent=15 // pred_fallthru
          _
        // Predicated region
        $region49: #{pixelcnn_layer_down.1} parent=15 // pred_check
          %p630 = pneg %p275
        $region50: #{pixelcnn_layer_down.1} parent=15 // pred_check_branch
          %632 = sbr.rel (%p630) target = $region52
        $region51: #{pixelcnn_layer_down.1} parent=15 // pred_region
          %p633 = scmp.lt.s32.totalorder %s39, 1
          %s634 = scalar_select %p633, %s39, 1
          %s635 = smul.addr %s634, 96
          %s636 = smul.addr %s635, 4
          %s637 = scalar_lea.vmem %s8, %s636
        $region52: #{pixelcnn_layer_down.1} parent=15 // pred_fallthru
          _
        // Predicated region
        $region53: #{pixelcnn_layer_down.1} parent=15 // pred_check
          %p638 = pneg %p301
        $region54: #{pixelcnn_layer_down.1} parent=15 // pred_check_branch
          %640 = sbr.rel (%p638) target = $region56
        $region55: #{pixelcnn_layer_down.1} parent=15 // pred_region
          %p641 = scmp.lt.s32.totalorder %s39, 1
          %s642 = scalar_select %p641, %s39, 1
          %s643 = smul.addr %s642, 2
          %s644 = scalar_lea.vmem %s9, %s643
        $region56: #{pixelcnn_layer_down.1} parent=15 // pred_fallthru
          _
        // Predicated region
        $region57: #{pixelcnn_layer_down.1} parent=15 // pred_check
          %p645 = pneg %p327
        $region58: #{pixelcnn_layer_down.1} parent=15 // pred_check_branch
          %647 = sbr.rel (%p645) target = $region60
        $region59: #{pixelcnn_layer_down.1} parent=15 // pred_region
          %p648 = scmp.lt.s32.totalorder %s39, 1
          %s649 = scalar_select %p648, %s39, 1
          %s650 = smul.addr %s649, 16
          %s651 = smul.addr %s650, 4
          %s652 = scalar_lea.vmem %s10, %s651
        $region60: #{pixelcnn_layer_down.1} parent=15 // pred_fallthru
          _
        // Predicated region
        $region61: #{pixelcnn_layer_down.1} parent=15 // pred_check
          %p653 = pneg %p353
        $region62: #{pixelcnn_layer_down.1} parent=15 // pred_check_branch
          %655 = sbr.rel (%p653) target = $region64
        $region63: #{pixelcnn_layer_down.1} parent=15 // pred_region
          %p656 = scmp.lt.s32.totalorder %s39, 1
          %s657 = scalar_select %p656, %s39, 1
          %s658 = smul.addr %s657, 16
          %s659 = smul.addr %s658, 4
          %s660 = scalar_lea.vmem %s11, %s659
        $region64: #{pixelcnn_layer_down.1} parent=15 // pred_fallthru
          _
        // Predicated region
        $region65: #{pixelcnn_layer_down.1} parent=15 // pred_check
          %p661 = pneg %p379
        $region66: #{pixelcnn_layer_down.1} parent=15 // pred_check_branch
          %663 = sbr.rel (%p661) target = $region68
        $region67: #{pixelcnn_layer_down.1} parent=15 // pred_region
          %p664 = scmp.lt.s32.totalorder %s39, 1
          %s665 = scalar_select %p664, %s39, 1
          %s666 = smul.addr %s665, 8
          %s667 = smul.addr %s666, 4
          %s668 = scalar_lea.vmem %s12, %s667
        $region68: #{pixelcnn_layer_down.1} parent=15 // pred_fallthru
          _
        // Predicated region
        $region69: #{pixelcnn_layer_down.1} parent=15 // pred_check
          %p669 = pneg %p405
        $region70: #{pixelcnn_layer_down.1} parent=15 // pred_check_branch
          %671 = sbr.rel (%p669) target = $region72
        $region71: #{pixelcnn_layer_down.1} parent=15 // pred_region
          %p672 = scmp.lt.s32.totalorder %s39, 1
          %s673 = scalar_select %p672, %s39, 1
          %s674 = smul.addr %s673, 8
          %s675 = smul.addr %s674, 4
          %s676 = scalar_lea.vmem %s13, %s675
        $region72: #{pixelcnn_layer_down.1} parent=15 // pred_fallthru
          _
        // Predicated region
        $region73: #{pixelcnn_layer_down.1} parent=15 // pred_check
          %p677 = pneg %p431
        $region74: #{pixelcnn_layer_down.1} parent=15 // pred_check_branch
          %679 = sbr.rel (%p677) target = $region76
        $region75: #{pixelcnn_layer_down.1} parent=15 // pred_region
          %p680 = scmp.lt.s32.totalorder %s39, 1
          %s681 = scalar_select %p680, %s39, 1
          %s682 = scalar_lea.vmem %s14, %s681
        $region76: #{pixelcnn_layer_down.1} parent=15 // pred_fallthru
          _
        // Predicated region
        $region77: #{pixelcnn_layer_down.1} parent=15 // pred_check
          %p683 = pneg %p457
        $region78: #{pixelcnn_layer_down.1} parent=15 // pred_check_branch
          %685 = sbr.rel (%p683) target = $region80
        $region79: #{pixelcnn_layer_down.1} parent=15 // pred_region
          %p686 = scmp.lt.s32.totalorder %s39, 1
          %s687 = scalar_select %p686, %s39, 1
          %s688 = smul.addr %s687, 64
          %s689 = smul.addr %s688, 4
          %s690 = scalar_lea.vmem %s15, %s689
        $region80: #{pixelcnn_layer_down.1} parent=15 // pred_fallthru
          _
        // Predicated region
        $region81: #{pixelcnn_layer_down.1} parent=15 // pred_check
          %p691 = pneg %p483
        $region82: #{pixelcnn_layer_down.1} parent=15 // pred_check_branch
          %693 = sbr.rel (%p691) target = $region84
        $region83: #{pixelcnn_layer_down.1} parent=15 // pred_region
          %p694 = scmp.lt.s32.totalorder %s39, 1
          %s695 = scalar_select %p694, %s39, 1
          %s696 = smul.addr %s695, 2
          %s697 = scalar_lea.vmem %s16, %s696
        $region84: #{pixelcnn_layer_down.1} parent=15 // pred_fallthru
          _
      $region16: #{pixelcnn_layer_down.1} parent=5 // pred_fallthru
        _
      %p698 = scmp.le.s32.totalorder 1, %s31
      %p699 = scmp.lt.s32.totalorder %s31, 5
      %p700 = pnand %p698, %p699
      %p701 = pneg %p700
      // Predicated region
      $region85: #{pixelcnn_layer_down.1} parent=5 // pred_check
        _
      $region86: #{pixelcnn_layer_down.1} parent=5 // pred_check_branch
        %703 = sbr.rel (%p700) target = $region88
      $region87: #{pixelcnn_layer_down.1} parent=5 // pred_region
        %s704 = ssub.s32 %s31, 1
        %p705 = scmp.lt.s32.totalorder %s40, 1
        %s706 = scalar_select %p705, %s40, 1
        %s707 = smul.addr %s706, 8
        %s708 = smul.addr %s707, 8
        %s709 = scalar_lea.vmem %s0, %s708
        %p710 = pneg %p69
        %p711 = pneg %p66
        %p712 = scmp.lt.s32.totalorder %s40, 1
        %s713 = scalar_select %p712, %s40, 1
        %s714 = smul.addr %s713, 8
        %s715 = smul.addr %s714, 8
        %s716 = scalar_lea.vmem %s1, %s715
        %p717 = pneg %p95
        %p718 = pneg %p92
        %p719 = scmp.lt.s32.totalorder %s41, 1
        %s720 = scalar_select %p719, %s41, 1
        %p721 = scmp.lt.s32.totalorder %s40, 1
        %s722 = scalar_select %p721, %s40, 1
        %s723 = smul.addr %s722, 8
        %s724 = smul.addr %s720, 16
        %s725 = sadd.s32 %s723, %s724
        %s726 = smul.addr %s725, 4
        %s727 = scalar_lea.vmem %s2, %s726
        %p728 = pneg %p123
        %p729 = pneg %p120
        %p730 = scmp.lt.s32.totalorder %s41, 1
        %s731 = scalar_select %p730, %s41, 1
        %p732 = scmp.lt.s32.totalorder %s40, 1
        %s733 = scalar_select %p732, %s40, 1
        %s734 = smul.addr %s733, 8
        %s735 = smul.addr %s731, 16
        %s736 = sadd.s32 %s734, %s735
        %s737 = smul.addr %s736, 4
        %s738 = scalar_lea.vmem %s3, %s737
        %p739 = pneg %p151
        %p740 = pneg %p148
        %p741 = scmp.lt.s32.totalorder %s41, 1
        %s742 = scalar_select %p741, %s41, 1
        %s743 = smul.addr %s742, 24
        %s744 = smul.addr %s743, 4
        %s745 = scalar_lea.vmem %s4, %s744
        %p746 = pneg %p177
        %p747 = pneg %p174
        %p748 = scmp.lt.s32.totalorder %s41, 1
        %s749 = scalar_select %p748, %s41, 1
        %s750 = smul.addr %s749, 24
        %s751 = smul.addr %s750, 4
        %s752 = scalar_lea.vmem %s5, %s751
        %p753 = pneg %p203
        %p754 = pneg %p200
        %p755 = scmp.lt.s32.totalorder %s41, 1
        %s756 = scalar_select %p755, %s41, 1
        %s757 = smul.addr %s756, 8
        %s758 = smul.addr %s757, 4
        %s759 = scalar_lea.vmem %s6, %s758
        %p760 = pneg %p229
        %p761 = pneg %p226
        %p762 = scmp.lt.s32.totalorder %s41, 1
        %s763 = scalar_select %p762, %s41, 1
        %s764 = scalar_lea.vmem %s7, %s763
        %p765 = pneg %p255
        %p766 = pneg %p252
        %p767 = scmp.lt.s32.totalorder %s41, 1
        %s768 = scalar_select %p767, %s41, 1
        %s769 = smul.addr %s768, 96
        %s770 = smul.addr %s769, 4
        %s771 = scalar_lea.vmem %s8, %s770
        %p772 = pneg %p281
        %p773 = pneg %p278
        %p774 = scmp.lt.s32.totalorder %s41, 1
        %s775 = scalar_select %p774, %s41, 1
        %s776 = smul.addr %s775, 2
        %s777 = scalar_lea.vmem %s9, %s776
        %p778 = pneg %p307
        %p779 = pneg %p304
        %p780 = scmp.lt.s32.totalorder %s41, 1
        %s781 = scalar_select %p780, %s41, 1
        %s782 = smul.addr %s781, 16
        %s783 = smul.addr %s782, 4
        %s784 = scalar_lea.vmem %s10, %s783
        %p785 = pneg %p333
        %p786 = pneg %p330
        %p787 = scmp.lt.s32.totalorder %s41, 1
        %s788 = scalar_select %p787, %s41, 1
        %s789 = smul.addr %s788, 16
        %s790 = smul.addr %s789, 4
        %s791 = scalar_lea.vmem %s11, %s790
        %p792 = pneg %p359
        %p793 = pneg %p356
        %p794 = scmp.lt.s32.totalorder %s41, 1
        %s795 = scalar_select %p794, %s41, 1
        %s796 = smul.addr %s795, 8
        %s797 = smul.addr %s796, 4
        %s798 = scalar_lea.vmem %s12, %s797
        %p799 = pneg %p385
        %p800 = pneg %p382
        %p801 = scmp.lt.s32.totalorder %s41, 1
        %s802 = scalar_select %p801, %s41, 1
        %s803 = smul.addr %s802, 8
        %s804 = smul.addr %s803, 4
        %s805 = scalar_lea.vmem %s13, %s804
        %p806 = pneg %p411
        %p807 = pneg %p408
        %p808 = scmp.lt.s32.totalorder %s41, 1
        %s809 = scalar_select %p808, %s41, 1
        %s810 = scalar_lea.vmem %s14, %s809
        %p811 = pneg %p437
        %p812 = pneg %p434
        %p813 = scmp.lt.s32.totalorder %s41, 1
        %s814 = scalar_select %p813, %s41, 1
        %s815 = smul.addr %s814, 64
        %s816 = smul.addr %s815, 4
        %s817 = scalar_lea.vmem %s15, %s816
        %p818 = pneg %p463
        %p819 = pneg %p460
        %p820 = scmp.lt.s32.totalorder %s41, 1
        %s821 = scalar_select %p820, %s41, 1
        %s822 = smul.addr %s821, 2
        %s823 = scalar_lea.vmem %s16, %s822
        %p824 = pneg %p489
        %p825 = pneg %p486
        %p826 = pneg %p515
        %p827 = pneg %p512
        %s828 = sand.u32 %s502, 1
        %s829 = scalar_lea.sflag [#allocation4], %s828
        %s830 = sand.u32 %s502, 1
        %s831 = smul.addr %s830, 64
        %s832 = scalar_lea.vmem [#allocation3], %s831
        %p833 = pneg %p541
        %p834 = pneg %p538
        %s835 = sand.u32 %s528, 1
        %s836 = scalar_lea.sflag [#allocation6], %s835
        %s837 = sand.u32 %s528, 1
        %s838 = smul.addr %s837, 64
        %s839 = scalar_lea.vmem [#allocation5], %s838
        %p840 = scmp.lt.s32.totalorder %s40, 1
        %s841 = scalar_select %p840, %s40, 1
        %s842 = smul.addr %s841, 8
        %s843 = smul.addr %s842, 8
        %s844 = scalar_lea.vmem %s0, %s843
        %p845 = scmp.lt.s32.totalorder %s40, 1
        %s846 = scalar_select %p845, %s40, 1
        %s847 = smul.addr %s846, 8
        %s848 = smul.addr %s847, 8
        %s849 = scalar_lea.vmem %s1, %s848
        %p850 = scmp.lt.s32.totalorder %s41, 1
        %s851 = scalar_select %p850, %s41, 1
        %p852 = scmp.lt.s32.totalorder %s40, 1
        %s853 = scalar_select %p852, %s40, 1
        %s854 = smul.addr %s853, 8
        %s855 = smul.addr %s851, 16
        %s856 = sadd.s32 %s854, %s855
        %s857 = smul.addr %s856, 4
        %s858 = scalar_lea.vmem %s2, %s857
        %p859 = scmp.lt.s32.totalorder %s41, 1
        %s860 = scalar_select %p859, %s41, 1
        %p861 = scmp.lt.s32.totalorder %s40, 1
        %s862 = scalar_select %p861, %s40, 1
        %s863 = smul.addr %s862, 8
        %s864 = smul.addr %s860, 16
        %s865 = sadd.s32 %s863, %s864
        %s866 = smul.addr %s865, 4
        %s867 = scalar_lea.vmem %s3, %s866
        %p868 = scmp.lt.s32.totalorder %s41, 1
        %s869 = scalar_select %p868, %s41, 1
        %s870 = smul.addr %s869, 24
        %s871 = smul.addr %s870, 4
        %s872 = scalar_lea.vmem %s4, %s871
        %p873 = scmp.lt.s32.totalorder %s41, 1
        %s874 = scalar_select %p873, %s41, 1
        %s875 = smul.addr %s874, 24
        %s876 = smul.addr %s875, 4
        %s877 = scalar_lea.vmem %s5, %s876
        %p878 = scmp.lt.s32.totalorder %s41, 1
        %s879 = scalar_select %p878, %s41, 1
        %s880 = smul.addr %s879, 8
        %s881 = smul.addr %s880, 4
        %s882 = scalar_lea.vmem %s6, %s881
        %p883 = scmp.lt.s32.totalorder %s41, 1
        %s884 = scalar_select %p883, %s41, 1
        %s885 = scalar_lea.vmem %s7, %s884
        %p886 = scmp.lt.s32.totalorder %s41, 1
        %s887 = scalar_select %p886, %s41, 1
        %s888 = smul.addr %s887, 96
        %s889 = smul.addr %s888, 4
        %s890 = scalar_lea.vmem %s8, %s889
        %p891 = scmp.lt.s32.totalorder %s41, 1
        %s892 = scalar_select %p891, %s41, 1
        %s893 = smul.addr %s892, 2
        %s894 = scalar_lea.vmem %s9, %s893
        %p895 = scmp.lt.s32.totalorder %s41, 1
        %s896 = scalar_select %p895, %s41, 1
        %s897 = smul.addr %s896, 16
        %s898 = smul.addr %s897, 4
        %s899 = scalar_lea.vmem %s10, %s898
        %p900 = scmp.lt.s32.totalorder %s41, 1
        %s901 = scalar_select %p900, %s41, 1
        %s902 = smul.addr %s901, 16
        %s903 = smul.addr %s902, 4
        %s904 = scalar_lea.vmem %s11, %s903
        %p905 = scmp.lt.s32.totalorder %s41, 1
        %s906 = scalar_select %p905, %s41, 1
        %s907 = smul.addr %s906, 8
        %s908 = smul.addr %s907, 4
        %s909 = scalar_lea.vmem %s12, %s908
        %p910 = scmp.lt.s32.totalorder %s41, 1
        %s911 = scalar_select %p910, %s41, 1
        %s912 = smul.addr %s911, 8
        %s913 = smul.addr %s912, 4
        %s914 = scalar_lea.vmem %s13, %s913
        %p915 = scmp.lt.s32.totalorder %s41, 1
        %s916 = scalar_select %p915, %s41, 1
        %s917 = scalar_lea.vmem %s14, %s916
        %p918 = scmp.lt.s32.totalorder %s41, 1
        %s919 = scalar_select %p918, %s41, 1
        %s920 = smul.addr %s919, 64
        %s921 = smul.addr %s920, 4
        %s922 = scalar_lea.vmem %s15, %s921
        %p923 = scmp.lt.s32.totalorder %s41, 1
        %s924 = scalar_select %p923, %s41, 1
        %s925 = smul.addr %s924, 2
        %s926 = scalar_lea.vmem %s16, %s925
        %p928 = scmp.eq.s32.totalorder %s41, 0
        // Predicated region
        $region89: #{pixelcnn_layer_down.1} parent=87 // pred_check
          %p929 = pneg %p928
        $region90: #{pixelcnn_layer_down.1} parent=87 // pred_check_branch
          %931 = sbr.rel (%p929) target = $region92
        $region91: #{pixelcnn_layer_down.1} parent=87 // pred_region
          %vm932 = vcmask 519168
          %933 = vst.msk [vmem:[#allocation2] sm:$0xf] %vm932, 0
          %934 = vst.msk [vmem:[#allocation2 + $0x4] sm:$0xf] %vm932, 0
          %935 = vst.msk [vmem:[#allocation2 + $0x8] sm:$0xf] %vm932, 0
          %936 = vst.msk [vmem:[#allocation2] sm:$0xf] %vm932, 0
          %937 = vst.msk [vmem:[#allocation2 + $0xc] sm:$0xf] %vm932, 0
          %938 = vst.msk [vmem:[#allocation2 + $0x18] sm:$0xf] %vm932, 0
          %939 = vst.msk [vmem:[#allocation2 + $0x24] sm:$0xf] %vm932, 0
          %940 = vst.msk [vmem:[#allocation2 + $0x30] sm:$0xf] %vm932, 0
          %941 = vst.msk [vmem:[#allocation2 + $0x3c] sm:$0xf] %vm932, 0
          %942 = vst.msk [vmem:[#allocation2 + $0x48] sm:$0xf] %vm932, 0
          %943 = vst.msk [vmem:[#allocation2 + $0x54] sm:$0xf] %vm932, 0
          %944 = vst.msk [vmem:[#allocation2 + $0x60] sm:$0xf] %vm932, 0
          %945 = vst.msk [vmem:[#allocation2 + $0x8] sm:$0xf] %vm932, 0
          %946 = vst.msk [vmem:[#allocation2 + $0x14] sm:$0xf] %vm932, 0
          %947 = vst.msk [vmem:[#allocation2 + $0x20] sm:$0xf] %vm932, 0
          %948 = vst.msk [vmem:[#allocation2 + $0x2c] sm:$0xf] %vm932, 0
          %949 = vst.msk [vmem:[#allocation2 + $0x38] sm:$0xf] %vm932, 0
          %950 = vst.msk [vmem:[#allocation2 + $0x44] sm:$0xf] %vm932, 0
          %951 = vst.msk [vmem:[#allocation2 + $0x50] sm:$0xf] %vm932, 0
          %952 = vst.msk [vmem:[#allocation2 + $0x5c] sm:$0xf] %vm932, 0
          %953 = vst.msk [vmem:[#allocation2 + $0x68] sm:$0xf] %vm932, 0
          %v954 = vld [vmem:[%s844] sm:$0xff]
          %v955 = vld [vmem:[%s844 + $0x8] sm:$0xff]
          %v956 = vld [vmem:[%s844 + $0x10] sm:$0xff]
          %v957 = vld [vmem:[%s844 + $0x18] sm:$0xff]
          %v958 = vld [vmem:[%s844 + $0x20] sm:$0xff]
          %v959 = vld [vmem:[%s844 + $0x28] sm:$0xff]
          %v960 = vld [vmem:[%s844 + $0x30] sm:$0xff]
          %v961 = vld [vmem:[%s844 + $0x38] sm:$0xff]
          %vm962 = vcmask 261120
          %963 = vst.msk [vmem:[%s832] sm:$0xff] %vm962, %v954
          %964 = vst.msk [vmem:[%s832 + $0x8] sm:$0xff] %vm962, %v955
          %965 = vst.msk [vmem:[%s832 + $0x10] sm:$0xff] %vm962, %v956
          %966 = vst.msk [vmem:[%s832 + $0x18] sm:$0xff] %vm962, %v957
          %967 = vst.msk [vmem:[%s832 + $0x20] sm:$0xff] %vm962, %v958
          %968 = vst.msk [vmem:[%s832 + $0x28] sm:$0xff] %vm962, %v959
          %969 = vst.msk [vmem:[%s832 + $0x30] sm:$0xff] %vm962, %v960
          %970 = vst.msk [vmem:[%s832 + $0x38] sm:$0xff] %vm962, %v961
          %v971 = vld [vmem:[%s849] sm:$0xff]
          %v972 = vld [vmem:[%s849 + $0x8] sm:$0xff]
          %v973 = vld [vmem:[%s849 + $0x10] sm:$0xff]
          %v974 = vld [vmem:[%s849 + $0x18] sm:$0xff]
          %v975 = vld [vmem:[%s849 + $0x20] sm:$0xff]
          %v976 = vld [vmem:[%s849 + $0x28] sm:$0xff]
          %v977 = vld [vmem:[%s849 + $0x30] sm:$0xff]
          %v978 = vld [vmem:[%s849 + $0x38] sm:$0xff]
          %979 = vst.msk [vmem:[%s839] sm:$0xff] %vm962, %v971
          %980 = vst.msk [vmem:[%s839 + $0x8] sm:$0xff] %vm962, %v972
          %981 = vst.msk [vmem:[%s839 + $0x10] sm:$0xff] %vm962, %v973
          %982 = vst.msk [vmem:[%s839 + $0x18] sm:$0xff] %vm962, %v974
          %983 = vst.msk [vmem:[%s839 + $0x20] sm:$0xff] %vm962, %v975
          %984 = vst.msk [vmem:[%s839 + $0x28] sm:$0xff] %vm962, %v976
          %985 = vst.msk [vmem:[%s839 + $0x30] sm:$0xff] %vm962, %v977
          %986 = vst.msk [vmem:[%s839 + $0x38] sm:$0xff] %vm962, %v978
        $region92: #{pixelcnn_layer_down.1} parent=87 // pred_fallthru
          _
        %v987 = vld [vmem:[%s858] sm:$0xf]
        %v988 = vld [vmem:[%s858 + $0x4] sm:$0xf]
        %v989 = vld [vmem:[%s858 + $0x8] sm:$0xf]
        %v990 = vld [vmem:[%s858 + $0xc] sm:$0xf]
        %v991 = vld [vmem:[%s858 + $0x10] sm:$0xf]
        %v992 = vld [vmem:[%s858 + $0x14] sm:$0xf]
        %v993 = vld [vmem:[%s858 + $0x18] sm:$0xf]
        %v994 = vld [vmem:[%s858 + $0x1c] sm:$0xf]
        %v995 = vunpack.c.l.bf16 %v987
        %v996 = vunpack.c.l.bf16 %v988
        %v997 = vunpack.c.l.bf16 %v989
        %v998 = vunpack.c.l.bf16 %v990
        %v999 = vunpack.c.l.bf16 %v991
        %v1000 = vunpack.c.l.bf16 %v992
        %v1001 = vunpack.c.l.bf16 %v993
        %v1002 = vunpack.c.l.bf16 %v994
        %v1003 = vsub.f32 0.0, %v995
        %v1004 = vsub.f32 0.0, %v996
        %v1005 = vsub.f32 0.0, %v997
        %v1006 = vsub.f32 0.0, %v998
        %v1007 = vsub.f32 0.0, %v999
        %v1008 = vsub.f32 0.0, %v1000
        %v1009 = vsub.f32 0.0, %v1001
        %v1010 = vsub.f32 0.0, %v1002
        %1019 = vrot.lane.b32.xlu0 %v1003, 32
        %v1020 = vpop.permute.xlu0 %1019
        %1021 = vrot.lane.b32.xlu0 %v1004, 32
        %v1022 = vpop.permute.xlu0 %1021
        %1023 = vrot.lane.b32.xlu0 %v1005, 32
        %v1024 = vpop.permute.xlu0 %1023
        %1025 = vrot.lane.b32.xlu0 %v1006, 32
        %v1026 = vpop.permute.xlu0 %1025
        %1027 = vrot.lane.b32.xlu0 %v1007, 32
        %v1028 = vpop.permute.xlu0 %1027
        %1029 = vrot.lane.b32.xlu0 %v1008, 32
        %v1030 = vpop.permute.xlu0 %1029
        %1031 = vrot.lane.b32.xlu0 %v1009, 32
        %v1032 = vpop.permute.xlu0 %1031
        %1033 = vrot.lane.b32.xlu0 %v1010, 32
        %v1034 = vpop.permute.xlu0 %1033
        %vm1043 = vcmask 261120
        %v1044 = vsel %vm1043, %v995, %v1020
        %v1045 = vsel %vm1043, %v996, %v1022
        %v1046 = vsel %vm1043, %v997, %v1024
        %v1047 = vsel %vm1043, %v998, %v1026
        %v1048 = vsel %vm1043, %v999, %v1028
        %v1049 = vsel %vm1043, %v1000, %v1030
        %v1050 = vsel %vm1043, %v1001, %v1032
        %v1051 = vsel %vm1043, %v1002, %v1034
        %vm1052 = vcmp.gt.f32.partialorder %v1044, 0.0
        %vm1053 = vcmp.gt.f32.partialorder %v1045, 0.0
        %vm1054 = vcmp.gt.f32.partialorder %v1046, 0.0
        %vm1055 = vcmp.gt.f32.partialorder %v1047, 0.0
        %vm1056 = vcmp.gt.f32.partialorder %v1048, 0.0
        %vm1057 = vcmp.gt.f32.partialorder %v1049, 0.0
        %vm1058 = vcmp.gt.f32.partialorder %v1050, 0.0
        %vm1059 = vcmp.gt.f32.partialorder %v1051, 0.0
        %v1060 = vmin.f32 %v1044, 0.0
        %v1061 = vmin.f32 %v1045, 0.0
        %v1062 = vmin.f32 %v1046, 0.0
        %v1063 = vmin.f32 %v1047, 0.0
        %v1064 = vmin.f32 %v1048, 0.0
        %v1065 = vmin.f32 %v1049, 0.0
        %v1066 = vmin.f32 %v1050, 0.0
        %v1067 = vmin.f32 %v1051, 0.0
        %v1068 = vmul.f32 %v1060, 1.442695
        %v1069 = vpow.pop %v1068
        %v1070 = vmul.f32 %v1061, 1.442695
        %v1071 = vpow.pop %v1070
        %v1072 = vmul.f32 %v1062, 1.442695
        %v1073 = vpow.pop %v1072
        %v1074 = vmul.f32 %v1063, 1.442695
        %v1075 = vpow.pop %v1074
        %v1076 = vmul.f32 %v1064, 1.442695
        %v1077 = vpow.pop %v1076
        %v1078 = vmul.f32 %v1065, 1.442695
        %v1079 = vpow.pop %v1078
        %v1080 = vmul.f32 %v1066, 1.442695
        %v1081 = vpow.pop %v1080
        %v1082 = vmul.f32 %v1067, 1.442695
        %v1083 = vpow.pop %v1082
        %v1084 = vsub.f32 %v1069, 1.0
        %v1085 = vsub.f32 %v1071, 1.0
        %v1086 = vsub.f32 %v1073, 1.0
        %v1087 = vsub.f32 %v1075, 1.0
        %v1088 = vsub.f32 %v1077, 1.0
        %v1089 = vsub.f32 %v1079, 1.0
        %v1090 = vsub.f32 %v1081, 1.0
        %v1091 = vsub.f32 %v1083, 1.0
        %v1092 = vsel %vm1052, %v1044, %v1084
        %v1093 = vsel %vm1053, %v1045, %v1085
        %v1094 = vsel %vm1054, %v1046, %v1086
        %v1095 = vsel %vm1055, %v1047, %v1087
        %v1096 = vsel %vm1056, %v1048, %v1088
        %v1097 = vsel %vm1057, %v1049, %v1089
        %v1098 = vsel %vm1058, %v1050, %v1090
        %v1099 = vsel %vm1059, %v1051, %v1091
        %v1100 = vpack.c.bf16 %v1093, %v1092
        %v1101 = vpack.c.bf16 %v1095, %v1094
        %v1102 = vpack.c.bf16 %v1097, %v1096
        %v1103 = vpack.c.bf16 %v1099, %v1098
        %v1104 = vld [vmem:[%s832] sm:$0xff]
        %v1105 = vld [vmem:[%s832 + $0x8] sm:$0xff]
        %v1106 = vld [vmem:[%s832 + $0x10] sm:$0xff]
        %v1107 = vld [vmem:[%s832 + $0x18] sm:$0xff]
        %v1108 = vld [vmem:[%s832 + $0x20] sm:$0xff]
        %v1109 = vld [vmem:[%s832 + $0x28] sm:$0xff]
        %v1110 = vld [vmem:[%s832 + $0x30] sm:$0xff]
        %v1111 = vld [vmem:[%s832 + $0x38] sm:$0xff]
        %v1112 = vsub.f32 0.0, %v1104
        %v1113 = vsub.f32 0.0, %v1105
        %v1114 = vsub.f32 0.0, %v1106
        %v1115 = vsub.f32 0.0, %v1107
        %v1116 = vsub.f32 0.0, %v1108
        %v1117 = vsub.f32 0.0, %v1109
        %v1118 = vsub.f32 0.0, %v1110
        %v1119 = vsub.f32 0.0, %v1111
        %1128 = vrot.lane.b32.xlu0 %v1112, 32
        %v1129 = vpop.permute.xlu0 %1128
        %1130 = vrot.lane.b32.xlu0 %v1113, 32
        %v1131 = vpop.permute.xlu0 %1130
        %1132 = vrot.lane.b32.xlu0 %v1114, 32
        %v1133 = vpop.permute.xlu0 %1132
        %1134 = vrot.lane.b32.xlu0 %v1115, 32
        %v1135 = vpop.permute.xlu0 %1134
        %1136 = vrot.lane.b32.xlu0 %v1116, 32
        %v1137 = vpop.permute.xlu0 %1136
        %1138 = vrot.lane.b32.xlu0 %v1117, 32
        %v1139 = vpop.permute.xlu0 %1138
        %1140 = vrot.lane.b32.xlu0 %v1118, 32
        %v1141 = vpop.permute.xlu0 %1140
        %1142 = vrot.lane.b32.xlu0 %v1119, 32
        %v1143 = vpop.permute.xlu0 %1142
        %v1152 = vsel %vm1043, %v1104, %v1129
        %v1153 = vsel %vm1043, %v1105, %v1131
        %v1154 = vsel %vm1043, %v1106, %v1133
        %v1155 = vsel %vm1043, %v1107, %v1135
        %v1156 = vsel %vm1043, %v1108, %v1137
        %v1157 = vsel %vm1043, %v1109, %v1139
        %v1158 = vsel %vm1043, %v1110, %v1141
        %v1159 = vsel %vm1043, %v1111, %v1143
        %vm1160 = vcmp.gt.f32.partialorder %v1152, 0.0
        %vm1161 = vcmp.gt.f32.partialorder %v1153, 0.0
        %vm1162 = vcmp.gt.f32.partialorder %v1154, 0.0
        %vm1163 = vcmp.gt.f32.partialorder %v1155, 0.0
        %vm1164 = vcmp.gt.f32.partialorder %v1156, 0.0
        %vm1165 = vcmp.gt.f32.partialorder %v1157, 0.0
        %vm1166 = vcmp.gt.f32.partialorder %v1158, 0.0
        %vm1167 = vcmp.gt.f32.partialorder %v1159, 0.0
        %v1168 = vmin.f32 %v1152, 0.0
        %v1169 = vmin.f32 %v1153, 0.0
        %v1170 = vmin.f32 %v1154, 0.0
        %v1171 = vmin.f32 %v1155, 0.0
        %v1172 = vmin.f32 %v1156, 0.0
        %v1173 = vmin.f32 %v1157, 0.0
        %v1174 = vmin.f32 %v1158, 0.0
        %v1175 = vmin.f32 %v1159, 0.0
        %v1176 = vmul.f32 %v1168, 1.442695
        %v1177 = vpow.pop %v1176
        %v1178 = vmul.f32 %v1169, 1.442695
        %v1179 = vpow.pop %v1178
        %v1180 = vmul.f32 %v1170, 1.442695
        %v1181 = vpow.pop %v1180
        %v1182 = vmul.f32 %v1171, 1.442695
        %v1183 = vpow.pop %v1182
        %v1184 = vmul.f32 %v1172, 1.442695
        %v1185 = vpow.pop %v1184
        %v1186 = vmul.f32 %v1173, 1.442695
        %v1187 = vpow.pop %v1186
        %v1188 = vmul.f32 %v1174, 1.442695
        %v1189 = vpow.pop %v1188
        %v1190 = vmul.f32 %v1175, 1.442695
        %v1191 = vpow.pop %v1190
        %v1192 = vsub.f32 %v1177, 1.0
        %v1193 = vsub.f32 %v1179, 1.0
        %v1194 = vsub.f32 %v1181, 1.0
        %v1195 = vsub.f32 %v1183, 1.0
        %v1196 = vsub.f32 %v1185, 1.0
        %v1197 = vsub.f32 %v1187, 1.0
        %v1198 = vsub.f32 %v1189, 1.0
        %v1199 = vsub.f32 %v1191, 1.0
        %v1200 = vsel %vm1160, %v1152, %v1192
        %v1201 = vsel %vm1161, %v1153, %v1193
        %v1202 = vsel %vm1162, %v1154, %v1194
        %v1203 = vsel %vm1163, %v1155, %v1195
        %v1204 = vsel %vm1164, %v1156, %v1196
        %v1205 = vsel %vm1165, %v1157, %v1197
        %v1206 = vsel %vm1166, %v1158, %v1198
        %v1207 = vsel %vm1167, %v1159, %v1199
        %v1208 = vpack.c.bf16 %v1200, %v1200
        %v1209 = vpack.c.bf16 %v1201, %v1201
        %v1210 = vpack.c.bf16 %v1202, %v1202
        %v1211 = vpack.c.bf16 %v1203, %v1203
        %v1212 = vpack.c.bf16 %v1204, %v1204
        %v1213 = vpack.c.bf16 %v1205, %v1205
        %v1214 = vpack.c.bf16 %v1206, %v1206
        %v1215 = vpack.c.bf16 %v1207, %v1207
        %s1216 = scalar_lea.vmem [#allocation2], 12
        %vm1217 = vcmask 519168
        %1218 = vst.msk [vmem:[%s1216 + $0x4] sm:$0xf] %vm1217, %v1208
        %1219 = vst.msk [vmem:[%s1216 + $0x10] sm:$0xf] %vm1217, %v1209
        %1220 = vst.msk [vmem:[%s1216 + $0x1c] sm:$0xf] %vm1217, %v1210
        %1221 = vst.msk [vmem:[%s1216 + $0x28] sm:$0xf] %vm1217, %v1211
        %1222 = vst.msk [vmem:[%s1216 + $0x34] sm:$0xf] %vm1217, %v1212
        %1223 = vst.msk [vmem:[%s1216 + $0x40] sm:$0xf] %vm1217, %v1213
        %1224 = vst.msk [vmem:[%s1216 + $0x4c] sm:$0xf] %vm1217, %v1214
        %1225 = vst.msk [vmem:[%s1216 + $0x58] sm:$0xf] %vm1217, %v1215
        %v1226 = vld [vmem:[#allocation2] sm:$0x8]
        %v1227 = vld [vmem:[#allocation2 + $0x4] sm:$0xf]
        %v1228 = vld [vmem:[#allocation2 + $0xc] sm:$0x8]
        %v1229 = vld [vmem:[#allocation2 + $0x10] sm:$0xf]
        %v1230 = vld [vmem:[#allocation2 + $0x18] sm:$0x8]
        %v1231 = vld [vmem:[#allocation2 + $0x1c] sm:$0xf]
        %v1232 = vld [vmem:[#allocation2 + $0x24] sm:$0x8]
        %v1233 = vld [vmem:[#allocation2 + $0x28] sm:$0xf]
        %v1234 = vld [vmem:[#allocation2 + $0x30] sm:$0x8]
        %v1235 = vld [vmem:[#allocation2 + $0x34] sm:$0xf]
        %v1236 = vld [vmem:[#allocation2 + $0x3c] sm:$0x8]
        %v1237 = vld [vmem:[#allocation2 + $0x40] sm:$0xf]
        %v1238 = vld [vmem:[#allocation2 + $0x48] sm:$0x8]
        %v1239 = vld [vmem:[#allocation2 + $0x4c] sm:$0xf]
        %v1240 = vld [vmem:[#allocation2 + $0x54] sm:$0x8]
        %v1241 = vld [vmem:[#allocation2 + $0x58] sm:$0xf]
        %vm1242 = vsmask.f32 256
        %vm1243 = vsmask.f32 4368
        %vm1244 = vmor %vm1242, %vm1243
        %v1246 = vshrl.u32 %v1226, 16
        %v1248 = vrot.slane %v1246, 7
        %v1249 = vrot.slane %v1248, 4
        %v1251 = vshrl.u32 %v1227, 16
        %v1253 = vrot.slane %v1251, 7
        %v1254 = vshll.u32 %v1227, 16
        %v1256 = vor.u32 %v1253, %v1254
        %v1257 = vsel %vm1244, %v1249, %v1256
        %v1259 = vshrl.u32 %v1228, 16
        %v1261 = vrot.slane %v1259, 7
        %v1262 = vrot.slane %v1261, 4
        %v1264 = vshrl.u32 %v1229, 16
        %v1266 = vrot.slane %v1264, 7
        %v1267 = vshll.u32 %v1229, 16
        %v1269 = vor.u32 %v1266, %v1267
        %v1270 = vsel %vm1244, %v1262, %v1269
        %v1272 = vshrl.u32 %v1230, 16
        %v1274 = vrot.slane %v1272, 7
        %v1275 = vrot.slane %v1274, 4
        %v1277 = vshrl.u32 %v1231, 16
        %v1279 = vrot.slane %v1277, 7
        %v1280 = vshll.u32 %v1231, 16
        %v1282 = vor.u32 %v1279, %v1280
        %v1283 = vsel %vm1244, %v1275, %v1282
        %v1285 = vshrl.u32 %v1232, 16
        %v1287 = vrot.slane %v1285, 7
        %v1288 = vrot.slane %v1287, 4
        %v1290 = vshrl.u32 %v1233, 16
        %v1292 = vrot.slane %v1290, 7
        %v1293 = vshll.u32 %v1233, 16
        %v1295 = vor.u32 %v1292, %v1293
        %v1296 = vsel %vm1244, %v1288, %v1295
        %v1298 = vshrl.u32 %v1234, 16
        %v1300 = vrot.slane %v1298, 7
        %v1301 = vrot.slane %v1300, 4
        %v1303 = vshrl.u32 %v1235, 16
        %v1305 = vrot.slane %v1303, 7
        %v1306 = vshll.u32 %v1235, 16
        %v1308 = vor.u32 %v1305, %v1306
        %v1309 = vsel %vm1244, %v1301, %v1308
        %v1311 = vshrl.u32 %v1236, 16
        %v1313 = vrot.slane %v1311, 7
        %v1314 = vrot.slane %v1313, 4
        %v1316 = vshrl.u32 %v1237, 16
        %v1318 = vrot.slane %v1316, 7
        %v1319 = vshll.u32 %v1237, 16
        %v1321 = vor.u32 %v1318, %v1319
        %v1322 = vsel %vm1244, %v1314, %v1321
        %v1324 = vshrl.u32 %v1238, 16
        %v1326 = vrot.slane %v1324, 7
        %v1327 = vrot.slane %v1326, 4
        %v1329 = vshrl.u32 %v1239, 16
        %v1331 = vrot.slane %v1329, 7
        %v1332 = vshll.u32 %v1239, 16
        %v1334 = vor.u32 %v1331, %v1332
        %v1335 = vsel %vm1244, %v1327, %v1334
        %v1337 = vshrl.u32 %v1240, 16
        %v1339 = vrot.slane %v1337, 7
        %v1340 = vrot.slane %v1339, 4
        %v1342 = vshrl.u32 %v1241, 16
        %v1344 = vrot.slane %v1342, 7
        %v1345 = vshll.u32 %v1241, 16
        %v1347 = vor.u32 %v1344, %v1345
        %v1348 = vsel %vm1244, %v1340, %v1347
        %v1349 = vld [vmem:[#allocation2 + $0x8] sm:$0x1]
        %v1350 = vld [vmem:[#allocation2 + $0x14] sm:$0x1]
        %v1351 = vld [vmem:[#allocation2 + $0x20] sm:$0x1]
        %v1352 = vld [vmem:[#allocation2 + $0x2c] sm:$0x1]
        %v1353 = vld [vmem:[#allocation2 + $0x38] sm:$0x1]
        %v1354 = vld [vmem:[#allocation2 + $0x44] sm:$0x1]
        %v1355 = vld [vmem:[#allocation2 + $0x50] sm:$0x1]
        %v1356 = vld [vmem:[#allocation2 + $0x5c] sm:$0x1]
        %vm1357 = vsmask.f32 3328
        %vm1358 = vsmask.f32 7440
        %vm1359 = vmor %vm1357, %vm1358
        %v1360 = vrot.slane %v1251, 4
        %v1361 = vrot.slane %v1254, 5
        %v1362 = vor.u32 %v1360, %v1361
        %v1363 = vrot.slane %v1362, 4
        %v1365 = vshll.u32 %v1349, 16
        %v1367 = vrot.slane %v1365, 5
        %v1368 = vsel %vm1359, %v1363, %v1367
        %v1369 = vrot.slane %v1264, 4
        %v1370 = vrot.slane %v1267, 5
        %v1371 = vor.u32 %v1369, %v1370
        %v1372 = vrot.slane %v1371, 4
        %v1374 = vshll.u32 %v1350, 16
        %v1376 = vrot.slane %v1374, 5
        %v1377 = vsel %vm1359, %v1372, %v1376
        %v1378 = vrot.slane %v1277, 4
        %v1379 = vrot.slane %v1280, 5
        %v1380 = vor.u32 %v1378, %v1379
        %v1381 = vrot.slane %v1380, 4
        %v1383 = vshll.u32 %v1351, 16
        %v1385 = vrot.slane %v1383, 5
        %v1386 = vsel %vm1359, %v1381, %v1385
        %v1387 = vrot.slane %v1290, 4
        %v1388 = vrot.slane %v1293, 5
        %v1389 = vor.u32 %v1387, %v1388
        %v1390 = vrot.slane %v1389, 4
        %v1392 = vshll.u32 %v1352, 16
        %v1394 = vrot.slane %v1392, 5
        %v1395 = vsel %vm1359, %v1390, %v1394
        %v1396 = vrot.slane %v1303, 4
        %v1397 = vrot.slane %v1306, 5
        %v1398 = vor.u32 %v1396, %v1397
        %v1399 = vrot.slane %v1398, 4
        %v1401 = vshll.u32 %v1353, 16
        %v1403 = vrot.slane %v1401, 5
        %v1404 = vsel %vm1359, %v1399, %v1403
        %v1405 = vrot.slane %v1316, 4
        %v1406 = vrot.slane %v1319, 5
        %v1407 = vor.u32 %v1405, %v1406
        %v1408 = vrot.slane %v1407, 4
        %v1410 = vshll.u32 %v1354, 16
        %v1412 = vrot.slane %v1410, 5
        %v1413 = vsel %vm1359, %v1408, %v1412
        %v1414 = vrot.slane %v1329, 4
        %v1415 = vrot.slane %v1332, 5
        %v1416 = vor.u32 %v1414, %v1415
        %v1417 = vrot.slane %v1416, 4
        %v1419 = vshll.u32 %v1355, 16
        %v1421 = vrot.slane %v1419, 5
        %v1422 = vsel %vm1359, %v1417, %v1421
        %v1423 = vrot.slane %v1342, 4
        %v1424 = vrot.slane %v1345, 5
        %v1425 = vor.u32 %v1423, %v1424
        %v1426 = vrot.slane %v1425, 4
        %v1428 = vshll.u32 %v1356, 16
        %v1430 = vrot.slane %v1428, 5
        %v1431 = vsel %vm1359, %v1426, %v1430
        %v1432 = vunpack.c.l.b16 %v1257
        %v1433 = vunpack.c.l.b16 %v1270
        %v1434 = vunpack.c.l.b16 %v1283
        %v1435 = vunpack.c.l.b16 %v1296
        %v1436 = vunpack.c.l.b16 %v1309
        %v1437 = vunpack.c.l.b16 %v1322
        %v1438 = vunpack.c.l.b16 %v1335
        %v1439 = vunpack.c.l.b16 %v1348
        %v1440 = vpack.c.b16 %v1433, %v1432
        %v1441 = vpack.c.b16 %v1435, %v1434
        %v1442 = vpack.c.b16 %v1437, %v1436
        %v1443 = vpack.c.b16 %v1439, %v1438
        %v1452 = vunpack.c.l.b16 %v1227
        %v1453 = vunpack.c.l.b16 %v1229
        %v1454 = vunpack.c.l.b16 %v1231
        %v1455 = vunpack.c.l.b16 %v1233
        %v1456 = vunpack.c.l.b16 %v1235
        %v1457 = vunpack.c.l.b16 %v1237
        %v1458 = vunpack.c.l.b16 %v1239
        %v1459 = vunpack.c.l.b16 %v1241
        %v1460 = vpack.c.b16 %v1453, %v1452
        %v1461 = vpack.c.b16 %v1455, %v1454
        %v1462 = vpack.c.b16 %v1457, %v1456
        %v1463 = vpack.c.b16 %v1459, %v1458
        %1464 = vrot.lane.b32.xlu0 %v1460, 64
        %v1465 = vpop.permute.xlu0 %1464
        %1466 = vrot.lane.b32.xlu0 %v1461, 64
        %v1467 = vpop.permute.xlu0 %1466
        %1468 = vrot.lane.b32.xlu0 %v1462, 64
        %v1469 = vpop.permute.xlu0 %1468
        %1470 = vrot.lane.b32.xlu0 %v1463, 64
        %v1471 = vpop.permute.xlu0 %1470
        %v1472 = vunpack.c.l.b16 %v1368
        %v1473 = vunpack.c.l.b16 %v1377
        %v1474 = vunpack.c.l.b16 %v1386
        %v1475 = vunpack.c.l.b16 %v1395
        %v1476 = vunpack.c.l.b16 %v1404
        %v1477 = vunpack.c.l.b16 %v1413
        %v1478 = vunpack.c.l.b16 %v1422
        %v1479 = vunpack.c.l.b16 %v1431
        %v1480 = vpack.c.b16 %v1473, %v1472
        %v1481 = vpack.c.b16 %v1475, %v1474
        %v1482 = vpack.c.b16 %v1477, %v1476
        %v1483 = vpack.c.b16 %v1479, %v1478
        %vm1484 = vcmask 523264
        %v1487 = vsel %vm1484, %v1440, %v1465
        %v1491 = vsel %vm1484, %v1441, %v1467
        %v1495 = vsel %vm1484, %v1442, %v1469
        %v1499 = vsel %vm1484, %v1443, %v1471
        %v1501 = vld [vmem:[%s872] sm:$0xf]
        %v1502 = vld [vmem:[%s872 + $0x4] sm:$0xf]
        %v1503 = vld [vmem:[%s872 + $0x8] sm:$0xf]
        %v1504 = vld [vmem:[%s872 + $0xc] sm:$0xf]
        %v1505 = vld [vmem:[%s872 + $0x10] sm:$0xf]
        %v1506 = vld [vmem:[%s872 + $0x14] sm:$0xf]
        %v1507 = vld [vmem:[%s872 + $0x18] sm:$0xf]
        %v1508 = vld [vmem:[%s872 + $0x1c] sm:$0xf]
        %v1509 = vld [vmem:[%s872 + $0x20] sm:$0xf]
        %v1510 = vld [vmem:[%s872 + $0x24] sm:$0xf]
        %v1511 = vld [vmem:[%s872 + $0x28] sm:$0xf]
        %v1512 = vld [vmem:[%s872 + $0x2c] sm:$0xf]
        %v1513 = vld [vmem:[%s872 + $0x30] sm:$0xf]
        %v1514 = vld [vmem:[%s872 + $0x34] sm:$0xf]
        %v1515 = vld [vmem:[%s872 + $0x38] sm:$0xf]
        %v1516 = vld [vmem:[%s872 + $0x3c] sm:$0xf]
        %v1517 = vld [vmem:[%s872 + $0x40] sm:$0xf]
        %v1518 = vld [vmem:[%s872 + $0x44] sm:$0xf]
        %v1519 = vld [vmem:[%s872 + $0x48] sm:$0xf]
        %v1520 = vld [vmem:[%s872 + $0x4c] sm:$0xf]
        %v1521 = vld [vmem:[%s872 + $0x50] sm:$0xf]
        %v1522 = vld [vmem:[%s872 + $0x54] sm:$0xf]
        %v1523 = vld [vmem:[%s872 + $0x58] sm:$0xf]
        %v1524 = vld [vmem:[%s872 + $0x5c] sm:$0xf]
        %v1525 = vld [vmem:[%s1216] sm:$0x8]
        %v1526 = vld [vmem:[%s1216 + $0x4] sm:$0xf]
        %v1527 = vld [vmem:[%s1216 + $0xc] sm:$0x8]
        %v1528 = vld [vmem:[%s1216 + $0x10] sm:$0xf]
        %v1529 = vld [vmem:[%s1216 + $0x18] sm:$0x8]
        %v1530 = vld [vmem:[%s1216 + $0x1c] sm:$0xf]
        %v1531 = vld [vmem:[%s1216 + $0x24] sm:$0x8]
        %v1532 = vld [vmem:[%s1216 + $0x28] sm:$0xf]
        %v1533 = vld [vmem:[%s1216 + $0x30] sm:$0x8]
        %v1534 = vld [vmem:[%s1216 + $0x34] sm:$0xf]
        %v1535 = vld [vmem:[%s1216 + $0x3c] sm:$0x8]
        %v1536 = vld [vmem:[%s1216 + $0x40] sm:$0xf]
        %v1537 = vld [vmem:[%s1216 + $0x48] sm:$0x8]
        %v1538 = vld [vmem:[%s1216 + $0x4c] sm:$0xf]
        %v1539 = vld [vmem:[%s1216 + $0x54] sm:$0x8]
        %v1540 = vld [vmem:[%s1216 + $0x58] sm:$0xf]
        %v1542 = vshrl.u32 %v1525, 16
        %v1544 = vrot.slane %v1542, 7
        %v1545 = vrot.slane %v1544, 4
        %v1547 = vshrl.u32 %v1526, 16
        %v1549 = vrot.slane %v1547, 7
        %v1550 = vshll.u32 %v1526, 16
        %v1552 = vor.u32 %v1549, %v1550
        %v1553 = vsel %vm1244, %v1545, %v1552
        %v1555 = vshrl.u32 %v1527, 16
        %v1557 = vrot.slane %v1555, 7
        %v1558 = vrot.slane %v1557, 4
        %v1560 = vshrl.u32 %v1528, 16
        %v1562 = vrot.slane %v1560, 7
        %v1563 = vshll.u32 %v1528, 16
        %v1565 = vor.u32 %v1562, %v1563
        %v1566 = vsel %vm1244, %v1558, %v1565
        %v1568 = vshrl.u32 %v1529, 16
        %v1570 = vrot.slane %v1568, 7
        %v1571 = vrot.slane %v1570, 4
        %v1573 = vshrl.u32 %v1530, 16
        %v1575 = vrot.slane %v1573, 7
        %v1576 = vshll.u32 %v1530, 16
        %v1578 = vor.u32 %v1575, %v1576
        %v1579 = vsel %vm1244, %v1571, %v1578
        %v1581 = vshrl.u32 %v1531, 16
        %v1583 = vrot.slane %v1581, 7
        %v1584 = vrot.slane %v1583, 4
        %v1586 = vshrl.u32 %v1532, 16
        %v1588 = vrot.slane %v1586, 7
        %v1589 = vshll.u32 %v1532, 16
        %v1591 = vor.u32 %v1588, %v1589
        %v1592 = vsel %vm1244, %v1584, %v1591
        %v1594 = vshrl.u32 %v1533, 16
        %v1596 = vrot.slane %v1594, 7
        %v1597 = vrot.slane %v1596, 4
        %v1599 = vshrl.u32 %v1534, 16
        %v1601 = vrot.slane %v1599, 7
        %v1602 = vshll.u32 %v1534, 16
        %v1604 = vor.u32 %v1601, %v1602
        %v1605 = vsel %vm1244, %v1597, %v1604
        %v1607 = vshrl.u32 %v1535, 16
        %v1609 = vrot.slane %v1607, 7
        %v1610 = vrot.slane %v1609, 4
        %v1612 = vshrl.u32 %v1536, 16
        %v1614 = vrot.slane %v1612, 7
        %v1615 = vshll.u32 %v1536, 16
        %v1617 = vor.u32 %v1614, %v1615
        %v1618 = vsel %vm1244, %v1610, %v1617
        %v1620 = vshrl.u32 %v1537, 16
        %v1622 = vrot.slane %v1620, 7
        %v1623 = vrot.slane %v1622, 4
        %v1625 = vshrl.u32 %v1538, 16
        %v1627 = vrot.slane %v1625, 7
        %v1628 = vshll.u32 %v1538, 16
        %v1630 = vor.u32 %v1627, %v1628
        %v1631 = vsel %vm1244, %v1623, %v1630
        %v1633 = vshrl.u32 %v1539, 16
        %v1635 = vrot.slane %v1633, 7
        %v1636 = vrot.slane %v1635, 4
        %v1638 = vshrl.u32 %v1540, 16
        %v1640 = vrot.slane %v1638, 7
        %v1641 = vshll.u32 %v1540, 16
        %v1643 = vor.u32 %v1640, %v1641
        %v1644 = vsel %vm1244, %v1636, %v1643
        %v1645 = vld [vmem:[%s1216 + $0x8] sm:$0x1]
        %v1646 = vld [vmem:[%s1216 + $0x14] sm:$0x1]
        %v1647 = vld [vmem:[%s1216 + $0x20] sm:$0x1]
        %v1648 = vld [vmem:[%s1216 + $0x2c] sm:$0x1]
        %v1649 = vld [vmem:[%s1216 + $0x38] sm:$0x1]
        %v1650 = vld [vmem:[%s1216 + $0x44] sm:$0x1]
        %v1651 = vld [vmem:[%s1216 + $0x50] sm:$0x1]
        %v1652 = vld [vmem:[%s1216 + $0x5c] sm:$0x1]
        %v1653 = vrot.slane %v1547, 4
        %v1654 = vrot.slane %v1550, 5
        %v1655 = vor.u32 %v1653, %v1654
        %v1656 = vrot.slane %v1655, 4
        %v1658 = vshll.u32 %v1645, 16
        %v1660 = vrot.slane %v1658, 5
        %v1661 = vsel %vm1359, %v1656, %v1660
        %v1662 = vrot.slane %v1560, 4
        %v1663 = vrot.slane %v1563, 5
        %v1664 = vor.u32 %v1662, %v1663
        %v1665 = vrot.slane %v1664, 4
        %v1667 = vshll.u32 %v1646, 16
        %v1669 = vrot.slane %v1667, 5
        %v1670 = vsel %vm1359, %v1665, %v1669
        %v1671 = vrot.slane %v1573, 4
        %v1672 = vrot.slane %v1576, 5
        %v1673 = vor.u32 %v1671, %v1672
        %v1674 = vrot.slane %v1673, 4
        %v1676 = vshll.u32 %v1647, 16
        %v1678 = vrot.slane %v1676, 5
        %v1679 = vsel %vm1359, %v1674, %v1678
        %v1680 = vrot.slane %v1586, 4
        %v1681 = vrot.slane %v1589, 5
        %v1682 = vor.u32 %v1680, %v1681
        %v1683 = vrot.slane %v1682, 4
        %v1685 = vshll.u32 %v1648, 16
        %v1687 = vrot.slane %v1685, 5
        %v1688 = vsel %vm1359, %v1683, %v1687
        %v1689 = vrot.slane %v1599, 4
        %v1690 = vrot.slane %v1602, 5
        %v1691 = vor.u32 %v1689, %v1690
        %v1692 = vrot.slane %v1691, 4
        %v1694 = vshll.u32 %v1649, 16
        %v1696 = vrot.slane %v1694, 5
        %v1697 = vsel %vm1359, %v1692, %v1696
        %v1698 = vrot.slane %v1612, 4
        %v1699 = vrot.slane %v1615, 5
        %v1700 = vor.u32 %v1698, %v1699
        %v1701 = vrot.slane %v1700, 4
        %v1703 = vshll.u32 %v1650, 16
        %v1705 = vrot.slane %v1703, 5
        %v1706 = vsel %vm1359, %v1701, %v1705
        %v1707 = vrot.slane %v1625, 4
        %v1708 = vrot.slane %v1628, 5
        %v1709 = vor.u32 %v1707, %v1708
        %v1710 = vrot.slane %v1709, 4
        %v1712 = vshll.u32 %v1651, 16
        %v1714 = vrot.slane %v1712, 5
        %v1715 = vsel %vm1359, %v1710, %v1714
        %v1716 = vrot.slane %v1638, 4
        %v1717 = vrot.slane %v1641, 5
        %v1718 = vor.u32 %v1716, %v1717
        %v1719 = vrot.slane %v1718, 4
        %v1721 = vshll.u32 %v1652, 16
        %v1723 = vrot.slane %v1721, 5
        %v1724 = vsel %vm1359, %v1719, %v1723
        %v1725 = vunpack.c.l.b16 %v1553
        %v1726 = vunpack.c.l.b16 %v1566
        %v1727 = vunpack.c.l.b16 %v1579
        %v1728 = vunpack.c.l.b16 %v1592
        %v1729 = vunpack.c.l.b16 %v1605
        %v1730 = vunpack.c.l.b16 %v1618
        %v1731 = vunpack.c.l.b16 %v1631
        %v1732 = vunpack.c.l.b16 %v1644
        %v1733 = vpack.c.b16 %v1726, %v1725
        %v1734 = vpack.c.b16 %v1728, %v1727
        %v1735 = vpack.c.b16 %v1730, %v1729
        %v1736 = vpack.c.b16 %v1732, %v1731
        %v1745 = vunpack.c.l.b16 %v1526
        %v1746 = vunpack.c.l.b16 %v1528
        %v1747 = vunpack.c.l.b16 %v1530
        %v1748 = vunpack.c.l.b16 %v1532
        %v1749 = vunpack.c.l.b16 %v1534
        %v1750 = vunpack.c.l.b16 %v1536
        %v1751 = vunpack.c.l.b16 %v1538
        %v1752 = vunpack.c.l.b16 %v1540
        %v1753 = vpack.c.b16 %v1746, %v1745
        %v1754 = vpack.c.b16 %v1748, %v1747
        %v1755 = vpack.c.b16 %v1750, %v1749
        %v1756 = vpack.c.b16 %v1752, %v1751
        %1757 = vrot.lane.b32.xlu0 %v1753, 64
        %v1758 = vpop.permute.xlu0 %1757
        %1759 = vrot.lane.b32.xlu0 %v1754, 64
        %v1760 = vpop.permute.xlu0 %1759
        %1761 = vrot.lane.b32.xlu0 %v1755, 64
        %v1762 = vpop.permute.xlu0 %1761
        %1763 = vrot.lane.b32.xlu0 %v1756, 64
        %v1764 = vpop.permute.xlu0 %1763
        %v1765 = vunpack.c.l.b16 %v1661
        %v1766 = vunpack.c.l.b16 %v1670
        %v1767 = vunpack.c.l.b16 %v1679
        %v1768 = vunpack.c.l.b16 %v1688
        %v1769 = vunpack.c.l.b16 %v1697
        %v1770 = vunpack.c.l.b16 %v1706
        %v1771 = vunpack.c.l.b16 %v1715
        %v1772 = vunpack.c.l.b16 %v1724
        %v1773 = vpack.c.b16 %v1766, %v1765
        %v1774 = vpack.c.b16 %v1768, %v1767
        %v1775 = vpack.c.b16 %v1770, %v1769
        %v1776 = vpack.c.b16 %v1772, %v1771
        %v1779 = vsel %vm1484, %v1733, %v1758
        %v1783 = vsel %vm1484, %v1734, %v1760
        %v1787 = vsel %vm1484, %v1735, %v1762
        %v1791 = vsel %vm1484, %v1736, %v1764
        %v1793 = vld [vmem:[%s877] sm:$0xf]
        %v1794 = vld [vmem:[%s877 + $0x4] sm:$0xf]
        %v1795 = vld [vmem:[%s877 + $0x8] sm:$0xf]
        %v1796 = vld [vmem:[%s877 + $0xc] sm:$0xf]
        %v1797 = vld [vmem:[%s877 + $0x10] sm:$0xf]
        %v1798 = vld [vmem:[%s877 + $0x14] sm:$0xf]
        %v1799 = vld [vmem:[%s877 + $0x18] sm:$0xf]
        %v1800 = vld [vmem:[%s877 + $0x1c] sm:$0xf]
        %v1801 = vld [vmem:[%s877 + $0x20] sm:$0xf]
        %v1802 = vld [vmem:[%s877 + $0x24] sm:$0xf]
        %v1803 = vld [vmem:[%s877 + $0x28] sm:$0xf]
        %v1804 = vld [vmem:[%s877 + $0x2c] sm:$0xf]
        %v1805 = vld [vmem:[%s877 + $0x30] sm:$0xf]
        %v1806 = vld [vmem:[%s877 + $0x34] sm:$0xf]
        %v1807 = vld [vmem:[%s877 + $0x38] sm:$0xf]
        %v1808 = vld [vmem:[%s877 + $0x3c] sm:$0xf]
        %v1809 = vld [vmem:[%s877 + $0x40] sm:$0xf]
        %v1810 = vld [vmem:[%s877 + $0x44] sm:$0xf]
        %v1811 = vld [vmem:[%s877 + $0x48] sm:$0xf]
        %v1812 = vld [vmem:[%s877 + $0x4c] sm:$0xf]
        %v1813 = vld [vmem:[%s877 + $0x50] sm:$0xf]
        %v1814 = vld [vmem:[%s877 + $0x54] sm:$0xf]
        %v1815 = vld [vmem:[%s877 + $0x58] sm:$0xf]
        %v1816 = vld [vmem:[%s877 + $0x5c] sm:$0xf]
        %v1841 = vunpack.c.l.b16 %v1793
        %v1842 = vunpack.c.l.b16 %v1794
        %v1843 = vunpack.c.l.b16 %v1795
        %v1844 = vunpack.c.l.b16 %v1796
        %v1845 = vunpack.c.l.b16 %v1797
        %v1846 = vunpack.c.l.b16 %v1798
        %v1847 = vunpack.c.l.b16 %v1799
        %v1848 = vunpack.c.l.b16 %v1800
        %v1849 = vunpack.c.l.b16 %v1801
        %v1850 = vunpack.c.l.b16 %v1802
        %v1851 = vunpack.c.l.b16 %v1803
        %v1852 = vunpack.c.l.b16 %v1804
        %v1853 = vunpack.c.l.b16 %v1805
        %v1854 = vunpack.c.l.b16 %v1806
        %v1855 = vunpack.c.l.b16 %v1807
        %v1856 = vunpack.c.l.b16 %v1808
        %v1857 = vunpack.c.l.b16 %v1809
        %v1858 = vunpack.c.l.b16 %v1810
        %v1859 = vunpack.c.l.b16 %v1811
        %v1860 = vunpack.c.l.b16 %v1812
        %v1861 = vunpack.c.l.b16 %v1813
        %v1862 = vunpack.c.l.b16 %v1814
        %v1863 = vunpack.c.l.b16 %v1815
        %v1864 = vunpack.c.l.b16 %v1816
        %v1865 = vpack.c.b16 %v1842, %v1841
        %v1866 = vpack.c.b16 %v1844, %v1843
        %v1867 = vpack.c.b16 %v1846, %v1845
        %v1868 = vpack.c.b16 %v1848, %v1847
        %v1869 = vpack.c.b16 %v1850, %v1849
        %v1870 = vpack.c.b16 %v1852, %v1851
        %v1871 = vpack.c.b16 %v1854, %v1853
        %v1872 = vpack.c.b16 %v1856, %v1855
        %v1873 = vpack.c.b16 %v1858, %v1857
        %v1874 = vpack.c.b16 %v1860, %v1859
        %v1875 = vpack.c.b16 %v1862, %v1861
        %v1876 = vpack.c.b16 %v1864, %v1863
        %v1890 = vsel %vm1484, %v1773, 0
        %v1893 = vsel %vm1484, %v1774, 0
        %v1896 = vsel %vm1484, %v1775, 0
        %v1899 = vsel %vm1484, %v1776, 0
        %1901 = vmatprep.subr.bf16.mxu0 0
        %1902 = vmatpush1.bf16.msra.mxu0 %v1865
        %1903 = vmatprep.subr.bf16.mxu0 0
        %1904 = vmatpush1.bf16.msra.mxu0 %v1866
        %1905 = vmatprep.subr.bf16.mxu0 0
        %1906 = vmatpush1.bf16.msra.mxu0 %v1867
        %1907 = vmatprep.subr.bf16.mxu0 0
        %1908 = vmatpush1.bf16.msra.mxu0 %v1868
        %1909 = vmatprep.subr.bf16.mxu0 0
        %1910 = vmatpush1.bf16.msra.mxu0 %v1869
        %1911 = vmatprep.subr.bf16.mxu0 0
        %1912 = vmatpush1.bf16.msra.mxu0 %v1870
        %1913 = vmatprep.subr.bf16.mxu0 0
        %1914 = vmatpush1.bf16.msra.mxu0 %v1871
        %1915 = vmatprep.subr.bf16.mxu0 0
        %1916 = vmatpush1.bf16.msra.mxu0 %v1872
        %1917 = vmatprep.subr.bf16.mxu0 0
        %1918 = vmatpush1.bf16.msra.mxu0 %v1873
        %1919 = vmatprep.subr.bf16.mxu0 0
        %1920 = vmatpush1.bf16.msra.mxu0 %v1874
        %1921 = vmatprep.subr.bf16.mxu0 0
        %1922 = vmatpush1.bf16.msra.mxu0 %v1875
        %1923 = vmatprep.subr.bf16.mxu0 0
        %1924 = vmatpush1.bf16.msra.mxu0 %v1876
        %1925 = vmatprep.subr.bf16.mxu0 0
        %1926 = vmatpush1.bf16.msra.mxu0 0
        %1927 = vmatprep.subr.bf16.mxu0 0
        %1928 = vmatpush1.bf16.msra.mxu0 0
        %1929 = vmatprep.subr.bf16.mxu0 0
        %1930 = vmatpush1.bf16.msra.mxu0 0
        %1931 = vmatprep.subr.bf16.mxu0 0
        %1932 = vmatpush1.bf16.msra.mxu0 0
        %1933 = vmatprep.mubr.bf16.mxu0 %v1890
        %1934 = vmatmul.mubr.bf16.gmra.mrb[0].mxu0 %v1779
        %v1935 = vpop.f32.mrb[0].mxu0
        %v1936 = vadd.f32 0.0, %v1935
        %v1937 = vpop.f32.mrb[0].mxu0
        %v1938 = vpop.f32.mrb[0].mxu0
        %v1939 = vadd.f32 0.0, %v1938
        %v1940 = vpop.f32.mrb[0].mxu0
        %1941 = vmatprep.mubr.bf16.mxu0 %v1893
        %1942 = vmatmul.mubr.bf16.gmra.mrb[0].mxu0 %v1783
        %v1943 = vpop.f32.mrb[0].mxu0
        %v1944 = vadd.f32 0.0, %v1943
        %v1945 = vpop.f32.mrb[0].mxu0
        %v1946 = vpop.f32.mrb[0].mxu0
        %v1947 = vadd.f32 0.0, %v1946
        %v1948 = vpop.f32.mrb[0].mxu0
        %1949 = vmatprep.mubr.bf16.mxu0 %v1896
        %1950 = vmatmul.mubr.bf16.gmra.mrb[0].mxu0 %v1787
        %v1951 = vpop.f32.mrb[0].mxu0
        %v1952 = vadd.f32 0.0, %v1951
        %v1953 = vpop.f32.mrb[0].mxu0
        %v1954 = vpop.f32.mrb[0].mxu0
        %v1955 = vadd.f32 0.0, %v1954
        %v1956 = vpop.f32.mrb[0].mxu0
        %1957 = vmatprep.mubr.bf16.mxu0 %v1899
        %1958 = vmatmul.mubr.bf16.gmra.mrb[0].mxu0 %v1791
        %v1959 = vpop.f32.mrb[0].mxu0
        %v1960 = vadd.f32 0.0, %v1959
        %v1961 = vpop.f32.mrb[0].mxu0
        %v1962 = vpop.f32.mrb[0].mxu0
        %v1963 = vadd.f32 0.0, %v1962
        %v1964 = vpop.f32.mrb[0].mxu0
        %1965 = vdwg.mxu0
        %v1990 = vunpack.c.l.b16 %v1501
        %v1991 = vunpack.c.l.b16 %v1502
        %v1992 = vunpack.c.l.b16 %v1503
        %v1993 = vunpack.c.l.b16 %v1504
        %v1994 = vunpack.c.l.b16 %v1505
        %v1995 = vunpack.c.l.b16 %v1506
        %v1996 = vunpack.c.l.b16 %v1507
        %v1997 = vunpack.c.l.b16 %v1508
        %v1998 = vunpack.c.l.b16 %v1509
        %v1999 = vunpack.c.l.b16 %v1510
        %v2000 = vunpack.c.l.b16 %v1511
        %v2001 = vunpack.c.l.b16 %v1512
        %v2002 = vunpack.c.l.b16 %v1513
        %v2003 = vunpack.c.l.b16 %v1514
        %v2004 = vunpack.c.l.b16 %v1515
        %v2005 = vunpack.c.l.b16 %v1516
        %v2006 = vunpack.c.l.b16 %v1517
        %v2007 = vunpack.c.l.b16 %v1518
        %v2008 = vunpack.c.l.b16 %v1519
        %v2009 = vunpack.c.l.b16 %v1520
        %v2010 = vunpack.c.l.b16 %v1521
        %v2011 = vunpack.c.l.b16 %v1522
        %v2012 = vunpack.c.l.b16 %v1523
        %v2013 = vunpack.c.l.b16 %v1524
        %v2014 = vpack.c.b16 %v1991, %v1990
        %v2015 = vpack.c.b16 %v1993, %v1992
        %v2016 = vpack.c.b16 %v1995, %v1994
        %v2017 = vpack.c.b16 %v1997, %v1996
        %v2018 = vpack.c.b16 %v1999, %v1998
        %v2019 = vpack.c.b16 %v2001, %v2000
        %v2020 = vpack.c.b16 %v2003, %v2002
        %v2021 = vpack.c.b16 %v2005, %v2004
        %v2022 = vpack.c.b16 %v2007, %v2006
        %v2023 = vpack.c.b16 %v2009, %v2008
        %v2024 = vpack.c.b16 %v2011, %v2010
        %v2025 = vpack.c.b16 %v2013, %v2012
        %v2039 = vsel %vm1484, %v1480, 0
        %v2042 = vsel %vm1484, %v1481, 0
        %v2045 = vsel %vm1484, %v1482, 0
        %v2048 = vsel %vm1484, %v1483, 0
        %2050 = vmatprep.subr.bf16.mxu0 0
        %2051 = vmatpush1.bf16.msra.mxu0 %v2014
        %2052 = vmatprep.subr.bf16.mxu0 0
        %2053 = vmatpush1.bf16.msra.mxu0 %v2015
        %2054 = vmatprep.subr.bf16.mxu0 0
        %2055 = vmatpush1.bf16.msra.mxu0 %v2016
        %2056 = vmatprep.subr.bf16.mxu0 0
        %2057 = vmatpush1.bf16.msra.mxu0 %v2017
        %2058 = vmatprep.subr.bf16.mxu0 0
        %2059 = vmatpush1.bf16.msra.mxu0 %v2018
        %2060 = vmatprep.subr.bf16.mxu0 0
        %2061 = vmatpush1.bf16.msra.mxu0 %v2019
        %2062 = vmatprep.subr.bf16.mxu0 0
        %2063 = vmatpush1.bf16.msra.mxu0 %v2020
        %2064 = vmatprep.subr.bf16.mxu0 0
        %2065 = vmatpush1.bf16.msra.mxu0 %v2021
        %2066 = vmatprep.subr.bf16.mxu0 0
        %2067 = vmatpush1.bf16.msra.mxu0 %v2022
        %2068 = vmatprep.subr.bf16.mxu0 0
        %2069 = vmatpush1.bf16.msra.mxu0 %v2023
        %2070 = vmatprep.subr.bf16.mxu0 0
        %2071 = vmatpush1.bf16.msra.mxu0 %v2024
        %2072 = vmatprep.subr.bf16.mxu0 0
        %2073 = vmatpush1.bf16.msra.mxu0 %v2025
        %2074 = vmatprep.subr.bf16.mxu0 0
        %2075 = vmatpush1.bf16.msra.mxu0 0
        %2076 = vmatprep.subr.bf16.mxu0 0
        %2077 = vmatpush1.bf16.msra.mxu0 0
        %2078 = vmatprep.subr.bf16.mxu0 0
        %2079 = vmatpush1.bf16.msra.mxu0 0
        %2080 = vmatprep.subr.bf16.mxu0 0
        %2081 = vmatpush1.bf16.msra.mxu0 0
        %2082 = vmatprep.mubr.bf16.mxu0 %v2039
        %2083 = vmatmul.mubr.bf16.gmra.mrb[0].mxu0 %v1487
        %v2084 = vpop.f32.mrb[0].mxu0
        %v2085 = vadd.f32 %v1936, %v2084
        %v2086 = vpop.f32.mrb[0].mxu0
        %v2087 = vpop.f32.mrb[0].mxu0
        %v2088 = vadd.f32 %v1939, %v2087
        %v2089 = vpop.f32.mrb[0].mxu0
        %2090 = vmatprep.mubr.bf16.mxu0 %v2042
        %2091 = vmatmul.mubr.bf16.gmra.mrb[0].mxu0 %v1491
        %v2092 = vpop.f32.mrb[0].mxu0
        %v2093 = vadd.f32 %v1944, %v2092
        %v2094 = vpop.f32.mrb[0].mxu0
        %v2095 = vpop.f32.mrb[0].mxu0
        %v2096 = vadd.f32 %v1947, %v2095
        %v2097 = vpop.f32.mrb[0].mxu0
        %2098 = vmatprep.mubr.bf16.mxu0 %v2045
        %2099 = vmatmul.mubr.bf16.gmra.mrb[0].mxu0 %v1495
        %v2100 = vpop.f32.mrb[0].mxu0
        %v2101 = vadd.f32 %v1952, %v2100
        %v2102 = vpop.f32.mrb[0].mxu0
        %v2103 = vpop.f32.mrb[0].mxu0
        %v2104 = vadd.f32 %v1955, %v2103
        %v2105 = vpop.f32.mrb[0].mxu0
        %2106 = vmatprep.mubr.bf16.mxu0 %v2048
        %2107 = vmatmul.mubr.bf16.gmra.mrb[0].mxu0 %v1499
        %v2108 = vpop.f32.mrb[0].mxu0
        %v2109 = vadd.f32 %v1960, %v2108
        %v2110 = vpop.f32.mrb[0].mxu0
        %v2111 = vpop.f32.mrb[0].mxu0
        %v2112 = vadd.f32 %v1963, %v2111
        %v2113 = vpop.f32.mrb[0].mxu0
        %2114 = vdwg.mxu0
        %v2115 = vld [vmem:[%s882] sm:$0xf]
        %v2116 = vld [vmem:[%s882 + $0x4] sm:$0xf]
        %v2117 = vld [vmem:[%s882 + $0x8] sm:$0xf]
        %v2118 = vld [vmem:[%s882 + $0xc] sm:$0xf]
        %v2119 = vld [vmem:[%s882 + $0x10] sm:$0xf]
        %v2120 = vld [vmem:[%s882 + $0x14] sm:$0xf]
        %v2121 = vld [vmem:[%s882 + $0x18] sm:$0xf]
        %v2122 = vld [vmem:[%s882 + $0x1c] sm:$0xf]
        %v2131 = vunpack.c.l.b16 %v2115
        %v2132 = vunpack.c.l.b16 %v2116
        %v2133 = vunpack.c.l.b16 %v2117
        %v2134 = vunpack.c.l.b16 %v2118
        %v2135 = vunpack.c.l.b16 %v2119
        %v2136 = vunpack.c.l.b16 %v2120
        %v2137 = vunpack.c.l.b16 %v2121
        %v2138 = vunpack.c.l.b16 %v2122
        %v2139 = vpack.c.b16 %v2132, %v2131
        %v2140 = vpack.c.b16 %v2134, %v2133
        %v2141 = vpack.c.b16 %v2136, %v2135
        %v2142 = vpack.c.b16 %v2138, %v2137
        %v2148 = vsel %vm1484, %v1100, 0
        %v2151 = vsel %vm1484, %v1101, 0
        %v2154 = vsel %vm1484, %v1102, 0
        %v2157 = vsel %vm1484, %v1103, 0
        %2159 = vmatprep.subr.bf16.mxu0 0
        %2160 = vmatpush1.bf16.msra.mxu0 %v2139
        %2161 = vmatprep.subr.bf16.mxu0 0
        %2162 = vmatpush1.bf16.msra.mxu0 %v2140
        %2163 = vmatprep.subr.bf16.mxu0 0
        %2164 = vmatpush1.bf16.msra.mxu0 %v2141
        %2165 = vmatprep.subr.bf16.mxu0 0
        %2166 = vmatpush1.bf16.msra.mxu0 %v2142
        %2167 = vmatprep.subr.bf16.mxu0 0
        %2168 = vmatpush1.bf16.msra.mxu0 0
        %2169 = vmatprep.subr.bf16.mxu0 0
        %2170 = vmatpush1.bf16.msra.mxu0 0
        %2171 = vmatprep.subr.bf16.mxu0 0
        %2172 = vmatpush1.bf16.msra.mxu0 0
        %2173 = vmatprep.subr.bf16.mxu0 0
        %2174 = vmatpush1.bf16.msra.mxu0 0
        %2175 = vmatprep.subr.bf16.mxu0 0
        %2176 = vmatpush1.bf16.msra.mxu0 0
        %2177 = vmatprep.subr.bf16.mxu0 0
        %2178 = vmatpush1.bf16.msra.mxu0 0
        %2179 = vmatprep.subr.bf16.mxu0 0
        %2180 = vmatpush1.bf16.msra.mxu0 0
        %2181 = vmatprep.subr.bf16.mxu0 0
        %2182 = vmatpush1.bf16.msra.mxu0 0
        %2183 = vmatprep.subr.bf16.mxu0 0
        %2184 = vmatpush1.bf16.msra.mxu0 0
        %2185 = vmatprep.subr.bf16.mxu0 0
        %2186 = vmatpush1.bf16.msra.mxu0 0
        %2187 = vmatprep.subr.bf16.mxu0 0
        %2188 = vmatpush1.bf16.msra.mxu0 0
        %2189 = vmatprep.subr.bf16.mxu0 0
        %2190 = vmatpush1.bf16.msra.mxu0 0
        %2191 = vmatprep.mubr.bf16.mxu0 0
        %2192 = vmatmul.mubr.bf16.gmra.mrb[0].mxu0 %v2148
        %v2193 = vpop.f32.mrb[0].mxu0
        %v2194 = vadd.f32 0.0, %v2193
        %v2195 = vpop.f32.mrb[0].mxu0
        %v2196 = vpop.f32.mrb[0].mxu0
        %v2197 = vadd.f32 0.0, %v2196
        %v2198 = vpop.f32.mrb[0].mxu0
        %2199 = vmatprep.mubr.bf16.mxu0 0
        %2200 = vmatmul.mubr.bf16.gmra.mrb[0].mxu0 %v2151
        %v2201 = vpop.f32.mrb[0].mxu0
        %v2202 = vadd.f32 0.0, %v2201
        %v2203 = vpop.f32.mrb[0].mxu0
        %v2204 = vpop.f32.mrb[0].mxu0
        %v2205 = vadd.f32 0.0, %v2204
        %v2206 = vpop.f32.mrb[0].mxu0
        %2207 = vmatprep.mubr.bf16.mxu0 0
        %2208 = vmatmul.mubr.bf16.gmra.mrb[0].mxu0 %v2154
        %v2209 = vpop.f32.mrb[0].mxu0
        %v2210 = vadd.f32 0.0, %v2209
        %v2211 = vpop.f32.mrb[0].mxu0
        %v2212 = vpop.f32.mrb[0].mxu0
        %v2213 = vadd.f32 0.0, %v2212
        %v2214 = vpop.f32.mrb[0].mxu0
        %2215 = vmatprep.mubr.bf16.mxu0 0
        %2216 = vmatmul.mubr.bf16.gmra.mrb[0].mxu0 %v2157
        %v2217 = vpop.f32.mrb[0].mxu0
        %v2218 = vadd.f32 0.0, %v2217
        %v2219 = vpop.f32.mrb[0].mxu0
        %v2220 = vpop.f32.mrb[0].mxu0
        %v2221 = vadd.f32 0.0, %v2220
        %v2222 = vpop.f32.mrb[0].mxu0
        %2223 = vdwg.mxu0
        %v2224 = vadd.f32 %v2085, %v2194
        %v2225 = vadd.f32 %v2088, %v2197
        %v2226 = vadd.f32 %v2093, %v2202
        %v2227 = vadd.f32 %v2096, %v2205
        %v2228 = vadd.f32 %v2101, %v2210
        %v2229 = vadd.f32 %v2104, %v2213
        %v2230 = vadd.f32 %v2109, %v2218
        %v2231 = vadd.f32 %v2112, %v2221
        %v2232 = vld [vmem:[%s885] sm:$0x1]
        %v2234 = vlaneseq
        %v2235 = vshrl.u32 %v2234, 7
        %v2236 = vsub.s32 0, %v2235
        %v2237 = vrot.slane %v2232, %v2236
        %v2239 = vadd.f32 %v2224, %v2237
        %v2240 = vadd.f32 %v2225, %v2237
        %v2241 = vadd.f32 %v2226, %v2237
        %v2242 = vadd.f32 %v2227, %v2237
        %v2243 = vadd.f32 %v2228, %v2237
        %v2244 = vadd.f32 %v2229, %v2237
        %v2245 = vadd.f32 %v2230, %v2237
        %v2246 = vadd.f32 %v2231, %v2237
        %v2247 = vsub.f32 0.0, %v2239
        %v2248 = vsub.f32 0.0, %v2240
        %v2249 = vsub.f32 0.0, %v2241
        %v2250 = vsub.f32 0.0, %v2242
        %v2251 = vsub.f32 0.0, %v2243
        %v2252 = vsub.f32 0.0, %v2244
        %v2253 = vsub.f32 0.0, %v2245
        %v2254 = vsub.f32 0.0, %v2246
        %2263 = vrot.lane.b32.xlu0 %v2247, 32
        %v2264 = vpop.permute.xlu0 %2263
        %2265 = vrot.lane.b32.xlu0 %v2248, 32
        %v2266 = vpop.permute.xlu0 %2265
        %2267 = vrot.lane.b32.xlu0 %v2249, 32
        %v2268 = vpop.permute.xlu0 %2267
        %2269 = vrot.lane.b32.xlu0 %v2250, 32
        %v2270 = vpop.permute.xlu0 %2269
        %2271 = vrot.lane.b32.xlu0 %v2251, 32
        %v2272 = vpop.permute.xlu0 %2271
        %2273 = vrot.lane.b32.xlu0 %v2252, 32
        %v2274 = vpop.permute.xlu0 %2273
        %2275 = vrot.lane.b32.xlu0 %v2253, 32
        %v2276 = vpop.permute.xlu0 %2275
        %2277 = vrot.lane.b32.xlu0 %v2254, 32
        %v2278 = vpop.permute.xlu0 %2277
        %v2287 = vsel %vm1043, %v2239, %v2264
        %v2288 = vsel %vm1043, %v2240, %v2266
        %v2289 = vsel %vm1043, %v2241, %v2268
        %v2290 = vsel %vm1043, %v2242, %v2270
        %v2291 = vsel %vm1043, %v2243, %v2272
        %v2292 = vsel %vm1043, %v2244, %v2274
        %v2293 = vsel %vm1043, %v2245, %v2276
        %v2294 = vsel %vm1043, %v2246, %v2278
        %vm2295 = vcmp.gt.f32.partialorder %v2287, 0.0
        %vm2296 = vcmp.gt.f32.partialorder %v2288, 0.0
        %vm2297 = vcmp.gt.f32.partialorder %v2289, 0.0
        %vm2298 = vcmp.gt.f32.partialorder %v2290, 0.0
        %vm2299 = vcmp.gt.f32.partialorder %v2291, 0.0
        %vm2300 = vcmp.gt.f32.partialorder %v2292, 0.0
        %vm2301 = vcmp.gt.f32.partialorder %v2293, 0.0
        %vm2302 = vcmp.gt.f32.partialorder %v2294, 0.0
        %v2303 = vmin.f32 %v2287, 0.0
        %v2304 = vmin.f32 %v2288, 0.0
        %v2305 = vmin.f32 %v2289, 0.0
        %v2306 = vmin.f32 %v2290, 0.0
        %v2307 = vmin.f32 %v2291, 0.0
        %v2308 = vmin.f32 %v2292, 0.0
        %v2309 = vmin.f32 %v2293, 0.0
        %v2310 = vmin.f32 %v2294, 0.0
        %v2311 = vmul.f32 %v2303, 1.442695
        %v2312 = vpow.pop %v2311
        %v2313 = vmul.f32 %v2304, 1.442695
        %v2314 = vpow.pop %v2313
        %v2315 = vmul.f32 %v2305, 1.442695
        %v2316 = vpow.pop %v2315
        %v2317 = vmul.f32 %v2306, 1.442695
        %v2318 = vpow.pop %v2317
        %v2319 = vmul.f32 %v2307, 1.442695
        %v2320 = vpow.pop %v2319
        %v2321 = vmul.f32 %v2308, 1.442695
        %v2322 = vpow.pop %v2321
        %v2323 = vmul.f32 %v2309, 1.442695
        %v2324 = vpow.pop %v2323
        %v2325 = vmul.f32 %v2310, 1.442695
        %v2326 = vpow.pop %v2325
        %v2327 = vsub.f32 %v2312, 1.0
        %v2328 = vsub.f32 %v2314, 1.0
        %v2329 = vsub.f32 %v2316, 1.0
        %v2330 = vsub.f32 %v2318, 1.0
        %v2331 = vsub.f32 %v2320, 1.0
        %v2332 = vsub.f32 %v2322, 1.0
        %v2333 = vsub.f32 %v2324, 1.0
        %v2334 = vsub.f32 %v2326, 1.0
        %v2335 = vsel %vm2295, %v2287, %v2327
        %v2336 = vsel %vm2296, %v2288, %v2328
        %v2337 = vsel %vm2297, %v2289, %v2329
        %v2338 = vsel %vm2298, %v2290, %v2330
        %v2339 = vsel %vm2299, %v2291, %v2331
        %v2340 = vsel %vm2300, %v2292, %v2332
        %v2341 = vsel %vm2301, %v2293, %v2333
        %v2342 = vsel %vm2302, %v2294, %v2334
        %v2343 = vpack.c.bf16 %v2335, %v2335
        %v2344 = vpack.c.bf16 %v2336, %v2336
        %v2345 = vpack.c.bf16 %v2337, %v2337
        %v2346 = vpack.c.bf16 %v2338, %v2338
        %v2347 = vpack.c.bf16 %v2339, %v2339
        %v2348 = vpack.c.bf16 %v2340, %v2340
        %v2349 = vpack.c.bf16 %v2341, %v2341
        %v2350 = vpack.c.bf16 %v2342, %v2342
        %2351 = vst.msk [vmem:[%s1216 + $0x4] sm:$0xf] %vm1217, %v2343
        %2352 = vst.msk [vmem:[%s1216 + $0x10] sm:$0xf] %vm1217, %v2344
        %2353 = vst.msk [vmem:[%s1216 + $0x1c] sm:$0xf] %vm1217, %v2345
        %2354 = vst.msk [vmem:[%s1216 + $0x28] sm:$0xf] %vm1217, %v2346
        %2355 = vst.msk [vmem:[%s1216 + $0x34] sm:$0xf] %vm1217, %v2347
        %2356 = vst.msk [vmem:[%s1216 + $0x40] sm:$0xf] %vm1217, %v2348
        %2357 = vst.msk [vmem:[%s1216 + $0x4c] sm:$0xf] %vm1217, %v2349
        %2358 = vst.msk [vmem:[%s1216 + $0x58] sm:$0xf] %vm1217, %v2350
        %v2359 = vld [vmem:[#allocation2] sm:$0x8]
        %v2360 = vld [vmem:[#allocation2 + $0x4] sm:$0xf]
        %v2361 = vld [vmem:[#allocation2 + $0xc] sm:$0x8]
        %v2362 = vld [vmem:[#allocation2 + $0x10] sm:$0xf]
        %v2363 = vld [vmem:[#allocation2 + $0x18] sm:$0x8]
        %v2364 = vld [vmem:[#allocation2 + $0x1c] sm:$0xf]
        %v2365 = vld [vmem:[#allocation2 + $0x24] sm:$0x8]
        %v2366 = vld [vmem:[#allocation2 + $0x28] sm:$0xf]
        %v2367 = vld [vmem:[#allocation2 + $0x30] sm:$0x8]
        %v2368 = vld [vmem:[#allocation2 + $0x34] sm:$0xf]
        %v2369 = vld [vmem:[#allocation2 + $0x3c] sm:$0x8]
        %v2370 = vld [vmem:[#allocation2 + $0x40] sm:$0xf]
        %v2371 = vld [vmem:[#allocation2 + $0x48] sm:$0x8]
        %v2372 = vld [vmem:[#allocation2 + $0x4c] sm:$0xf]
        %v2373 = vld [vmem:[#allocation2 + $0x54] sm:$0x8]
        %v2374 = vld [vmem:[#allocation2 + $0x58] sm:$0xf]
        %v2376 = vshrl.u32 %v2359, 16
        %v2378 = vrot.slane %v2376, 7
        %v2379 = vrot.slane %v2378, 4
        %v2381 = vshrl.u32 %v2360, 16
        %v2383 = vrot.slane %v2381, 7
        %v2384 = vshll.u32 %v2360, 16
        %v2386 = vor.u32 %v2383, %v2384
        %v2387 = vsel %vm1244, %v2379, %v2386
        %v2389 = vshrl.u32 %v2361, 16
        %v2391 = vrot.slane %v2389, 7
        %v2392 = vrot.slane %v2391, 4
        %v2394 = vshrl.u32 %v2362, 16
        %v2396 = vrot.slane %v2394, 7
        %v2397 = vshll.u32 %v2362, 16
        %v2399 = vor.u32 %v2396, %v2397
        %v2400 = vsel %vm1244, %v2392, %v2399
        %v2402 = vshrl.u32 %v2363, 16
        %v2404 = vrot.slane %v2402, 7
        %v2405 = vrot.slane %v2404, 4
        %v2407 = vshrl.u32 %v2364, 16
        %v2409 = vrot.slane %v2407, 7
        %v2410 = vshll.u32 %v2364, 16
        %v2412 = vor.u32 %v2409, %v2410
        %v2413 = vsel %vm1244, %v2405, %v2412
        %v2415 = vshrl.u32 %v2365, 16
        %v2417 = vrot.slane %v2415, 7
        %v2418 = vrot.slane %v2417, 4
        %v2420 = vshrl.u32 %v2366, 16
        %v2422 = vrot.slane %v2420, 7
        %v2423 = vshll.u32 %v2366, 16
        %v2425 = vor.u32 %v2422, %v2423
        %v2426 = vsel %vm1244, %v2418, %v2425
        %v2428 = vshrl.u32 %v2367, 16
        %v2430 = vrot.slane %v2428, 7
        %v2431 = vrot.slane %v2430, 4
        %v2433 = vshrl.u32 %v2368, 16
        %v2435 = vrot.slane %v2433, 7
        %v2436 = vshll.u32 %v2368, 16
        %v2438 = vor.u32 %v2435, %v2436
        %v2439 = vsel %vm1244, %v2431, %v2438
        %v2441 = vshrl.u32 %v2369, 16
        %v2443 = vrot.slane %v2441, 7
        %v2444 = vrot.slane %v2443, 4
        %v2446 = vshrl.u32 %v2370, 16
        %v2448 = vrot.slane %v2446, 7
        %v2449 = vshll.u32 %v2370, 16
        %v2451 = vor.u32 %v2448, %v2449
        %v2452 = vsel %vm1244, %v2444, %v2451
        %v2454 = vshrl.u32 %v2371, 16
        %v2456 = vrot.slane %v2454, 7
        %v2457 = vrot.slane %v2456, 4
        %v2459 = vshrl.u32 %v2372, 16
        %v2461 = vrot.slane %v2459, 7
        %v2462 = vshll.u32 %v2372, 16
        %v2464 = vor.u32 %v2461, %v2462
        %v2465 = vsel %vm1244, %v2457, %v2464
        %v2467 = vshrl.u32 %v2373, 16
        %v2469 = vrot.slane %v2467, 7
        %v2470 = vrot.slane %v2469, 4
        %v2472 = vshrl.u32 %v2374, 16
        %v2474 = vrot.slane %v2472, 7
        %v2475 = vshll.u32 %v2374, 16
        %v2477 = vor.u32 %v2474, %v2475
        %v2478 = vsel %vm1244, %v2470, %v2477
        %v2479 = vld [vmem:[#allocation2 + $0x8] sm:$0x1]
        %v2480 = vld [vmem:[#allocation2 + $0x14] sm:$0x1]
        %v2481 = vld [vmem:[#allocation2 + $0x20] sm:$0x1]
        %v2482 = vld [vmem:[#allocation2 + $0x2c] sm:$0x1]
        %v2483 = vld [vmem:[#allocation2 + $0x38] sm:$0x1]
        %v2484 = vld [vmem:[#allocation2 + $0x44] sm:$0x1]
        %v2485 = vld [vmem:[#allocation2 + $0x50] sm:$0x1]
        %v2486 = vld [vmem:[#allocation2 + $0x5c] sm:$0x1]
        %v2487 = vrot.slane %v2381, 4
        %v2488 = vrot.slane %v2384, 5
        %v2489 = vor.u32 %v2487, %v2488
        %v2490 = vrot.slane %v2489, 4
        %v2492 = vshll.u32 %v2479, 16
        %v2494 = vrot.slane %v2492, 5
        %v2495 = vsel %vm1359, %v2490, %v2494
        %v2496 = vrot.slane %v2394, 4
        %v2497 = vrot.slane %v2397, 5
        %v2498 = vor.u32 %v2496, %v2497
        %v2499 = vrot.slane %v2498, 4
        %v2501 = vshll.u32 %v2480, 16
        %v2503 = vrot.slane %v2501, 5
        %v2504 = vsel %vm1359, %v2499, %v2503
        %v2505 = vrot.slane %v2407, 4
        %v2506 = vrot.slane %v2410, 5
        %v2507 = vor.u32 %v2505, %v2506
        %v2508 = vrot.slane %v2507, 4
        %v2510 = vshll.u32 %v2481, 16
        %v2512 = vrot.slane %v2510, 5
        %v2513 = vsel %vm1359, %v2508, %v2512
        %v2514 = vrot.slane %v2420, 4
        %v2515 = vrot.slane %v2423, 5
        %v2516 = vor.u32 %v2514, %v2515
        %v2517 = vrot.slane %v2516, 4
        %v2519 = vshll.u32 %v2482, 16
        %v2521 = vrot.slane %v2519, 5
        %v2522 = vsel %vm1359, %v2517, %v2521
        %v2523 = vrot.slane %v2433, 4
        %v2524 = vrot.slane %v2436, 5
        %v2525 = vor.u32 %v2523, %v2524
        %v2526 = vrot.slane %v2525, 4
        %v2528 = vshll.u32 %v2483, 16
        %v2530 = vrot.slane %v2528, 5
        %v2531 = vsel %vm1359, %v2526, %v2530
        %v2532 = vrot.slane %v2446, 4
        %v2533 = vrot.slane %v2449, 5
        %v2534 = vor.u32 %v2532, %v2533
        %v2535 = vrot.slane %v2534, 4
        %v2537 = vshll.u32 %v2484, 16
        %v2539 = vrot.slane %v2537, 5
        %v2540 = vsel %vm1359, %v2535, %v2539
        %v2541 = vrot.slane %v2459, 4
        %v2542 = vrot.slane %v2462, 5
        %v2543 = vor.u32 %v2541, %v2542
        %v2544 = vrot.slane %v2543, 4
        %v2546 = vshll.u32 %v2485, 16
        %v2548 = vrot.slane %v2546, 5
        %v2549 = vsel %vm1359, %v2544, %v2548
        %v2550 = vrot.slane %v2472, 4
        %v2551 = vrot.slane %v2475, 5
        %v2552 = vor.u32 %v2550, %v2551
        %v2553 = vrot.slane %v2552, 4
        %v2555 = vshll.u32 %v2486, 16
        %v2557 = vrot.slane %v2555, 5
        %v2558 = vsel %vm1359, %v2553, %v2557
        %v2559 = vunpack.c.l.b16 %v2387
        %v2560 = vunpack.c.l.b16 %v2400
        %v2561 = vunpack.c.l.b16 %v2413
        %v2562 = vunpack.c.l.b16 %v2426
        %v2563 = vunpack.c.l.b16 %v2439
        %v2564 = vunpack.c.l.b16 %v2452
        %v2565 = vunpack.c.l.b16 %v2465
        %v2566 = vunpack.c.l.b16 %v2478
        %v2567 = vpack.c.b16 %v2560, %v2559
        %v2568 = vpack.c.b16 %v2562, %v2561
        %v2569 = vpack.c.b16 %v2564, %v2563
        %v2570 = vpack.c.b16 %v2566, %v2565
        %v2579 = vunpack.c.l.b16 %v2360
        %v2580 = vunpack.c.l.b16 %v2362
        %v2581 = vunpack.c.l.b16 %v2364
        %v2582 = vunpack.c.l.b16 %v2366
        %v2583 = vunpack.c.l.b16 %v2368
        %v2584 = vunpack.c.l.b16 %v2370
        %v2585 = vunpack.c.l.b16 %v2372
        %v2586 = vunpack.c.l.b16 %v2374
        %v2587 = vpack.c.b16 %v2580, %v2579
        %v2588 = vpack.c.b16 %v2582, %v2581
        %v2589 = vpack.c.b16 %v2584, %v2583
        %v2590 = vpack.c.b16 %v2586, %v2585
        %2591 = vrot.lane.b32.xlu0 %v2587, 64
        %v2592 = vpop.permute.xlu0 %2591
        %2593 = vrot.lane.b32.xlu0 %v2588, 64
        %v2594 = vpop.permute.xlu0 %2593
        %2595 = vrot.lane.b32.xlu0 %v2589, 64
        %v2596 = vpop.permute.xlu0 %2595
        %2597 = vrot.lane.b32.xlu0 %v2590, 64
        %v2598 = vpop.permute.xlu0 %2597
        %v2599 = vunpack.c.l.b16 %v2495
        %v2600 = vunpack.c.l.b16 %v2504
        %v2601 = vunpack.c.l.b16 %v2513
        %v2602 = vunpack.c.l.b16 %v2522
        %v2603 = vunpack.c.l.b16 %v2531
        %v2604 = vunpack.c.l.b16 %v2540
        %v2605 = vunpack.c.l.b16 %v2549
        %v2606 = vunpack.c.l.b16 %v2558
        %v2607 = vpack.c.b16 %v2600, %v2599
        %v2608 = vpack.c.b16 %v2602, %v2601
        %v2609 = vpack.c.b16 %v2604, %v2603
        %v2610 = vpack.c.b16 %v2606, %v2605
        %v2613 = vsel %vm1484, %v2567, %v2592
        %v2617 = vsel %vm1484, %v2568, %v2594
        %v2621 = vsel %vm1484, %v2569, %v2596
        %v2625 = vsel %vm1484, %v2570, %v2598
        %v2627 = vld [vmem:[%s1216] sm:$0x8]
        %v2628 = vld [vmem:[%s1216 + $0x4] sm:$0xf]
        %v2629 = vld [vmem:[%s1216 + $0xc] sm:$0x8]
        %v2630 = vld [vmem:[%s1216 + $0x10] sm:$0xf]
        %v2631 = vld [vmem:[%s1216 + $0x18] sm:$0x8]
        %v2632 = vld [vmem:[%s1216 + $0x1c] sm:$0xf]
        %v2633 = vld [vmem:[%s1216 + $0x24] sm:$0x8]
        %v2634 = vld [vmem:[%s1216 + $0x28] sm:$0xf]
        %v2635 = vld [vmem:[%s1216 + $0x30] sm:$0x8]
        %v2636 = vld [vmem:[%s1216 + $0x34] sm:$0xf]
        %v2637 = vld [vmem:[%s1216 + $0x3c] sm:$0x8]
        %v2638 = vld [vmem:[%s1216 + $0x40] sm:$0xf]
        %v2639 = vld [vmem:[%s1216 + $0x48] sm:$0x8]
        %v2640 = vld [vmem:[%s1216 + $0x4c] sm:$0xf]
        %v2641 = vld [vmem:[%s1216 + $0x54] sm:$0x8]
        %v2642 = vld [vmem:[%s1216 + $0x58] sm:$0xf]
        %v2644 = vshrl.u32 %v2627, 16
        %v2646 = vrot.slane %v2644, 7
        %v2647 = vrot.slane %v2646, 4
        %v2649 = vshrl.u32 %v2628, 16
        %v2651 = vrot.slane %v2649, 7
        %v2652 = vshll.u32 %v2628, 16
        %v2654 = vor.u32 %v2651, %v2652
        %v2655 = vsel %vm1244, %v2647, %v2654
        %v2657 = vshrl.u32 %v2629, 16
        %v2659 = vrot.slane %v2657, 7
        %v2660 = vrot.slane %v2659, 4
        %v2662 = vshrl.u32 %v2630, 16
        %v2664 = vrot.slane %v2662, 7
        %v2665 = vshll.u32 %v2630, 16
        %v2667 = vor.u32 %v2664, %v2665
        %v2668 = vsel %vm1244, %v2660, %v2667
        %v2670 = vshrl.u32 %v2631, 16
        %v2672 = vrot.slane %v2670, 7
        %v2673 = vrot.slane %v2672, 4
        %v2675 = vshrl.u32 %v2632, 16
        %v2677 = vrot.slane %v2675, 7
        %v2678 = vshll.u32 %v2632, 16
        %v2680 = vor.u32 %v2677, %v2678
        %v2681 = vsel %vm1244, %v2673, %v2680
        %v2683 = vshrl.u32 %v2633, 16
        %v2685 = vrot.slane %v2683, 7
        %v2686 = vrot.slane %v2685, 4
        %v2688 = vshrl.u32 %v2634, 16
        %v2690 = vrot.slane %v2688, 7
        %v2691 = vshll.u32 %v2634, 16
        %v2693 = vor.u32 %v2690, %v2691
        %v2694 = vsel %vm1244, %v2686, %v2693
        %v2696 = vshrl.u32 %v2635, 16
        %v2698 = vrot.slane %v2696, 7
        %v2699 = vrot.slane %v2698, 4
        %v2701 = vshrl.u32 %v2636, 16
        %v2703 = vrot.slane %v2701, 7
        %v2704 = vshll.u32 %v2636, 16
        %v2706 = vor.u32 %v2703, %v2704
        %v2707 = vsel %vm1244, %v2699, %v2706
        %v2709 = vshrl.u32 %v2637, 16
        %v2711 = vrot.slane %v2709, 7
        %v2712 = vrot.slane %v2711, 4
        %v2714 = vshrl.u32 %v2638, 16
        %v2716 = vrot.slane %v2714, 7
        %v2717 = vshll.u32 %v2638, 16
        %v2719 = vor.u32 %v2716, %v2717
        %v2720 = vsel %vm1244, %v2712, %v2719
        %v2722 = vshrl.u32 %v2639, 16
        %v2724 = vrot.slane %v2722, 7
        %v2725 = vrot.slane %v2724, 4
        %v2727 = vshrl.u32 %v2640, 16
        %v2729 = vrot.slane %v2727, 7
        %v2730 = vshll.u32 %v2640, 16
        %v2732 = vor.u32 %v2729, %v2730
        %v2733 = vsel %vm1244, %v2725, %v2732
        %v2735 = vshrl.u32 %v2641, 16
        %v2737 = vrot.slane %v2735, 7
        %v2738 = vrot.slane %v2737, 4
        %v2740 = vshrl.u32 %v2642, 16
        %v2742 = vrot.slane %v2740, 7
        %v2743 = vshll.u32 %v2642, 16
        %v2745 = vor.u32 %v2742, %v2743
        %v2746 = vsel %vm1244, %v2738, %v2745
        %v2747 = vld [vmem:[%s1216 + $0x8] sm:$0x1]
        %v2748 = vld [vmem:[%s1216 + $0x14] sm:$0x1]
        %v2749 = vld [vmem:[%s1216 + $0x20] sm:$0x1]
        %v2750 = vld [vmem:[%s1216 + $0x2c] sm:$0x1]
        %v2751 = vld [vmem:[%s1216 + $0x38] sm:$0x1]
        %v2752 = vld [vmem:[%s1216 + $0x44] sm:$0x1]
        %v2753 = vld [vmem:[%s1216 + $0x50] sm:$0x1]
        %v2754 = vld [vmem:[%s1216 + $0x5c] sm:$0x1]
        %v2755 = vrot.slane %v2649, 4
        %v2756 = vrot.slane %v2652, 5
        %v2757 = vor.u32 %v2755, %v2756
        %v2758 = vrot.slane %v2757, 4
        %v2760 = vshll.u32 %v2747, 16
        %v2762 = vrot.slane %v2760, 5
        %v2763 = vsel %vm1359, %v2758, %v2762
        %v2764 = vrot.slane %v2662, 4
        %v2765 = vrot.slane %v2665, 5
        %v2766 = vor.u32 %v2764, %v2765
        %v2767 = vrot.slane %v2766, 4
        %v2769 = vshll.u32 %v2748, 16
        %v2771 = vrot.slane %v2769, 5
        %v2772 = vsel %vm1359, %v2767, %v2771
        %v2773 = vrot.slane %v2675, 4
        %v2774 = vrot.slane %v2678, 5
        %v2775 = vor.u32 %v2773, %v2774
        %v2776 = vrot.slane %v2775, 4
        %v2778 = vshll.u32 %v2749, 16
        %v2780 = vrot.slane %v2778, 5
        %v2781 = vsel %vm1359, %v2776, %v2780
        %v2782 = vrot.slane %v2688, 4
        %v2783 = vrot.slane %v2691, 5
        %v2784 = vor.u32 %v2782, %v2783
        %v2785 = vrot.slane %v2784, 4
        %v2787 = vshll.u32 %v2750, 16
        %v2789 = vrot.slane %v2787, 5
        %v2790 = vsel %vm1359, %v2785, %v2789
        %v2791 = vrot.slane %v2701, 4
        %v2792 = vrot.slane %v2704, 5
        %v2793 = vor.u32 %v2791, %v2792
        %v2794 = vrot.slane %v2793, 4
        %v2796 = vshll.u32 %v2751, 16
        %v2798 = vrot.slane %v2796, 5
        %v2799 = vsel %vm1359, %v2794, %v2798
        %v2800 = vrot.slane %v2714, 4
        %v2801 = vrot.slane %v2717, 5
        %v2802 = vor.u32 %v2800, %v2801
        %v2803 = vrot.slane %v2802, 4
        %v2805 = vshll.u32 %v2752, 16
        %v2807 = vrot.slane %v2805, 5
        %v2808 = vsel %vm1359, %v2803, %v2807
        %v2809 = vrot.slane %v2727, 4
        %v2810 = vrot.slane %v2730, 5
        %v2811 = vor.u32 %v2809, %v2810
        %v2812 = vrot.slane %v2811, 4
        %v2814 = vshll.u32 %v2753, 16
        %v2816 = vrot.slane %v2814, 5
        %v2817 = vsel %vm1359, %v2812, %v2816
        %v2818 = vrot.slane %v2740, 4
        %v2819 = vrot.slane %v2743, 5
        %v2820 = vor.u32 %v2818, %v2819
        %v2821 = vrot.slane %v2820, 4
        %v2823 = vshll.u32 %v2754, 16
        %v2825 = vrot.slane %v2823, 5
        %v2826 = vsel %vm1359, %v2821, %v2825
        %v2827 = vunpack.c.l.b16 %v2655
        %v2828 = vunpack.c.l.b16 %v2668
        %v2829 = vunpack.c.l.b16 %v2681
        %v2830 = vunpack.c.l.b16 %v2694
        %v2831 = vunpack.c.l.b16 %v2707
        %v2832 = vunpack.c.l.b16 %v2720
        %v2833 = vunpack.c.l.b16 %v2733
        %v2834 = vunpack.c.l.b16 %v2746
        %v2835 = vpack.c.b16 %v2828, %v2827
        %v2836 = vpack.c.b16 %v2830, %v2829
        %v2837 = vpack.c.b16 %v2832, %v2831
        %v2838 = vpack.c.b16 %v2834, %v2833
        %v2847 = vunpack.c.l.b16 %v2628
        %v2848 = vunpack.c.l.b16 %v2630
        %v2849 = vunpack.c.l.b16 %v2632
        %v2850 = vunpack.c.l.b16 %v2634
        %v2851 = vunpack.c.l.b16 %v2636
        %v2852 = vunpack.c.l.b16 %v2638
        %v2853 = vunpack.c.l.b16 %v2640
        %v2854 = vunpack.c.l.b16 %v2642
        %v2855 = vpack.c.b16 %v2848, %v2847
        %v2856 = vpack.c.b16 %v2850, %v2849
        %v2857 = vpack.c.b16 %v2852, %v2851
        %v2858 = vpack.c.b16 %v2854, %v2853
        %2859 = vrot.lane.b32.xlu0 %v2855, 64
        %v2860 = vpop.permute.xlu0 %2859
        %2861 = vrot.lane.b32.xlu0 %v2856, 64
        %v2862 = vpop.permute.xlu0 %2861
        %2863 = vrot.lane.b32.xlu0 %v2857, 64
        %v2864 = vpop.permute.xlu0 %2863
        %2865 = vrot.lane.b32.xlu0 %v2858, 64
        %v2866 = vpop.permute.xlu0 %2865
        %v2867 = vunpack.c.l.b16 %v2763
        %v2868 = vunpack.c.l.b16 %v2772
        %v2869 = vunpack.c.l.b16 %v2781
        %v2870 = vunpack.c.l.b16 %v2790
        %v2871 = vunpack.c.l.b16 %v2799
        %v2872 = vunpack.c.l.b16 %v2808
        %v2873 = vunpack.c.l.b16 %v2817
        %v2874 = vunpack.c.l.b16 %v2826
        %v2875 = vpack.c.b16 %v2868, %v2867
        %v2876 = vpack.c.b16 %v2870, %v2869
        %v2877 = vpack.c.b16 %v2872, %v2871
        %v2878 = vpack.c.b16 %v2874, %v2873
        %v2881 = vsel %vm1484, %v2835, %v2860
        %v2885 = vsel %vm1484, %v2836, %v2862
        %v2889 = vsel %vm1484, %v2837, %v2864
        %v2893 = vsel %vm1484, %v2838, %v2866
        %v2895 = vld [vmem:[%s890] sm:$0xf]
        %v2896 = vld [vmem:[%s890 + $0x4] sm:$0xf]
        %v2897 = vld [vmem:[%s890 + $0x8] sm:$0xf]
        %v2898 = vld [vmem:[%s890 + $0xc] sm:$0xf]
        %v2899 = vld [vmem:[%s890 + $0x10] sm:$0xf]
        %v2900 = vld [vmem:[%s890 + $0x14] sm:$0xf]
        %v2901 = vld [vmem:[%s890 + $0x18] sm:$0xf]
        %v2902 = vld [vmem:[%s890 + $0x1c] sm:$0xf]
        %v2903 = vld [vmem:[%s890 + $0x20] sm:$0xf]
        %v2904 = vld [vmem:[%s890 + $0x24] sm:$0xf]
        %v2905 = vld [vmem:[%s890 + $0x28] sm:$0xf]
        %v2906 = vld [vmem:[%s890 + $0x2c] sm:$0xf]
        %v2907 = vld [vmem:[%s890 + $0x30] sm:$0xf]
        %v2908 = vld [vmem:[%s890 + $0x34] sm:$0xf]
        %v2909 = vld [vmem:[%s890 + $0x38] sm:$0xf]
        %v2910 = vld [vmem:[%s890 + $0x3c] sm:$0xf]
        %v2911 = vld [vmem:[%s890 + $0x40] sm:$0xf]
        %v2912 = vld [vmem:[%s890 + $0x44] sm:$0xf]
        %v2913 = vld [vmem:[%s890 + $0x48] sm:$0xf]
        %v2914 = vld [vmem:[%s890 + $0x4c] sm:$0xf]
        %v2915 = vld [vmem:[%s890 + $0x50] sm:$0xf]
        %v2916 = vld [vmem:[%s890 + $0x54] sm:$0xf]
        %v2917 = vld [vmem:[%s890 + $0x58] sm:$0xf]
        %v2918 = vld [vmem:[%s890 + $0x5c] sm:$0xf]
        %s2919 = scalar_lea.vmem %s890, 192
        %v2920 = vld [vmem:[%s2919] sm:$0xf]
        %v2921 = vld [vmem:[%s2919 + $0x4] sm:$0xf]
        %v2922 = vld [vmem:[%s2919 + $0x8] sm:$0xf]
        %v2923 = vld [vmem:[%s2919 + $0xc] sm:$0xf]
        %v2924 = vld [vmem:[%s2919 + $0x10] sm:$0xf]
        %v2925 = vld [vmem:[%s2919 + $0x14] sm:$0xf]
        %v2926 = vld [vmem:[%s2919 + $0x18] sm:$0xf]
        %v2927 = vld [vmem:[%s2919 + $0x1c] sm:$0xf]
        %v2928 = vld [vmem:[%s2919 + $0x20] sm:$0xf]
        %v2929 = vld [vmem:[%s2919 + $0x24] sm:$0xf]
        %v2930 = vld [vmem:[%s2919 + $0x28] sm:$0xf]
        %v2931 = vld [vmem:[%s2919 + $0x2c] sm:$0xf]
        %v2932 = vld [vmem:[%s2919 + $0x30] sm:$0xf]
        %v2933 = vld [vmem:[%s2919 + $0x34] sm:$0xf]
        %v2934 = vld [vmem:[%s2919 + $0x38] sm:$0xf]
        %v2935 = vld [vmem:[%s2919 + $0x3c] sm:$0xf]
        %v2936 = vld [vmem:[%s2919 + $0x40] sm:$0xf]
        %v2937 = vld [vmem:[%s2919 + $0x44] sm:$0xf]
        %v2938 = vld [vmem:[%s2919 + $0x48] sm:$0xf]
        %v2939 = vld [vmem:[%s2919 + $0x4c] sm:$0xf]
        %v2940 = vld [vmem:[%s2919 + $0x50] sm:$0xf]
        %v2941 = vld [vmem:[%s2919 + $0x54] sm:$0xf]
        %v2942 = vld [vmem:[%s2919 + $0x58] sm:$0xf]
        %v2943 = vld [vmem:[%s2919 + $0x5c] sm:$0xf]
        %v2968 = vunpack.c.l.b16 %v2920
        %v2969 = vunpack.c.l.b16 %v2921
        %v2970 = vunpack.c.l.b16 %v2922
        %v2971 = vunpack.c.l.b16 %v2923
        %v2972 = vunpack.c.l.b16 %v2924
        %v2973 = vunpack.c.l.b16 %v2925
        %v2974 = vunpack.c.l.b16 %v2926
        %v2975 = vunpack.c.l.b16 %v2927
        %v2976 = vunpack.c.l.b16 %v2928
        %v2977 = vunpack.c.l.b16 %v2929
        %v2978 = vunpack.c.l.b16 %v2930
        %v2979 = vunpack.c.l.b16 %v2931
        %v2980 = vunpack.c.l.b16 %v2932
        %v2981 = vunpack.c.l.b16 %v2933
        %v2982 = vunpack.c.l.b16 %v2934
        %v2983 = vunpack.c.l.b16 %v2935
        %v2984 = vunpack.c.l.b16 %v2936
        %v2985 = vunpack.c.l.b16 %v2937
        %v2986 = vunpack.c.l.b16 %v2938
        %v2987 = vunpack.c.l.b16 %v2939
        %v2988 = vunpack.c.l.b16 %v2940
        %v2989 = vunpack.c.l.b16 %v2941
        %v2990 = vunpack.c.l.b16 %v2942
        %v2991 = vunpack.c.l.b16 %v2943
        %v2992 = vpack.c.b16 %v2969, %v2968
        %v2993 = vpack.c.b16 %v2971, %v2970
        %v2994 = vpack.c.b16 %v2973, %v2972
        %v2995 = vpack.c.b16 %v2975, %v2974
        %v2996 = vpack.c.b16 %v2977, %v2976
        %v2997 = vpack.c.b16 %v2979, %v2978
        %v2998 = vpack.c.b16 %v2981, %v2980
        %v2999 = vpack.c.b16 %v2983, %v2982
        %v3000 = vpack.c.b16 %v2985, %v2984
        %v3001 = vpack.c.b16 %v2987, %v2986
        %v3002 = vpack.c.b16 %v2989, %v2988
        %v3003 = vpack.c.b16 %v2991, %v2990
        %v3017 = vsel %vm1484, %v2875, 0
        %v3020 = vsel %vm1484, %v2876, 0
        %v3023 = vsel %vm1484, %v2877, 0
        %v3026 = vsel %vm1484, %v2878, 0
        %3028 = vmatprep.subr.bf16.mxu0 0
        %3029 = vmatpush1.bf16.msra.mxu0 %v2992
        %3030 = vmatprep.subr.bf16.mxu0 0
        %3031 = vmatpush1.bf16.msra.mxu0 %v2993
        %3032 = vmatprep.subr.bf16.mxu0 0
        %3033 = vmatpush1.bf16.msra.mxu0 %v2994
        %3034 = vmatprep.subr.bf16.mxu0 0
        %3035 = vmatpush1.bf16.msra.mxu0 %v2995
        %3036 = vmatprep.subr.bf16.mxu0 0
        %3037 = vmatpush1.bf16.msra.mxu0 %v2996
        %3038 = vmatprep.subr.bf16.mxu0 0
        %3039 = vmatpush1.bf16.msra.mxu0 %v2997
        %3040 = vmatprep.subr.bf16.mxu0 0
        %3041 = vmatpush1.bf16.msra.mxu0 %v2998
        %3042 = vmatprep.subr.bf16.mxu0 0
        %3043 = vmatpush1.bf16.msra.mxu0 %v2999
        %3044 = vmatprep.subr.bf16.mxu0 0
        %3045 = vmatpush1.bf16.msra.mxu0 %v3000
        %3046 = vmatprep.subr.bf16.mxu0 0
        %3047 = vmatpush1.bf16.msra.mxu0 %v3001
        %3048 = vmatprep.subr.bf16.mxu0 0
        %3049 = vmatpush1.bf16.msra.mxu0 %v3002
        %3050 = vmatprep.subr.bf16.mxu0 0
        %3051 = vmatpush1.bf16.msra.mxu0 %v3003
        %3052 = vmatprep.subr.bf16.mxu0 0
        %3053 = vmatpush1.bf16.msra.mxu0 0
        %3054 = vmatprep.subr.bf16.mxu0 0
        %3055 = vmatpush1.bf16.msra.mxu0 0
        %3056 = vmatprep.subr.bf16.mxu0 0
        %3057 = vmatpush1.bf16.msra.mxu0 0
        %3058 = vmatprep.subr.bf16.mxu0 0
        %3059 = vmatpush1.bf16.msra.mxu0 0
        %3060 = vmatprep.mubr.bf16.mxu0 %v3017
        %3061 = vmatmul.mubr.bf16.gmra.mrb[0].mxu0 %v2881
        %v3062 = vpop.f32.mrb[0].mxu0
        %v3063 = vadd.f32 0.0, %v3062
        %v3064 = vpop.f32.mrb[0].mxu0
        %v3065 = vpop.f32.mrb[0].mxu0
        %v3066 = vadd.f32 0.0, %v3065
        %v3067 = vpop.f32.mrb[0].mxu0
        %3068 = vmatprep.mubr.bf16.mxu0 %v3020
        %3069 = vmatmul.mubr.bf16.gmra.mrb[0].mxu0 %v2885
        %v3070 = vpop.f32.mrb[0].mxu0
        %v3071 = vadd.f32 0.0, %v3070
        %v3072 = vpop.f32.mrb[0].mxu0
        %v3073 = vpop.f32.mrb[0].mxu0
        %v3074 = vadd.f32 0.0, %v3073
        %v3075 = vpop.f32.mrb[0].mxu0
        %3076 = vmatprep.mubr.bf16.mxu0 %v3023
        %3077 = vmatmul.mubr.bf16.gmra.mrb[0].mxu0 %v2889
        %v3078 = vpop.f32.mrb[0].mxu0
        %v3079 = vadd.f32 0.0, %v3078
        %v3080 = vpop.f32.mrb[0].mxu0
        %v3081 = vpop.f32.mrb[0].mxu0
        %v3082 = vadd.f32 0.0, %v3081
        %v3083 = vpop.f32.mrb[0].mxu0
        %3084 = vmatprep.mubr.bf16.mxu0 %v3026
        %3085 = vmatmul.mubr.bf16.gmra.mrb[0].mxu0 %v2893
        %v3086 = vpop.f32.mrb[0].mxu0
        %v3087 = vadd.f32 0.0, %v3086
        %v3088 = vpop.f32.mrb[0].mxu0
        %v3089 = vpop.f32.mrb[0].mxu0
        %v3090 = vadd.f32 0.0, %v3089
        %v3091 = vpop.f32.mrb[0].mxu0
        %3092 = vdwg.mxu0
        %v3117 = vunpack.c.l.b16 %v2895
        %v3118 = vunpack.c.l.b16 %v2896
        %v3119 = vunpack.c.l.b16 %v2897
        %v3120 = vunpack.c.l.b16 %v2898
        %v3121 = vunpack.c.l.b16 %v2899
        %v3122 = vunpack.c.l.b16 %v2900
        %v3123 = vunpack.c.l.b16 %v2901
        %v3124 = vunpack.c.l.b16 %v2902
        %v3125 = vunpack.c.l.b16 %v2903
        %v3126 = vunpack.c.l.b16 %v2904
        %v3127 = vunpack.c.l.b16 %v2905
        %v3128 = vunpack.c.l.b16 %v2906
        %v3129 = vunpack.c.l.b16 %v2907
        %v3130 = vunpack.c.l.b16 %v2908
        %v3131 = vunpack.c.l.b16 %v2909
        %v3132 = vunpack.c.l.b16 %v2910
        %v3133 = vunpack.c.l.b16 %v2911
        %v3134 = vunpack.c.l.b16 %v2912
        %v3135 = vunpack.c.l.b16 %v2913
        %v3136 = vunpack.c.l.b16 %v2914
        %v3137 = vunpack.c.l.b16 %v2915
        %v3138 = vunpack.c.l.b16 %v2916
        %v3139 = vunpack.c.l.b16 %v2917
        %v3140 = vunpack.c.l.b16 %v2918
        %v3141 = vpack.c.b16 %v3118, %v3117
        %v3142 = vpack.c.b16 %v3120, %v3119
        %v3143 = vpack.c.b16 %v3122, %v3121
        %v3144 = vpack.c.b16 %v3124, %v3123
        %v3145 = vpack.c.b16 %v3126, %v3125
        %v3146 = vpack.c.b16 %v3128, %v3127
        %v3147 = vpack.c.b16 %v3130, %v3129
        %v3148 = vpack.c.b16 %v3132, %v3131
        %v3149 = vpack.c.b16 %v3134, %v3133
        %v3150 = vpack.c.b16 %v3136, %v3135
        %v3151 = vpack.c.b16 %v3138, %v3137
        %v3152 = vpack.c.b16 %v3140, %v3139
        %v3166 = vsel %vm1484, %v2607, 0
        %v3169 = vsel %vm1484, %v2608, 0
        %v3172 = vsel %vm1484, %v2609, 0
        %v3175 = vsel %vm1484, %v2610, 0
        %3177 = vmatprep.subr.bf16.mxu0 0
        %3178 = vmatpush1.bf16.msra.mxu0 %v3141
        %3179 = vmatprep.subr.bf16.mxu0 0
        %3180 = vmatpush1.bf16.msra.mxu0 %v3142
        %3181 = vmatprep.subr.bf16.mxu0 0
        %3182 = vmatpush1.bf16.msra.mxu0 %v3143
        %3183 = vmatprep.subr.bf16.mxu0 0
        %3184 = vmatpush1.bf16.msra.mxu0 %v3144
        %3185 = vmatprep.subr.bf16.mxu0 0
        %3186 = vmatpush1.bf16.msra.mxu0 %v3145
        %3187 = vmatprep.subr.bf16.mxu0 0
        %3188 = vmatpush1.bf16.msra.mxu0 %v3146
        %3189 = vmatprep.subr.bf16.mxu0 0
        %3190 = vmatpush1.bf16.msra.mxu0 %v3147
        %3191 = vmatprep.subr.bf16.mxu0 0
        %3192 = vmatpush1.bf16.msra.mxu0 %v3148
        %3193 = vmatprep.subr.bf16.mxu0 0
        %3194 = vmatpush1.bf16.msra.mxu0 %v3149
        %3195 = vmatprep.subr.bf16.mxu0 0
        %3196 = vmatpush1.bf16.msra.mxu0 %v3150
        %3197 = vmatprep.subr.bf16.mxu0 0
        %3198 = vmatpush1.bf16.msra.mxu0 %v3151
        %3199 = vmatprep.subr.bf16.mxu0 0
        %3200 = vmatpush1.bf16.msra.mxu0 %v3152
        %3201 = vmatprep.subr.bf16.mxu0 0
        %3202 = vmatpush1.bf16.msra.mxu0 0
        %3203 = vmatprep.subr.bf16.mxu0 0
        %3204 = vmatpush1.bf16.msra.mxu0 0
        %3205 = vmatprep.subr.bf16.mxu0 0
        %3206 = vmatpush1.bf16.msra.mxu0 0
        %3207 = vmatprep.subr.bf16.mxu0 0
        %3208 = vmatpush1.bf16.msra.mxu0 0
        %3209 = vmatprep.mubr.bf16.mxu0 %v3166
        %3210 = vmatmul.mubr.bf16.gmra.mrb[0].mxu0 %v2613
        %v3211 = vpop.f32.mrb[0].mxu0
        %v3212 = vadd.f32 %v3063, %v3211
        %v3213 = vpop.f32.mrb[0].mxu0
        %v3214 = vpop.f32.mrb[0].mxu0
        %v3215 = vadd.f32 %v3066, %v3214
        %v3216 = vpop.f32.mrb[0].mxu0
        %3217 = vmatprep.mubr.bf16.mxu0 %v3169
        %3218 = vmatmul.mubr.bf16.gmra.mrb[0].mxu0 %v2617
        %v3219 = vpop.f32.mrb[0].mxu0
        %v3220 = vadd.f32 %v3071, %v3219
        %v3221 = vpop.f32.mrb[0].mxu0
        %v3222 = vpop.f32.mrb[0].mxu0
        %v3223 = vadd.f32 %v3074, %v3222
        %v3224 = vpop.f32.mrb[0].mxu0
        %3225 = vmatprep.mubr.bf16.mxu0 %v3172
        %3226 = vmatmul.mubr.bf16.gmra.mrb[0].mxu0 %v2621
        %v3227 = vpop.f32.mrb[0].mxu0
        %v3228 = vadd.f32 %v3079, %v3227
        %v3229 = vpop.f32.mrb[0].mxu0
        %v3230 = vpop.f32.mrb[0].mxu0
        %v3231 = vadd.f32 %v3082, %v3230
        %v3232 = vpop.f32.mrb[0].mxu0
        %3233 = vmatprep.mubr.bf16.mxu0 %v3175
        %3234 = vmatmul.mubr.bf16.gmra.mrb[0].mxu0 %v2625
        %v3235 = vpop.f32.mrb[0].mxu0
        %v3236 = vadd.f32 %v3087, %v3235
        %v3237 = vpop.f32.mrb[0].mxu0
        %v3238 = vpop.f32.mrb[0].mxu0
        %v3239 = vadd.f32 %v3090, %v3238
        %v3240 = vpop.f32.mrb[0].mxu0
        %3241 = vdwg.mxu0
        %v3242 = vld [vmem:[%s894] sm:$0x1]
        %v3244 = vlaneseq
        %v3245 = vshrl.u32 %v3244, 7
        %v3246 = vsub.s32 0, %v3245
        %v3247 = vrot.slane %v3242, %v3246
        %v3249 = vadd.f32 %v3212, %v3247
        %v3250 = vadd.f32 %v3215, %v3247
        %v3251 = vadd.f32 %v3220, %v3247
        %v3252 = vadd.f32 %v3223, %v3247
        %v3253 = vadd.f32 %v3228, %v3247
        %v3254 = vadd.f32 %v3231, %v3247
        %v3255 = vadd.f32 %v3236, %v3247
        %v3256 = vadd.f32 %v3239, %v3247
        %s3257 = scalar_lea.vmem %s890, 96
        %v3258 = vld [vmem:[%s3257] sm:$0xf]
        %v3259 = vld [vmem:[%s3257 + $0x4] sm:$0xf]
        %v3260 = vld [vmem:[%s3257 + $0x8] sm:$0xf]
        %v3261 = vld [vmem:[%s3257 + $0xc] sm:$0xf]
        %v3262 = vld [vmem:[%s3257 + $0x10] sm:$0xf]
        %v3263 = vld [vmem:[%s3257 + $0x14] sm:$0xf]
        %v3264 = vld [vmem:[%s3257 + $0x18] sm:$0xf]
        %v3265 = vld [vmem:[%s3257 + $0x1c] sm:$0xf]
        %v3266 = vld [vmem:[%s3257 + $0x20] sm:$0xf]
        %v3267 = vld [vmem:[%s3257 + $0x24] sm:$0xf]
        %v3268 = vld [vmem:[%s3257 + $0x28] sm:$0xf]
        %v3269 = vld [vmem:[%s3257 + $0x2c] sm:$0xf]
        %v3270 = vld [vmem:[%s3257 + $0x30] sm:$0xf]
        %v3271 = vld [vmem:[%s3257 + $0x34] sm:$0xf]
        %v3272 = vld [vmem:[%s3257 + $0x38] sm:$0xf]
        %v3273 = vld [vmem:[%s3257 + $0x3c] sm:$0xf]
        %v3274 = vld [vmem:[%s3257 + $0x40] sm:$0xf]
        %v3275 = vld [vmem:[%s3257 + $0x44] sm:$0xf]
        %v3276 = vld [vmem:[%s3257 + $0x48] sm:$0xf]
        %v3277 = vld [vmem:[%s3257 + $0x4c] sm:$0xf]
        %v3278 = vld [vmem:[%s3257 + $0x50] sm:$0xf]
        %v3279 = vld [vmem:[%s3257 + $0x54] sm:$0xf]
        %v3280 = vld [vmem:[%s3257 + $0x58] sm:$0xf]
        %v3281 = vld [vmem:[%s3257 + $0x5c] sm:$0xf]
        %s3282 = scalar_lea.vmem %s890, 288
        %v3283 = vld [vmem:[%s3282] sm:$0xf]
        %v3284 = vld [vmem:[%s3282 + $0x4] sm:$0xf]
        %v3285 = vld [vmem:[%s3282 + $0x8] sm:$0xf]
        %v3286 = vld [vmem:[%s3282 + $0xc] sm:$0xf]
        %v3287 = vld [vmem:[%s3282 + $0x10] sm:$0xf]
        %v3288 = vld [vmem:[%s3282 + $0x14] sm:$0xf]
        %v3289 = vld [vmem:[%s3282 + $0x18] sm:$0xf]
        %v3290 = vld [vmem:[%s3282 + $0x1c] sm:$0xf]
        %v3291 = vld [vmem:[%s3282 + $0x20] sm:$0xf]
        %v3292 = vld [vmem:[%s3282 + $0x24] sm:$0xf]
        %v3293 = vld [vmem:[%s3282 + $0x28] sm:$0xf]
        %v3294 = vld [vmem:[%s3282 + $0x2c] sm:$0xf]
        %v3295 = vld [vmem:[%s3282 + $0x30] sm:$0xf]
        %v3296 = vld [vmem:[%s3282 + $0x34] sm:$0xf]
        %v3297 = vld [vmem:[%s3282 + $0x38] sm:$0xf]
        %v3298 = vld [vmem:[%s3282 + $0x3c] sm:$0xf]
        %v3299 = vld [vmem:[%s3282 + $0x40] sm:$0xf]
        %v3300 = vld [vmem:[%s3282 + $0x44] sm:$0xf]
        %v3301 = vld [vmem:[%s3282 + $0x48] sm:$0xf]
        %v3302 = vld [vmem:[%s3282 + $0x4c] sm:$0xf]
        %v3303 = vld [vmem:[%s3282 + $0x50] sm:$0xf]
        %v3304 = vld [vmem:[%s3282 + $0x54] sm:$0xf]
        %v3305 = vld [vmem:[%s3282 + $0x58] sm:$0xf]
        %v3306 = vld [vmem:[%s3282 + $0x5c] sm:$0xf]
        %v3331 = vunpack.c.l.b16 %v3283
        %v3332 = vunpack.c.l.b16 %v3284
        %v3333 = vunpack.c.l.b16 %v3285
        %v3334 = vunpack.c.l.b16 %v3286
        %v3335 = vunpack.c.l.b16 %v3287
        %v3336 = vunpack.c.l.b16 %v3288
        %v3337 = vunpack.c.l.b16 %v3289
        %v3338 = vunpack.c.l.b16 %v3290
        %v3339 = vunpack.c.l.b16 %v3291
        %v3340 = vunpack.c.l.b16 %v3292
        %v3341 = vunpack.c.l.b16 %v3293
        %v3342 = vunpack.c.l.b16 %v3294
        %v3343 = vunpack.c.l.b16 %v3295
        %v3344 = vunpack.c.l.b16 %v3296
        %v3345 = vunpack.c.l.b16 %v3297
        %v3346 = vunpack.c.l.b16 %v3298
        %v3347 = vunpack.c.l.b16 %v3299
        %v3348 = vunpack.c.l.b16 %v3300
        %v3349 = vunpack.c.l.b16 %v3301
        %v3350 = vunpack.c.l.b16 %v3302
        %v3351 = vunpack.c.l.b16 %v3303
        %v3352 = vunpack.c.l.b16 %v3304
        %v3353 = vunpack.c.l.b16 %v3305
        %v3354 = vunpack.c.l.b16 %v3306
        %v3355 = vpack.c.b16 %v3332, %v3331
        %v3356 = vpack.c.b16 %v3334, %v3333
        %v3357 = vpack.c.b16 %v3336, %v3335
        %v3358 = vpack.c.b16 %v3338, %v3337
        %v3359 = vpack.c.b16 %v3340, %v3339
        %v3360 = vpack.c.b16 %v3342, %v3341
        %v3361 = vpack.c.b16 %v3344, %v3343
        %v3362 = vpack.c.b16 %v3346, %v3345
        %v3363 = vpack.c.b16 %v3348, %v3347
        %v3364 = vpack.c.b16 %v3350, %v3349
        %v3365 = vpack.c.b16 %v3352, %v3351
        %v3366 = vpack.c.b16 %v3354, %v3353
        %3379 = vmatprep.subr.bf16.mxu0 0
        %3380 = vmatpush1.bf16.msra.mxu0 %v3355
        %3381 = vmatprep.subr.bf16.mxu0 0
        %3382 = vmatpush1.bf16.msra.mxu0 %v3356
        %3383 = vmatprep.subr.bf16.mxu0 0
        %3384 = vmatpush1.bf16.msra.mxu0 %v3357
        %3385 = vmatprep.subr.bf16.mxu0 0
        %3386 = vmatpush1.bf16.msra.mxu0 %v3358
        %3387 = vmatprep.subr.bf16.mxu0 0
        %3388 = vmatpush1.bf16.msra.mxu0 %v3359
        %3389 = vmatprep.subr.bf16.mxu0 0
        %3390 = vmatpush1.bf16.msra.mxu0 %v3360
        %3391 = vmatprep.subr.bf16.mxu0 0
        %3392 = vmatpush1.bf16.msra.mxu0 %v3361
        %3393 = vmatprep.subr.bf16.mxu0 0
        %3394 = vmatpush1.bf16.msra.mxu0 %v3362
        %3395 = vmatprep.subr.bf16.mxu0 0
        %3396 = vmatpush1.bf16.msra.mxu0 %v3363
        %3397 = vmatprep.subr.bf16.mxu0 0
        %3398 = vmatpush1.bf16.msra.mxu0 %v3364
        %3399 = vmatprep.subr.bf16.mxu0 0
        %3400 = vmatpush1.bf16.msra.mxu0 %v3365
        %3401 = vmatprep.subr.bf16.mxu0 0
        %3402 = vmatpush1.bf16.msra.mxu0 %v3366
        %3403 = vmatprep.subr.bf16.mxu0 0
        %3404 = vmatpush1.bf16.msra.mxu0 0
        %3405 = vmatprep.subr.bf16.mxu0 0
        %3406 = vmatpush1.bf16.msra.mxu0 0
        %3407 = vmatprep.subr.bf16.mxu0 0
        %3408 = vmatpush1.bf16.msra.mxu0 0
        %3409 = vmatprep.subr.bf16.mxu0 0
        %3410 = vmatpush1.bf16.msra.mxu0 0
        %3411 = vmatprep.mubr.bf16.mxu0 %v3017
        %3412 = vmatmul.mubr.bf16.gmra.mrb[0].mxu0 %v2881
        %v3413 = vpop.f32.mrb[0].mxu0
        %v3414 = vadd.f32 0.0, %v3413
        %v3415 = vpop.f32.mrb[0].mxu0
        %v3416 = vpop.f32.mrb[0].mxu0
        %v3417 = vadd.f32 0.0, %v3416
        %v3418 = vpop.f32.mrb[0].mxu0
        %3419 = vmatprep.mubr.bf16.mxu0 %v3020
        %3420 = vmatmul.mubr.bf16.gmra.mrb[0].mxu0 %v2885
        %v3421 = vpop.f32.mrb[0].mxu0
        %v3422 = vadd.f32 0.0, %v3421
        %v3423 = vpop.f32.mrb[0].mxu0
        %v3424 = vpop.f32.mrb[0].mxu0
        %v3425 = vadd.f32 0.0, %v3424
        %v3426 = vpop.f32.mrb[0].mxu0
        %3427 = vmatprep.mubr.bf16.mxu0 %v3023
        %3428 = vmatmul.mubr.bf16.gmra.mrb[0].mxu0 %v2889
        %v3429 = vpop.f32.mrb[0].mxu0
        %v3430 = vadd.f32 0.0, %v3429
        %v3431 = vpop.f32.mrb[0].mxu0
        %v3432 = vpop.f32.mrb[0].mxu0
        %v3433 = vadd.f32 0.0, %v3432
        %v3434 = vpop.f32.mrb[0].mxu0
        %3435 = vmatprep.mubr.bf16.mxu0 %v3026
        %3436 = vmatmul.mubr.bf16.gmra.mrb[0].mxu0 %v2893
        %v3437 = vpop.f32.mrb[0].mxu0
        %v3438 = vadd.f32 0.0, %v3437
        %v3439 = vpop.f32.mrb[0].mxu0
        %v3440 = vpop.f32.mrb[0].mxu0
        %v3441 = vadd.f32 0.0, %v3440
        %v3442 = vpop.f32.mrb[0].mxu0
        %3443 = vdwg.mxu0
        %v3468 = vunpack.c.l.b16 %v3258
        %v3469 = vunpack.c.l.b16 %v3259
        %v3470 = vunpack.c.l.b16 %v3260
        %v3471 = vunpack.c.l.b16 %v3261
        %v3472 = vunpack.c.l.b16 %v3262
        %v3473 = vunpack.c.l.b16 %v3263
        %v3474 = vunpack.c.l.b16 %v3264
        %v3475 = vunpack.c.l.b16 %v3265
        %v3476 = vunpack.c.l.b16 %v3266
        %v3477 = vunpack.c.l.b16 %v3267
        %v3478 = vunpack.c.l.b16 %v3268
        %v3479 = vunpack.c.l.b16 %v3269
        %v3480 = vunpack.c.l.b16 %v3270
        %v3481 = vunpack.c.l.b16 %v3271
        %v3482 = vunpack.c.l.b16 %v3272
        %v3483 = vunpack.c.l.b16 %v3273
        %v3484 = vunpack.c.l.b16 %v3274
        %v3485 = vunpack.c.l.b16 %v3275
        %v3486 = vunpack.c.l.b16 %v3276
        %v3487 = vunpack.c.l.b16 %v3277
        %v3488 = vunpack.c.l.b16 %v3278
        %v3489 = vunpack.c.l.b16 %v3279
        %v3490 = vunpack.c.l.b16 %v3280
        %v3491 = vunpack.c.l.b16 %v3281
        %v3492 = vpack.c.b16 %v3469, %v3468
        %v3493 = vpack.c.b16 %v3471, %v3470
        %v3494 = vpack.c.b16 %v3473, %v3472
        %v3495 = vpack.c.b16 %v3475, %v3474
        %v3496 = vpack.c.b16 %v3477, %v3476
        %v3497 = vpack.c.b16 %v3479, %v3478
        %v3498 = vpack.c.b16 %v3481, %v3480
        %v3499 = vpack.c.b16 %v3483, %v3482
        %v3500 = vpack.c.b16 %v3485, %v3484
        %v3501 = vpack.c.b16 %v3487, %v3486
        %v3502 = vpack.c.b16 %v3489, %v3488
        %v3503 = vpack.c.b16 %v3491, %v3490
        %3516 = vmatprep.subr.bf16.mxu0 0
        %3517 = vmatpush1.bf16.msra.mxu0 %v3492
        %3518 = vmatprep.subr.bf16.mxu0 0
        %3519 = vmatpush1.bf16.msra.mxu0 %v3493
        %3520 = vmatprep.subr.bf16.mxu0 0
        %3521 = vmatpush1.bf16.msra.mxu0 %v3494
        %3522 = vmatprep.subr.bf16.mxu0 0
        %3523 = vmatpush1.bf16.msra.mxu0 %v3495
        %3524 = vmatprep.subr.bf16.mxu0 0
        %3525 = vmatpush1.bf16.msra.mxu0 %v3496
        %3526 = vmatprep.subr.bf16.mxu0 0
        %3527 = vmatpush1.bf16.msra.mxu0 %v3497
        %3528 = vmatprep.subr.bf16.mxu0 0
        %3529 = vmatpush1.bf16.msra.mxu0 %v3498
        %3530 = vmatprep.subr.bf16.mxu0 0
        %3531 = vmatpush1.bf16.msra.mxu0 %v3499
        %3532 = vmatprep.subr.bf16.mxu0 0
        %3533 = vmatpush1.bf16.msra.mxu0 %v3500
        %3534 = vmatprep.subr.bf16.mxu0 0
        %3535 = vmatpush1.bf16.msra.mxu0 %v3501
        %3536 = vmatprep.subr.bf16.mxu0 0
        %3537 = vmatpush1.bf16.msra.mxu0 %v3502
        %3538 = vmatprep.subr.bf16.mxu0 0
        %3539 = vmatpush1.bf16.msra.mxu0 %v3503
        %3540 = vmatprep.subr.bf16.mxu0 0
        %3541 = vmatpush1.bf16.msra.mxu0 0
        %3542 = vmatprep.subr.bf16.mxu0 0
        %3543 = vmatpush1.bf16.msra.mxu0 0
        %3544 = vmatprep.subr.bf16.mxu0 0
        %3545 = vmatpush1.bf16.msra.mxu0 0
        %3546 = vmatprep.subr.bf16.mxu0 0
        %3547 = vmatpush1.bf16.msra.mxu0 0
        %3548 = vmatprep.mubr.bf16.mxu0 %v3166
        %3549 = vmatmul.mubr.bf16.gmra.mrb[0].mxu0 %v2613
        %v3550 = vpop.f32.mrb[0].mxu0
        %v3551 = vadd.f32 %v3414, %v3550
        %v3552 = vpop.f32.mrb[0].mxu0
        %v3553 = vpop.f32.mrb[0].mxu0
        %v3554 = vadd.f32 %v3417, %v3553
        %v3555 = vpop.f32.mrb[0].mxu0
        %3556 = vmatprep.mubr.bf16.mxu0 %v3169
        %3557 = vmatmul.mubr.bf16.gmra.mrb[0].mxu0 %v2617
        %v3558 = vpop.f32.mrb[0].mxu0
        %v3559 = vadd.f32 %v3422, %v3558
        %v3560 = vpop.f32.mrb[0].mxu0
        %v3561 = vpop.f32.mrb[0].mxu0
        %v3562 = vadd.f32 %v3425, %v3561
        %v3563 = vpop.f32.mrb[0].mxu0
        %3564 = vmatprep.mubr.bf16.mxu0 %v3172
        %3565 = vmatmul.mubr.bf16.gmra.mrb[0].mxu0 %v2621
        %v3566 = vpop.f32.mrb[0].mxu0
        %v3567 = vadd.f32 %v3430, %v3566
        %v3568 = vpop.f32.mrb[0].mxu0
        %v3569 = vpop.f32.mrb[0].mxu0
        %v3570 = vadd.f32 %v3433, %v3569
        %v3571 = vpop.f32.mrb[0].mxu0
        %3572 = vmatprep.mubr.bf16.mxu0 %v3175
        %3573 = vmatmul.mubr.bf16.gmra.mrb[0].mxu0 %v2625
        %v3574 = vpop.f32.mrb[0].mxu0
        %v3575 = vadd.f32 %v3438, %v3574
        %v3576 = vpop.f32.mrb[0].mxu0
        %v3577 = vpop.f32.mrb[0].mxu0
        %v3578 = vadd.f32 %v3441, %v3577
        %v3579 = vpop.f32.mrb[0].mxu0
        %3580 = vdwg.mxu0
        %s3581 = scalar_lea.vmem %s894, 1
        %v3582 = vld [vmem:[%s3581] sm:$0x1]
        %v3584 = vlaneseq
        %v3585 = vshrl.u32 %v3584, 7
        %v3586 = vsub.s32 0, %v3585
        %v3587 = vrot.slane %v3582, %v3586
        %v3589 = vadd.f32 %v3551, %v3587
        %v3590 = vadd.f32 %v3554, %v3587
        %v3591 = vadd.f32 %v3559, %v3587
        %v3592 = vadd.f32 %v3562, %v3587
        %v3593 = vadd.f32 %v3567, %v3587
        %v3594 = vadd.f32 %v3570, %v3587
        %v3595 = vadd.f32 %v3575, %v3587
        %v3596 = vadd.f32 %v3578, %v3587
        %v3597 = vxor.u32 %v3589, 2147483648
        %v3598 = vxor.u32 %v3590, 2147483648
        %v3599 = vxor.u32 %v3591, 2147483648
        %v3600 = vxor.u32 %v3592, 2147483648
        %v3601 = vxor.u32 %v3593, 2147483648
        %v3602 = vxor.u32 %v3594, 2147483648
        %v3603 = vxor.u32 %v3595, 2147483648
        %v3604 = vxor.u32 %v3596, 2147483648
        %v3605 = vmul.f32 %v3597, 1.442695
        %v3606 = vpow.pop %v3605
        %v3607 = vmul.f32 %v3598, 1.442695
        %v3608 = vpow.pop %v3607
        %v3609 = vmul.f32 %v3599, 1.442695
        %v3610 = vpow.pop %v3609
        %v3611 = vmul.f32 %v3600, 1.442695
        %v3612 = vpow.pop %v3611
        %v3613 = vmul.f32 %v3601, 1.442695
        %v3614 = vpow.pop %v3613
        %v3615 = vmul.f32 %v3602, 1.442695
        %v3616 = vpow.pop %v3615
        %v3617 = vmul.f32 %v3603, 1.442695
        %v3618 = vpow.pop %v3617
        %v3619 = vmul.f32 %v3604, 1.442695
        %v3620 = vpow.pop %v3619
        %v3621 = vadd.f32 %v3606, 1.0
        %v3622 = vadd.f32 %v3608, 1.0
        %v3623 = vadd.f32 %v3610, 1.0
        %v3624 = vadd.f32 %v3612, 1.0
        %v3625 = vadd.f32 %v3614, 1.0
        %v3626 = vadd.f32 %v3616, 1.0
        %v3627 = vadd.f32 %v3618, 1.0
        %v3628 = vadd.f32 %v3620, 1.0
        %v3629 = vrcp.pop %v3621
        %v3630 = vmul.f32 1.0, %v3629
        %v3631 = vrcp.pop %v3622
        %v3632 = vmul.f32 1.0, %v3631
        %v3633 = vrcp.pop %v3623
        %v3634 = vmul.f32 1.0, %v3633
        %v3635 = vrcp.pop %v3624
        %v3636 = vmul.f32 1.0, %v3635
        %v3637 = vrcp.pop %v3625
        %v3638 = vmul.f32 1.0, %v3637
        %v3639 = vrcp.pop %v3626
        %v3640 = vmul.f32 1.0, %v3639
        %v3641 = vrcp.pop %v3627
        %v3642 = vmul.f32 1.0, %v3641
        %v3643 = vrcp.pop %v3628
        %v3644 = vmul.f32 1.0, %v3643
        %v3645 = vmul.f32 %v3249, %v3630
        %v3646 = vmul.f32 %v3250, %v3632
        %v3647 = vmul.f32 %v3251, %v3634
        %v3648 = vmul.f32 %v3252, %v3636
        %v3649 = vmul.f32 %v3253, %v3638
        %v3650 = vmul.f32 %v3254, %v3640
        %v3651 = vmul.f32 %v3255, %v3642
        %v3652 = vmul.f32 %v3256, %v3644
        %v3653 = vadd.f32 %v1104, %v3645
        %v3654 = vadd.f32 %v1105, %v3646
        %v3655 = vadd.f32 %v1106, %v3647
        %v3656 = vadd.f32 %v1107, %v3648
        %v3657 = vadd.f32 %v1108, %v3649
        %v3658 = vadd.f32 %v1109, %v3650
        %v3659 = vadd.f32 %v1110, %v3651
        %v3660 = vadd.f32 %v1111, %v3652
        %3661 = vst.msk [vmem:[%s832] sm:$0xff] %vm1043, %v3653
        %3662 = vst.msk [vmem:[%s832 + $0x8] sm:$0xff] %vm1043, %v3654
        %3663 = vst.msk [vmem:[%s832 + $0x10] sm:$0xff] %vm1043, %v3655
        %3664 = vst.msk [vmem:[%s832 + $0x18] sm:$0xff] %vm1043, %v3656
        %3665 = vst.msk [vmem:[%s832 + $0x20] sm:$0xff] %vm1043, %v3657
        %3666 = vst.msk [vmem:[%s832 + $0x28] sm:$0xff] %vm1043, %v3658
        %3667 = vst.msk [vmem:[%s832 + $0x30] sm:$0xff] %vm1043, %v3659
        %3668 = vst.msk [vmem:[%s832 + $0x38] sm:$0xff] %vm1043, %v3660
        %v3669 = vsub.f32 0.0, %v3653
        %v3670 = vsub.f32 0.0, %v3654
        %v3671 = vsub.f32 0.0, %v3655
        %v3672 = vsub.f32 0.0, %v3656
        %v3673 = vsub.f32 0.0, %v3657
        %v3674 = vsub.f32 0.0, %v3658
        %v3675 = vsub.f32 0.0, %v3659
        %v3676 = vsub.f32 0.0, %v3660
        %3685 = vrot.lane.b32.xlu0 %v3669, 32
        %v3686 = vpop.permute.xlu0 %3685
        %3687 = vrot.lane.b32.xlu0 %v3670, 32
        %v3688 = vpop.permute.xlu0 %3687
        %3689 = vrot.lane.b32.xlu0 %v3671, 32
        %v3690 = vpop.permute.xlu0 %3689
        %3691 = vrot.lane.b32.xlu0 %v3672, 32
        %v3692 = vpop.permute.xlu0 %3691
        %3693 = vrot.lane.b32.xlu0 %v3673, 32
        %v3694 = vpop.permute.xlu0 %3693
        %3695 = vrot.lane.b32.xlu0 %v3674, 32
        %v3696 = vpop.permute.xlu0 %3695
        %3697 = vrot.lane.b32.xlu0 %v3675, 32
        %v3698 = vpop.permute.xlu0 %3697
        %3699 = vrot.lane.b32.xlu0 %v3676, 32
        %v3700 = vpop.permute.xlu0 %3699
        %v3709 = vsel %vm1043, %v3653, %v3686
        %v3710 = vsel %vm1043, %v3654, %v3688
        %v3711 = vsel %vm1043, %v3655, %v3690
        %v3712 = vsel %vm1043, %v3656, %v3692
        %v3713 = vsel %vm1043, %v3657, %v3694
        %v3714 = vsel %vm1043, %v3658, %v3696
        %v3715 = vsel %vm1043, %v3659, %v3698
        %v3716 = vsel %vm1043, %v3660, %v3700
        %vm3717 = vcmp.gt.f32.partialorder %v3709, 0.0
        %vm3718 = vcmp.gt.f32.partialorder %v3710, 0.0
        %vm3719 = vcmp.gt.f32.partialorder %v3711, 0.0
        %vm3720 = vcmp.gt.f32.partialorder %v3712, 0.0
        %vm3721 = vcmp.gt.f32.partialorder %v3713, 0.0
        %vm3722 = vcmp.gt.f32.partialorder %v3714, 0.0
        %vm3723 = vcmp.gt.f32.partialorder %v3715, 0.0
        %vm3724 = vcmp.gt.f32.partialorder %v3716, 0.0
        %v3725 = vmin.f32 %v3709, 0.0
        %v3726 = vmin.f32 %v3710, 0.0
        %v3727 = vmin.f32 %v3711, 0.0
        %v3728 = vmin.f32 %v3712, 0.0
        %v3729 = vmin.f32 %v3713, 0.0
        %v3730 = vmin.f32 %v3714, 0.0
        %v3731 = vmin.f32 %v3715, 0.0
        %v3732 = vmin.f32 %v3716, 0.0
        %v3733 = vmul.f32 %v3725, 1.442695
        %v3734 = vpow.pop %v3733
        %v3735 = vmul.f32 %v3726, 1.442695
        %v3736 = vpow.pop %v3735
        %v3737 = vmul.f32 %v3727, 1.442695
        %v3738 = vpow.pop %v3737
        %v3739 = vmul.f32 %v3728, 1.442695
        %v3740 = vpow.pop %v3739
        %v3741 = vmul.f32 %v3729, 1.442695
        %v3742 = vpow.pop %v3741
        %v3743 = vmul.f32 %v3730, 1.442695
        %v3744 = vpow.pop %v3743
        %v3745 = vmul.f32 %v3731, 1.442695
        %v3746 = vpow.pop %v3745
        %v3747 = vmul.f32 %v3732, 1.442695
        %v3748 = vpow.pop %v3747
        %v3749 = vsub.f32 %v3734, 1.0
        %v3750 = vsub.f32 %v3736, 1.0
        %v3751 = vsub.f32 %v3738, 1.0
        %v3752 = vsub.f32 %v3740, 1.0
        %v3753 = vsub.f32 %v3742, 1.0
        %v3754 = vsub.f32 %v3744, 1.0
        %v3755 = vsub.f32 %v3746, 1.0
        %v3756 = vsub.f32 %v3748, 1.0
        %v3757 = vsel %vm3717, %v3709, %v3749
        %v3758 = vsel %vm3718, %v3710, %v3750
        %v3759 = vsel %vm3719, %v3711, %v3751
        %v3760 = vsel %vm3720, %v3712, %v3752
        %v3761 = vsel %vm3721, %v3713, %v3753
        %v3762 = vsel %vm3722, %v3714, %v3754
        %v3763 = vsel %vm3723, %v3715, %v3755
        %v3764 = vsel %vm3724, %v3716, %v3756
        %v3765 = vpack.c.bf16 %v3758, %v3757
        %v3766 = vpack.c.bf16 %v3760, %v3759
        %v3767 = vpack.c.bf16 %v3762, %v3761
        %v3768 = vpack.c.bf16 %v3764, %v3763
        %v3769 = vld [vmem:[%s867] sm:$0xf]
        %v3770 = vld [vmem:[%s867 + $0x4] sm:$0xf]
        %v3771 = vld [vmem:[%s867 + $0x8] sm:$0xf]
        %v3772 = vld [vmem:[%s867 + $0xc] sm:$0xf]
        %v3773 = vld [vmem:[%s867 + $0x10] sm:$0xf]
        %v3774 = vld [vmem:[%s867 + $0x14] sm:$0xf]
        %v3775 = vld [vmem:[%s867 + $0x18] sm:$0xf]
        %v3776 = vld [vmem:[%s867 + $0x1c] sm:$0xf]
        %v3777 = vunpack.c.l.bf16 %v3769
        %v3778 = vunpack.c.l.bf16 %v3770
        %v3779 = vunpack.c.l.bf16 %v3771
        %v3780 = vunpack.c.l.bf16 %v3772
        %v3781 = vunpack.c.l.bf16 %v3773
        %v3782 = vunpack.c.l.bf16 %v3774
        %v3783 = vunpack.c.l.bf16 %v3775
        %v3784 = vunpack.c.l.bf16 %v3776
        %v3785 = vsub.f32 0.0, %v3777
        %v3786 = vsub.f32 0.0, %v3778
        %v3787 = vsub.f32 0.0, %v3779
        %v3788 = vsub.f32 0.0, %v3780
        %v3789 = vsub.f32 0.0, %v3781
        %v3790 = vsub.f32 0.0, %v3782
        %v3791 = vsub.f32 0.0, %v3783
        %v3792 = vsub.f32 0.0, %v3784
        %3801 = vrot.lane.b32.xlu0 %v3785, 32
        %v3802 = vpop.permute.xlu0 %3801
        %3803 = vrot.lane.b32.xlu0 %v3786, 32
        %v3804 = vpop.permute.xlu0 %3803
        %3805 = vrot.lane.b32.xlu0 %v3787, 32
        %v3806 = vpop.permute.xlu0 %3805
        %3807 = vrot.lane.b32.xlu0 %v3788, 32
        %v3808 = vpop.permute.xlu0 %3807
        %3809 = vrot.lane.b32.xlu0 %v3789, 32
        %v3810 = vpop.permute.xlu0 %3809
        %3811 = vrot.lane.b32.xlu0 %v3790, 32
        %v3812 = vpop.permute.xlu0 %3811
        %3813 = vrot.lane.b32.xlu0 %v3791, 32
        %v3814 = vpop.permute.xlu0 %3813
        %3815 = vrot.lane.b32.xlu0 %v3792, 32
        %v3816 = vpop.permute.xlu0 %3815
        %v3825 = vsel %vm1043, %v3777, %v3802
        %v3826 = vsel %vm1043, %v3778, %v3804
        %v3827 = vsel %vm1043, %v3779, %v3806
        %v3828 = vsel %vm1043, %v3780, %v3808
        %v3829 = vsel %vm1043, %v3781, %v3810
        %v3830 = vsel %vm1043, %v3782, %v3812
        %v3831 = vsel %vm1043, %v3783, %v3814
        %v3832 = vsel %vm1043, %v3784, %v3816
        %vm3833 = vcmp.gt.f32.partialorder %v3825, 0.0
        %vm3834 = vcmp.gt.f32.partialorder %v3826, 0.0
        %vm3835 = vcmp.gt.f32.partialorder %v3827, 0.0
        %vm3836 = vcmp.gt.f32.partialorder %v3828, 0.0
        %vm3837 = vcmp.gt.f32.partialorder %v3829, 0.0
        %vm3838 = vcmp.gt.f32.partialorder %v3830, 0.0
        %vm3839 = vcmp.gt.f32.partialorder %v3831, 0.0
        %vm3840 = vcmp.gt.f32.partialorder %v3832, 0.0
        %v3841 = vmin.f32 %v3825, 0.0
        %v3842 = vmin.f32 %v3826, 0.0
        %v3843 = vmin.f32 %v3827, 0.0
        %v3844 = vmin.f32 %v3828, 0.0
        %v3845 = vmin.f32 %v3829, 0.0
        %v3846 = vmin.f32 %v3830, 0.0
        %v3847 = vmin.f32 %v3831, 0.0
        %v3848 = vmin.f32 %v3832, 0.0
        %v3849 = vmul.f32 %v3841, 1.442695
        %v3850 = vpow.pop %v3849
        %v3851 = vmul.f32 %v3842, 1.442695
        %v3852 = vpow.pop %v3851
        %v3853 = vmul.f32 %v3843, 1.442695
        %v3854 = vpow.pop %v3853
        %v3855 = vmul.f32 %v3844, 1.442695
        %v3856 = vpow.pop %v3855
        %v3857 = vmul.f32 %v3845, 1.442695
        %v3858 = vpow.pop %v3857
        %v3859 = vmul.f32 %v3846, 1.442695
        %v3860 = vpow.pop %v3859
        %v3861 = vmul.f32 %v3847, 1.442695
        %v3862 = vpow.pop %v3861
        %v3863 = vmul.f32 %v3848, 1.442695
        %v3864 = vpow.pop %v3863
        %v3865 = vsub.f32 %v3850, 1.0
        %v3866 = vsub.f32 %v3852, 1.0
        %v3867 = vsub.f32 %v3854, 1.0
        %v3868 = vsub.f32 %v3856, 1.0
        %v3869 = vsub.f32 %v3858, 1.0
        %v3870 = vsub.f32 %v3860, 1.0
        %v3871 = vsub.f32 %v3862, 1.0
        %v3872 = vsub.f32 %v3864, 1.0
        %v3873 = vsel %vm3833, %v3825, %v3865
        %v3874 = vsel %vm3834, %v3826, %v3866
        %v3875 = vsel %vm3835, %v3827, %v3867
        %v3876 = vsel %vm3836, %v3828, %v3868
        %v3877 = vsel %vm3837, %v3829, %v3869
        %v3878 = vsel %vm3838, %v3830, %v3870
        %v3879 = vsel %vm3839, %v3831, %v3871
        %v3880 = vsel %vm3840, %v3832, %v3872
        %v3881 = vpack.c.bf16 %v3874, %v3873
        %v3882 = vpack.c.bf16 %v3876, %v3875
        %v3883 = vpack.c.bf16 %v3878, %v3877
        %v3884 = vpack.c.bf16 %v3880, %v3879
        %v3885 = vld [vmem:[%s839] sm:$0xff]
        %v3886 = vld [vmem:[%s839 + $0x8] sm:$0xff]
        %v3887 = vld [vmem:[%s839 + $0x10] sm:$0xff]
        %v3888 = vld [vmem:[%s839 + $0x18] sm:$0xff]
        %v3889 = vld [vmem:[%s839 + $0x20] sm:$0xff]
        %v3890 = vld [vmem:[%s839 + $0x28] sm:$0xff]
        %v3891 = vld [vmem:[%s839 + $0x30] sm:$0xff]
        %v3892 = vld [vmem:[%s839 + $0x38] sm:$0xff]
        %v3893 = vsub.f32 0.0, %v3885
        %v3894 = vsub.f32 0.0, %v3886
        %v3895 = vsub.f32 0.0, %v3887
        %v3896 = vsub.f32 0.0, %v3888
        %v3897 = vsub.f32 0.0, %v3889
        %v3898 = vsub.f32 0.0, %v3890
        %v3899 = vsub.f32 0.0, %v3891
        %v3900 = vsub.f32 0.0, %v3892
        %3909 = vrot.lane.b32.xlu0 %v3893, 32
        %v3910 = vpop.permute.xlu0 %3909
        %3911 = vrot.lane.b32.xlu0 %v3894, 32
        %v3912 = vpop.permute.xlu0 %3911
        %3913 = vrot.lane.b32.xlu0 %v3895, 32
        %v3914 = vpop.permute.xlu0 %3913
        %3915 = vrot.lane.b32.xlu0 %v3896, 32
        %v3916 = vpop.permute.xlu0 %3915
        %3917 = vrot.lane.b32.xlu0 %v3897, 32
        %v3918 = vpop.permute.xlu0 %3917
        %3919 = vrot.lane.b32.xlu0 %v3898, 32
        %v3920 = vpop.permute.xlu0 %3919
        %3921 = vrot.lane.b32.xlu0 %v3899, 32
        %v3922 = vpop.permute.xlu0 %3921
        %3923 = vrot.lane.b32.xlu0 %v3900, 32
        %v3924 = vpop.permute.xlu0 %3923
        %v3933 = vsel %vm1043, %v3885, %v3910
        %v3934 = vsel %vm1043, %v3886, %v3912
        %v3935 = vsel %vm1043, %v3887, %v3914
        %v3936 = vsel %vm1043, %v3888, %v3916
        %v3937 = vsel %vm1043, %v3889, %v3918
        %v3938 = vsel %vm1043, %v3890, %v3920
        %v3939 = vsel %vm1043, %v3891, %v3922
        %v3940 = vsel %vm1043, %v3892, %v3924
        %vm3941 = vcmp.gt.f32.partialorder %v3933, 0.0
        %vm3942 = vcmp.gt.f32.partialorder %v3934, 0.0
        %vm3943 = vcmp.gt.f32.partialorder %v3935, 0.0
        %vm3944 = vcmp.gt.f32.partialorder %v3936, 0.0
        %vm3945 = vcmp.gt.f32.partialorder %v3937, 0.0
        %vm3946 = vcmp.gt.f32.partialorder %v3938, 0.0
        %vm3947 = vcmp.gt.f32.partialorder %v3939, 0.0
        %vm3948 = vcmp.gt.f32.partialorder %v3940, 0.0
        %v3949 = vmin.f32 %v3933, 0.0
        %v3950 = vmin.f32 %v3934, 0.0
        %v3951 = vmin.f32 %v3935, 0.0
        %v3952 = vmin.f32 %v3936, 0.0
        %v3953 = vmin.f32 %v3937, 0.0
        %v3954 = vmin.f32 %v3938, 0.0
        %v3955 = vmin.f32 %v3939, 0.0
        %v3956 = vmin.f32 %v3940, 0.0
        %v3957 = vmul.f32 %v3949, 1.442695
        %v3958 = vpow.pop %v3957
        %v3959 = vmul.f32 %v3950, 1.442695
        %v3960 = vpow.pop %v3959
        %v3961 = vmul.f32 %v3951, 1.442695
        %v3962 = vpow.pop %v3961
        %v3963 = vmul.f32 %v3952, 1.442695
        %v3964 = vpow.pop %v3963
        %v3965 = vmul.f32 %v3953, 1.442695
        %v3966 = vpow.pop %v3965
        %v3967 = vmul.f32 %v3954, 1.442695
        %v3968 = vpow.pop %v3967
        %v3969 = vmul.f32 %v3955, 1.442695
        %v3970 = vpow.pop %v3969
        %v3971 = vmul.f32 %v3956, 1.442695
        %v3972 = vpow.pop %v3971
        %v3973 = vsub.f32 %v3958, 1.0
        %v3974 = vsub.f32 %v3960, 1.0
        %v3975 = vsub.f32 %v3962, 1.0
        %v3976 = vsub.f32 %v3964, 1.0
        %v3977 = vsub.f32 %v3966, 1.0
        %v3978 = vsub.f32 %v3968, 1.0
        %v3979 = vsub.f32 %v3970, 1.0
        %v3980 = vsub.f32 %v3972, 1.0
        %v3981 = vsel %vm3941, %v3933, %v3973
        %v3982 = vsel %vm3942, %v3934, %v3974
        %v3983 = vsel %vm3943, %v3935, %v3975
        %v3984 = vsel %vm3944, %v3936, %v3976
        %v3985 = vsel %vm3945, %v3937, %v3977
        %v3986 = vsel %vm3946, %v3938, %v3978
        %v3987 = vsel %vm3947, %v3939, %v3979
        %v3988 = vsel %vm3948, %v3940, %v3980
        %v3989 = vpack.c.bf16 %v3981, %v3981
        %v3990 = vpack.c.bf16 %v3982, %v3982
        %v3991 = vpack.c.bf16 %v3983, %v3983
        %v3992 = vpack.c.bf16 %v3984, %v3984
        %v3993 = vpack.c.bf16 %v3985, %v3985
        %v3994 = vpack.c.bf16 %v3986, %v3986
        %v3995 = vpack.c.bf16 %v3987, %v3987
        %v3996 = vpack.c.bf16 %v3988, %v3988
        %3997 = vst.msk [vmem:[%s1216 + $0x4] sm:$0xf] %vm1217, %v3989
        %3998 = vst.msk [vmem:[%s1216 + $0x10] sm:$0xf] %vm1217, %v3990
        %3999 = vst.msk [vmem:[%s1216 + $0x1c] sm:$0xf] %vm1217, %v3991
        %4000 = vst.msk [vmem:[%s1216 + $0x28] sm:$0xf] %vm1217, %v3992
        %4001 = vst.msk [vmem:[%s1216 + $0x34] sm:$0xf] %vm1217, %v3993
        %4002 = vst.msk [vmem:[%s1216 + $0x40] sm:$0xf] %vm1217, %v3994
        %4003 = vst.msk [vmem:[%s1216 + $0x4c] sm:$0xf] %vm1217, %v3995
        %4004 = vst.msk [vmem:[%s1216 + $0x58] sm:$0xf] %vm1217, %v3996
        %v4005 = vld [vmem:[#allocation2] sm:$0x8]
        %v4006 = vld [vmem:[#allocation2 + $0x4] sm:$0xf]
        %v4007 = vld [vmem:[#allocation2 + $0xc] sm:$0x8]
        %v4008 = vld [vmem:[#allocation2 + $0x10] sm:$0xf]
        %v4009 = vld [vmem:[#allocation2 + $0x18] sm:$0x8]
        %v4010 = vld [vmem:[#allocation2 + $0x1c] sm:$0xf]
        %v4011 = vld [vmem:[#allocation2 + $0x24] sm:$0x8]
        %v4012 = vld [vmem:[#allocation2 + $0x28] sm:$0xf]
        %v4013 = vld [vmem:[#allocation2 + $0x30] sm:$0x8]
        %v4014 = vld [vmem:[#allocation2 + $0x34] sm:$0xf]
        %v4015 = vld [vmem:[#allocation2 + $0x3c] sm:$0x8]
        %v4016 = vld [vmem:[#allocation2 + $0x40] sm:$0xf]
        %v4017 = vld [vmem:[#allocation2 + $0x48] sm:$0x8]
        %v4018 = vld [vmem:[#allocation2 + $0x4c] sm:$0xf]
        %v4019 = vld [vmem:[#allocation2 + $0x54] sm:$0x8]
        %v4020 = vld [vmem:[#allocation2 + $0x58] sm:$0xf]
        %v4022 = vshrl.u32 %v4005, 16
        %v4024 = vrot.slane %v4022, 7
        %v4025 = vrot.slane %v4024, 4
        %v4027 = vshrl.u32 %v4006, 16
        %v4029 = vrot.slane %v4027, 7
        %v4030 = vshll.u32 %v4006, 16
        %v4032 = vor.u32 %v4029, %v4030
        %v4033 = vsel %vm1244, %v4025, %v4032
        %v4035 = vshrl.u32 %v4007, 16
        %v4037 = vrot.slane %v4035, 7
        %v4038 = vrot.slane %v4037, 4
        %v4040 = vshrl.u32 %v4008, 16
        %v4042 = vrot.slane %v4040, 7
        %v4043 = vshll.u32 %v4008, 16
        %v4045 = vor.u32 %v4042, %v4043
        %v4046 = vsel %vm1244, %v4038, %v4045
        %v4048 = vshrl.u32 %v4009, 16
        %v4050 = vrot.slane %v4048, 7
        %v4051 = vrot.slane %v4050, 4
        %v4053 = vshrl.u32 %v4010, 16
        %v4055 = vrot.slane %v4053, 7
        %v4056 = vshll.u32 %v4010, 16
        %v4058 = vor.u32 %v4055, %v4056
        %v4059 = vsel %vm1244, %v4051, %v4058
        %v4061 = vshrl.u32 %v4011, 16
        %v4063 = vrot.slane %v4061, 7
        %v4064 = vrot.slane %v4063, 4
        %v4066 = vshrl.u32 %v4012, 16
        %v4068 = vrot.slane %v4066, 7
        %v4069 = vshll.u32 %v4012, 16
        %v4071 = vor.u32 %v4068, %v4069
        %v4072 = vsel %vm1244, %v4064, %v4071
        %v4074 = vshrl.u32 %v4013, 16
        %v4076 = vrot.slane %v4074, 7
        %v4077 = vrot.slane %v4076, 4
        %v4079 = vshrl.u32 %v4014, 16
        %v4081 = vrot.slane %v4079, 7
        %v4082 = vshll.u32 %v4014, 16
        %v4084 = vor.u32 %v4081, %v4082
        %v4085 = vsel %vm1244, %v4077, %v4084
        %v4087 = vshrl.u32 %v4015, 16
        %v4089 = vrot.slane %v4087, 7
        %v4090 = vrot.slane %v4089, 4
        %v4092 = vshrl.u32 %v4016, 16
        %v4094 = vrot.slane %v4092, 7
        %v4095 = vshll.u32 %v4016, 16
        %v4097 = vor.u32 %v4094, %v4095
        %v4098 = vsel %vm1244, %v4090, %v4097
        %v4100 = vshrl.u32 %v4017, 16
        %v4102 = vrot.slane %v4100, 7
        %v4103 = vrot.slane %v4102, 4
        %v4105 = vshrl.u32 %v4018, 16
        %v4107 = vrot.slane %v4105, 7
        %v4108 = vshll.u32 %v4018, 16
        %v4110 = vor.u32 %v4107, %v4108
        %v4111 = vsel %vm1244, %v4103, %v4110
        %v4113 = vshrl.u32 %v4019, 16
        %v4115 = vrot.slane %v4113, 7
        %v4116 = vrot.slane %v4115, 4
        %v4118 = vshrl.u32 %v4020, 16
        %v4120 = vrot.slane %v4118, 7
        %v4121 = vshll.u32 %v4020, 16
        %v4123 = vor.u32 %v4120, %v4121
        %v4124 = vsel %vm1244, %v4116, %v4123
        %v4125 = vunpack.c.l.b16 %v4033
        %v4126 = vunpack.c.l.b16 %v4046
        %v4127 = vunpack.c.l.b16 %v4059
        %v4128 = vunpack.c.l.b16 %v4072
        %v4129 = vunpack.c.l.b16 %v4085
        %v4130 = vunpack.c.l.b16 %v4098
        %v4131 = vunpack.c.l.b16 %v4111
        %v4132 = vunpack.c.l.b16 %v4124
        %v4133 = vpack.c.b16 %v4126, %v4125
        %v4134 = vpack.c.b16 %v4128, %v4127
        %v4135 = vpack.c.b16 %v4130, %v4129
        %v4136 = vpack.c.b16 %v4132, %v4131
        %v4145 = vunpack.c.l.b16 %v4006
        %v4146 = vunpack.c.l.b16 %v4008
        %v4147 = vunpack.c.l.b16 %v4010
        %v4148 = vunpack.c.l.b16 %v4012
        %v4149 = vunpack.c.l.b16 %v4014
        %v4150 = vunpack.c.l.b16 %v4016
        %v4151 = vunpack.c.l.b16 %v4018
        %v4152 = vunpack.c.l.b16 %v4020
        %v4153 = vpack.c.b16 %v4146, %v4145
        %v4154 = vpack.c.b16 %v4148, %v4147
        %v4155 = vpack.c.b16 %v4150, %v4149
        %v4156 = vpack.c.b16 %v4152, %v4151
        %4157 = vrot.lane.b32.xlu0 %v4153, 64
        %v4158 = vpop.permute.xlu0 %4157
        %4159 = vrot.lane.b32.xlu0 %v4154, 64
        %v4160 = vpop.permute.xlu0 %4159
        %4161 = vrot.lane.b32.xlu0 %v4155, 64
        %v4162 = vpop.permute.xlu0 %4161
        %4163 = vrot.lane.b32.xlu0 %v4156, 64
        %v4164 = vpop.permute.xlu0 %4163
        %v4167 = vsel %vm1484, %v4133, %v4158
        %v4171 = vsel %vm1484, %v4134, %v4160
        %v4175 = vsel %vm1484, %v4135, %v4162
        %v4179 = vsel %vm1484, %v4136, %v4164
        %v4181 = vld [vmem:[%s899] sm:$0xf]
        %v4182 = vld [vmem:[%s899 + $0x4] sm:$0xf]
        %v4183 = vld [vmem:[%s899 + $0x8] sm:$0xf]
        %v4184 = vld [vmem:[%s899 + $0xc] sm:$0xf]
        %v4185 = vld [vmem:[%s899 + $0x10] sm:$0xf]
        %v4186 = vld [vmem:[%s899 + $0x14] sm:$0xf]
        %v4187 = vld [vmem:[%s899 + $0x18] sm:$0xf]
        %v4188 = vld [vmem:[%s899 + $0x1c] sm:$0xf]
        %v4189 = vld [vmem:[%s899 + $0x20] sm:$0xf]
        %v4190 = vld [vmem:[%s899 + $0x24] sm:$0xf]
        %v4191 = vld [vmem:[%s899 + $0x28] sm:$0xf]
        %v4192 = vld [vmem:[%s899 + $0x2c] sm:$0xf]
        %v4193 = vld [vmem:[%s899 + $0x30] sm:$0xf]
        %v4194 = vld [vmem:[%s899 + $0x34] sm:$0xf]
        %v4195 = vld [vmem:[%s899 + $0x38] sm:$0xf]
        %v4196 = vld [vmem:[%s899 + $0x3c] sm:$0xf]
        %v4197 = vld [vmem:[%s1216] sm:$0x8]
        %v4198 = vld [vmem:[%s1216 + $0x4] sm:$0xf]
        %v4199 = vld [vmem:[%s1216 + $0xc] sm:$0x8]
        %v4200 = vld [vmem:[%s1216 + $0x10] sm:$0xf]
        %v4201 = vld [vmem:[%s1216 + $0x18] sm:$0x8]
        %v4202 = vld [vmem:[%s1216 + $0x1c] sm:$0xf]
        %v4203 = vld [vmem:[%s1216 + $0x24] sm:$0x8]
        %v4204 = vld [vmem:[%s1216 + $0x28] sm:$0xf]
        %v4205 = vld [vmem:[%s1216 + $0x30] sm:$0x8]
        %v4206 = vld [vmem:[%s1216 + $0x34] sm:$0xf]
        %v4207 = vld [vmem:[%s1216 + $0x3c] sm:$0x8]
        %v4208 = vld [vmem:[%s1216 + $0x40] sm:$0xf]
        %v4209 = vld [vmem:[%s1216 + $0x48] sm:$0x8]
        %v4210 = vld [vmem:[%s1216 + $0x4c] sm:$0xf]
        %v4211 = vld [vmem:[%s1216 + $0x54] sm:$0x8]
        %v4212 = vld [vmem:[%s1216 + $0x58] sm:$0xf]
        %v4214 = vshrl.u32 %v4197, 16
        %v4216 = vrot.slane %v4214, 7
        %v4217 = vrot.slane %v4216, 4
        %v4219 = vshrl.u32 %v4198, 16
        %v4221 = vrot.slane %v4219, 7
        %v4222 = vshll.u32 %v4198, 16
        %v4224 = vor.u32 %v4221, %v4222
        %v4225 = vsel %vm1244, %v4217, %v4224
        %v4227 = vshrl.u32 %v4199, 16
        %v4229 = vrot.slane %v4227, 7
        %v4230 = vrot.slane %v4229, 4
        %v4232 = vshrl.u32 %v4200, 16
        %v4234 = vrot.slane %v4232, 7
        %v4235 = vshll.u32 %v4200, 16
        %v4237 = vor.u32 %v4234, %v4235
        %v4238 = vsel %vm1244, %v4230, %v4237
        %v4240 = vshrl.u32 %v4201, 16
        %v4242 = vrot.slane %v4240, 7
        %v4243 = vrot.slane %v4242, 4
        %v4245 = vshrl.u32 %v4202, 16
        %v4247 = vrot.slane %v4245, 7
        %v4248 = vshll.u32 %v4202, 16
        %v4250 = vor.u32 %v4247, %v4248
        %v4251 = vsel %vm1244, %v4243, %v4250
        %v4253 = vshrl.u32 %v4203, 16
        %v4255 = vrot.slane %v4253, 7
        %v4256 = vrot.slane %v4255, 4
        %v4258 = vshrl.u32 %v4204, 16
        %v4260 = vrot.slane %v4258, 7
        %v4261 = vshll.u32 %v4204, 16
        %v4263 = vor.u32 %v4260, %v4261
        %v4264 = vsel %vm1244, %v4256, %v4263
        %v4266 = vshrl.u32 %v4205, 16
        %v4268 = vrot.slane %v4266, 7
        %v4269 = vrot.slane %v4268, 4
        %v4271 = vshrl.u32 %v4206, 16
        %v4273 = vrot.slane %v4271, 7
        %v4274 = vshll.u32 %v4206, 16
        %v4276 = vor.u32 %v4273, %v4274
        %v4277 = vsel %vm1244, %v4269, %v4276
        %v4279 = vshrl.u32 %v4207, 16
        %v4281 = vrot.slane %v4279, 7
        %v4282 = vrot.slane %v4281, 4
        %v4284 = vshrl.u32 %v4208, 16
        %v4286 = vrot.slane %v4284, 7
        %v4287 = vshll.u32 %v4208, 16
        %v4289 = vor.u32 %v4286, %v4287
        %v4290 = vsel %vm1244, %v4282, %v4289
        %v4292 = vshrl.u32 %v4209, 16
        %v4294 = vrot.slane %v4292, 7
        %v4295 = vrot.slane %v4294, 4
        %v4297 = vshrl.u32 %v4210, 16
        %v4299 = vrot.slane %v4297, 7
        %v4300 = vshll.u32 %v4210, 16
        %v4302 = vor.u32 %v4299, %v4300
        %v4303 = vsel %vm1244, %v4295, %v4302
        %v4305 = vshrl.u32 %v4211, 16
        %v4307 = vrot.slane %v4305, 7
        %v4308 = vrot.slane %v4307, 4
        %v4310 = vshrl.u32 %v4212, 16
        %v4312 = vrot.slane %v4310, 7
        %v4313 = vshll.u32 %v4212, 16
        %v4315 = vor.u32 %v4312, %v4313
        %v4316 = vsel %vm1244, %v4308, %v4315
        %v4317 = vunpack.c.l.b16 %v4225
        %v4318 = vunpack.c.l.b16 %v4238
        %v4319 = vunpack.c.l.b16 %v4251
        %v4320 = vunpack.c.l.b16 %v4264
        %v4321 = vunpack.c.l.b16 %v4277
        %v4322 = vunpack.c.l.b16 %v4290
        %v4323 = vunpack.c.l.b16 %v4303
        %v4324 = vunpack.c.l.b16 %v4316
        %v4325 = vpack.c.b16 %v4318, %v4317
        %v4326 = vpack.c.b16 %v4320, %v4319
        %v4327 = vpack.c.b16 %v4322, %v4321
        %v4328 = vpack.c.b16 %v4324, %v4323
        %v4337 = vunpack.c.l.b16 %v4198
        %v4338 = vunpack.c.l.b16 %v4200
        %v4339 = vunpack.c.l.b16 %v4202
        %v4340 = vunpack.c.l.b16 %v4204
        %v4341 = vunpack.c.l.b16 %v4206
        %v4342 = vunpack.c.l.b16 %v4208
        %v4343 = vunpack.c.l.b16 %v4210
        %v4344 = vunpack.c.l.b16 %v4212
        %v4345 = vpack.c.b16 %v4338, %v4337
        %v4346 = vpack.c.b16 %v4340, %v4339
        %v4347 = vpack.c.b16 %v4342, %v4341
        %v4348 = vpack.c.b16 %v4344, %v4343
        %4349 = vrot.lane.b32.xlu0 %v4345, 64
        %v4350 = vpop.permute.xlu0 %4349
        %4351 = vrot.lane.b32.xlu0 %v4346, 64
        %v4352 = vpop.permute.xlu0 %4351
        %4353 = vrot.lane.b32.xlu0 %v4347, 64
        %v4354 = vpop.permute.xlu0 %4353
        %4355 = vrot.lane.b32.xlu0 %v4348, 64
        %v4356 = vpop.permute.xlu0 %4355
        %v4359 = vsel %vm1484, %v4325, %v4350
        %v4363 = vsel %vm1484, %v4326, %v4352
        %v4367 = vsel %vm1484, %v4327, %v4354
        %v4371 = vsel %vm1484, %v4328, %v4356
        %v4373 = vld [vmem:[%s904] sm:$0xf]
        %v4374 = vld [vmem:[%s904 + $0x4] sm:$0xf]
        %v4375 = vld [vmem:[%s904 + $0x8] sm:$0xf]
        %v4376 = vld [vmem:[%s904 + $0xc] sm:$0xf]
        %v4377 = vld [vmem:[%s904 + $0x10] sm:$0xf]
        %v4378 = vld [vmem:[%s904 + $0x14] sm:$0xf]
        %v4379 = vld [vmem:[%s904 + $0x18] sm:$0xf]
        %v4380 = vld [vmem:[%s904 + $0x1c] sm:$0xf]
        %v4381 = vld [vmem:[%s904 + $0x20] sm:$0xf]
        %v4382 = vld [vmem:[%s904 + $0x24] sm:$0xf]
        %v4383 = vld [vmem:[%s904 + $0x28] sm:$0xf]
        %v4384 = vld [vmem:[%s904 + $0x2c] sm:$0xf]
        %v4385 = vld [vmem:[%s904 + $0x30] sm:$0xf]
        %v4386 = vld [vmem:[%s904 + $0x34] sm:$0xf]
        %v4387 = vld [vmem:[%s904 + $0x38] sm:$0xf]
        %v4388 = vld [vmem:[%s904 + $0x3c] sm:$0xf]
        %v4405 = vunpack.c.l.b16 %v4373
        %v4406 = vunpack.c.l.b16 %v4374
        %v4407 = vunpack.c.l.b16 %v4375
        %v4408 = vunpack.c.l.b16 %v4376
        %v4409 = vunpack.c.l.b16 %v4377
        %v4410 = vunpack.c.l.b16 %v4378
        %v4411 = vunpack.c.l.b16 %v4379
        %v4412 = vunpack.c.l.b16 %v4380
        %v4413 = vunpack.c.l.b16 %v4381
        %v4414 = vunpack.c.l.b16 %v4382
        %v4415 = vunpack.c.l.b16 %v4383
        %v4416 = vunpack.c.l.b16 %v4384
        %v4417 = vunpack.c.l.b16 %v4385
        %v4418 = vunpack.c.l.b16 %v4386
        %v4419 = vunpack.c.l.b16 %v4387
        %v4420 = vunpack.c.l.b16 %v4388
        %v4421 = vpack.c.b16 %v4406, %v4405
        %v4422 = vpack.c.b16 %v4408, %v4407
        %v4423 = vpack.c.b16 %v4410, %v4409
        %v4424 = vpack.c.b16 %v4412, %v4411
        %v4425 = vpack.c.b16 %v4414, %v4413
        %v4426 = vpack.c.b16 %v4416, %v4415
        %v4427 = vpack.c.b16 %v4418, %v4417
        %v4428 = vpack.c.b16 %v4420, %v4419
        %4437 = vmatprep.subr.bf16.mxu0 0
        %4438 = vmatpush1.bf16.msra.mxu0 %v4421
        %4439 = vmatprep.subr.bf16.mxu0 0
        %4440 = vmatpush1.bf16.msra.mxu0 %v4422
        %4441 = vmatprep.subr.bf16.mxu0 0
        %4442 = vmatpush1.bf16.msra.mxu0 %v4423
        %4443 = vmatprep.subr.bf16.mxu0 0
        %4444 = vmatpush1.bf16.msra.mxu0 %v4424
        %4445 = vmatprep.subr.bf16.mxu0 0
        %4446 = vmatpush1.bf16.msra.mxu0 %v4425
        %4447 = vmatprep.subr.bf16.mxu0 0
        %4448 = vmatpush1.bf16.msra.mxu0 %v4426
        %4449 = vmatprep.subr.bf16.mxu0 0
        %4450 = vmatpush1.bf16.msra.mxu0 %v4427
        %4451 = vmatprep.subr.bf16.mxu0 0
        %4452 = vmatpush1.bf16.msra.mxu0 %v4428
        %4453 = vmatprep.subr.bf16.mxu0 0
        %4454 = vmatpush1.bf16.msra.mxu0 0
        %4455 = vmatprep.subr.bf16.mxu0 0
        %4456 = vmatpush1.bf16.msra.mxu0 0
        %4457 = vmatprep.subr.bf16.mxu0 0
        %4458 = vmatpush1.bf16.msra.mxu0 0
        %4459 = vmatprep.subr.bf16.mxu0 0
        %4460 = vmatpush1.bf16.msra.mxu0 0
        %4461 = vmatprep.subr.bf16.mxu0 0
        %4462 = vmatpush1.bf16.msra.mxu0 0
        %4463 = vmatprep.subr.bf16.mxu0 0
        %4464 = vmatpush1.bf16.msra.mxu0 0
        %4465 = vmatprep.subr.bf16.mxu0 0
        %4466 = vmatpush1.bf16.msra.mxu0 0
        %4467 = vmatprep.subr.bf16.mxu0 0
        %4468 = vmatpush1.bf16.msra.mxu0 0
        %4469 = vmatprep.mubr.bf16.mxu0 0
        %4470 = vmatmul.mubr.bf16.gmra.mrb[0].mxu0 %v4359
        %v4471 = vpop.f32.mrb[0].mxu0
        %v4472 = vadd.f32 0.0, %v4471
        %v4473 = vpop.f32.mrb[0].mxu0
        %v4474 = vpop.f32.mrb[0].mxu0
        %v4475 = vadd.f32 0.0, %v4474
        %v4476 = vpop.f32.mrb[0].mxu0
        %4477 = vmatprep.mubr.bf16.mxu0 0
        %4478 = vmatmul.mubr.bf16.gmra.mrb[0].mxu0 %v4363
        %v4479 = vpop.f32.mrb[0].mxu0
        %v4480 = vadd.f32 0.0, %v4479
        %v4481 = vpop.f32.mrb[0].mxu0
        %v4482 = vpop.f32.mrb[0].mxu0
        %v4483 = vadd.f32 0.0, %v4482
        %v4484 = vpop.f32.mrb[0].mxu0
        %4485 = vmatprep.mubr.bf16.mxu0 0
        %4486 = vmatmul.mubr.bf16.gmra.mrb[0].mxu0 %v4367
        %v4487 = vpop.f32.mrb[0].mxu0
        %v4488 = vadd.f32 0.0, %v4487
        %v4489 = vpop.f32.mrb[0].mxu0
        %v4490 = vpop.f32.mrb[0].mxu0
        %v4491 = vadd.f32 0.0, %v4490
        %v4492 = vpop.f32.mrb[0].mxu0
        %4493 = vmatprep.mubr.bf16.mxu0 0
        %4494 = vmatmul.mubr.bf16.gmra.mrb[0].mxu0 %v4371
        %v4495 = vpop.f32.mrb[0].mxu0
        %v4496 = vadd.f32 0.0, %v4495
        %v4497 = vpop.f32.mrb[0].mxu0
        %v4498 = vpop.f32.mrb[0].mxu0
        %v4499 = vadd.f32 0.0, %v4498
        %v4500 = vpop.f32.mrb[0].mxu0
        %4501 = vdwg.mxu0
        %v4518 = vunpack.c.l.b16 %v4181
        %v4519 = vunpack.c.l.b16 %v4182
        %v4520 = vunpack.c.l.b16 %v4183
        %v4521 = vunpack.c.l.b16 %v4184
        %v4522 = vunpack.c.l.b16 %v4185
        %v4523 = vunpack.c.l.b16 %v4186
        %v4524 = vunpack.c.l.b16 %v4187
        %v4525 = vunpack.c.l.b16 %v4188
        %v4526 = vunpack.c.l.b16 %v4189
        %v4527 = vunpack.c.l.b16 %v4190
        %v4528 = vunpack.c.l.b16 %v4191
        %v4529 = vunpack.c.l.b16 %v4192
        %v4530 = vunpack.c.l.b16 %v4193
        %v4531 = vunpack.c.l.b16 %v4194
        %v4532 = vunpack.c.l.b16 %v4195
        %v4533 = vunpack.c.l.b16 %v4196
        %v4534 = vpack.c.b16 %v4519, %v4518
        %v4535 = vpack.c.b16 %v4521, %v4520
        %v4536 = vpack.c.b16 %v4523, %v4522
        %v4537 = vpack.c.b16 %v4525, %v4524
        %v4538 = vpack.c.b16 %v4527, %v4526
        %v4539 = vpack.c.b16 %v4529, %v4528
        %v4540 = vpack.c.b16 %v4531, %v4530
        %v4541 = vpack.c.b16 %v4533, %v4532
        %4550 = vmatprep.subr.bf16.mxu0 0
        %4551 = vmatpush1.bf16.msra.mxu0 %v4534
        %4552 = vmatprep.subr.bf16.mxu0 0
        %4553 = vmatpush1.bf16.msra.mxu0 %v4535
        %4554 = vmatprep.subr.bf16.mxu0 0
        %4555 = vmatpush1.bf16.msra.mxu0 %v4536
        %4556 = vmatprep.subr.bf16.mxu0 0
        %4557 = vmatpush1.bf16.msra.mxu0 %v4537
        %4558 = vmatprep.subr.bf16.mxu0 0
        %4559 = vmatpush1.bf16.msra.mxu0 %v4538
        %4560 = vmatprep.subr.bf16.mxu0 0
        %4561 = vmatpush1.bf16.msra.mxu0 %v4539
        %4562 = vmatprep.subr.bf16.mxu0 0
        %4563 = vmatpush1.bf16.msra.mxu0 %v4540
        %4564 = vmatprep.subr.bf16.mxu0 0
        %4565 = vmatpush1.bf16.msra.mxu0 %v4541
        %4566 = vmatprep.subr.bf16.mxu0 0
        %4567 = vmatpush1.bf16.msra.mxu0 0
        %4568 = vmatprep.subr.bf16.mxu0 0
        %4569 = vmatpush1.bf16.msra.mxu0 0
        %4570 = vmatprep.subr.bf16.mxu0 0
        %4571 = vmatpush1.bf16.msra.mxu0 0
        %4572 = vmatprep.subr.bf16.mxu0 0
        %4573 = vmatpush1.bf16.msra.mxu0 0
        %4574 = vmatprep.subr.bf16.mxu0 0
        %4575 = vmatpush1.bf16.msra.mxu0 0
        %4576 = vmatprep.subr.bf16.mxu0 0
        %4577 = vmatpush1.bf16.msra.mxu0 0
        %4578 = vmatprep.subr.bf16.mxu0 0
        %4579 = vmatpush1.bf16.msra.mxu0 0
        %4580 = vmatprep.subr.bf16.mxu0 0
        %4581 = vmatpush1.bf16.msra.mxu0 0
        %4582 = vmatprep.mubr.bf16.mxu0 0
        %4583 = vmatmul.mubr.bf16.gmra.mrb[0].mxu0 %v4167
        %v4584 = vpop.f32.mrb[0].mxu0
        %v4585 = vadd.f32 %v4472, %v4584
        %v4586 = vpop.f32.mrb[0].mxu0
        %v4587 = vpop.f32.mrb[0].mxu0
        %v4588 = vadd.f32 %v4475, %v4587
        %v4589 = vpop.f32.mrb[0].mxu0
        %4590 = vmatprep.mubr.bf16.mxu0 0
        %4591 = vmatmul.mubr.bf16.gmra.mrb[0].mxu0 %v4171
        %v4592 = vpop.f32.mrb[0].mxu0
        %v4593 = vadd.f32 %v4480, %v4592
        %v4594 = vpop.f32.mrb[0].mxu0
        %v4595 = vpop.f32.mrb[0].mxu0
        %v4596 = vadd.f32 %v4483, %v4595
        %v4597 = vpop.f32.mrb[0].mxu0
        %4598 = vmatprep.mubr.bf16.mxu0 0
        %4599 = vmatmul.mubr.bf16.gmra.mrb[0].mxu0 %v4175
        %v4600 = vpop.f32.mrb[0].mxu0
        %v4601 = vadd.f32 %v4488, %v4600
        %v4602 = vpop.f32.mrb[0].mxu0
        %v4603 = vpop.f32.mrb[0].mxu0
        %v4604 = vadd.f32 %v4491, %v4603
        %v4605 = vpop.f32.mrb[0].mxu0
        %4606 = vmatprep.mubr.bf16.mxu0 0
        %4607 = vmatmul.mubr.bf16.gmra.mrb[0].mxu0 %v4179
        %v4608 = vpop.f32.mrb[0].mxu0
        %v4609 = vadd.f32 %v4496, %v4608
        %v4610 = vpop.f32.mrb[0].mxu0
        %v4611 = vpop.f32.mrb[0].mxu0
        %v4612 = vadd.f32 %v4499, %v4611
        %v4613 = vpop.f32.mrb[0].mxu0
        %4614 = vdwg.mxu0
        %v4615 = vld [vmem:[%s909] sm:$0xf]
        %v4616 = vld [vmem:[%s909 + $0x4] sm:$0xf]
        %v4617 = vld [vmem:[%s909 + $0x8] sm:$0xf]
        %v4618 = vld [vmem:[%s909 + $0xc] sm:$0xf]
        %v4619 = vld [vmem:[%s909 + $0x10] sm:$0xf]
        %v4620 = vld [vmem:[%s909 + $0x14] sm:$0xf]
        %v4621 = vld [vmem:[%s909 + $0x18] sm:$0xf]
        %v4622 = vld [vmem:[%s909 + $0x1c] sm:$0xf]
        %v4631 = vunpack.c.l.b16 %v4615
        %v4632 = vunpack.c.l.b16 %v4616
        %v4633 = vunpack.c.l.b16 %v4617
        %v4634 = vunpack.c.l.b16 %v4618
        %v4635 = vunpack.c.l.b16 %v4619
        %v4636 = vunpack.c.l.b16 %v4620
        %v4637 = vunpack.c.l.b16 %v4621
        %v4638 = vunpack.c.l.b16 %v4622
        %v4639 = vpack.c.b16 %v4632, %v4631
        %v4640 = vpack.c.b16 %v4634, %v4633
        %v4641 = vpack.c.b16 %v4636, %v4635
        %v4642 = vpack.c.b16 %v4638, %v4637
        %v4648 = vsel %vm1484, %v3765, 0
        %v4651 = vsel %vm1484, %v3766, 0
        %v4654 = vsel %vm1484, %v3767, 0
        %v4657 = vsel %vm1484, %v3768, 0
        %4659 = vmatprep.subr.bf16.mxu0 0
        %4660 = vmatpush1.bf16.msra.mxu0 %v4639
        %4661 = vmatprep.subr.bf16.mxu0 0
        %4662 = vmatpush1.bf16.msra.mxu0 %v4640
        %4663 = vmatprep.subr.bf16.mxu0 0
        %4664 = vmatpush1.bf16.msra.mxu0 %v4641
        %4665 = vmatprep.subr.bf16.mxu0 0
        %4666 = vmatpush1.bf16.msra.mxu0 %v4642
        %4667 = vmatprep.subr.bf16.mxu0 0
        %4668 = vmatpush1.bf16.msra.mxu0 0
        %4669 = vmatprep.subr.bf16.mxu0 0
        %4670 = vmatpush1.bf16.msra.mxu0 0
        %4671 = vmatprep.subr.bf16.mxu0 0
        %4672 = vmatpush1.bf16.msra.mxu0 0
        %4673 = vmatprep.subr.bf16.mxu0 0
        %4674 = vmatpush1.bf16.msra.mxu0 0
        %4675 = vmatprep.subr.bf16.mxu0 0
        %4676 = vmatpush1.bf16.msra.mxu0 0
        %4677 = vmatprep.subr.bf16.mxu0 0
        %4678 = vmatpush1.bf16.msra.mxu0 0
        %4679 = vmatprep.subr.bf16.mxu0 0
        %4680 = vmatpush1.bf16.msra.mxu0 0
        %4681 = vmatprep.subr.bf16.mxu0 0
        %4682 = vmatpush1.bf16.msra.mxu0 0
        %4683 = vmatprep.subr.bf16.mxu0 0
        %4684 = vmatpush1.bf16.msra.mxu0 0
        %4685 = vmatprep.subr.bf16.mxu0 0
        %4686 = vmatpush1.bf16.msra.mxu0 0
        %4687 = vmatprep.subr.bf16.mxu0 0
        %4688 = vmatpush1.bf16.msra.mxu0 0
        %4689 = vmatprep.subr.bf16.mxu0 0
        %4690 = vmatpush1.bf16.msra.mxu0 0
        %4691 = vmatprep.mubr.bf16.mxu0 0
        %4692 = vmatmul.mubr.bf16.gmra.mrb[0].mxu0 %v4648
        %v4693 = vpop.f32.mrb[0].mxu0
        %v4694 = vadd.f32 0.0, %v4693
        %v4695 = vpop.f32.mrb[0].mxu0
        %v4696 = vpop.f32.mrb[0].mxu0
        %v4697 = vadd.f32 0.0, %v4696
        %v4698 = vpop.f32.mrb[0].mxu0
        %4699 = vmatprep.mubr.bf16.mxu0 0
        %4700 = vmatmul.mubr.bf16.gmra.mrb[0].mxu0 %v4651
        %v4701 = vpop.f32.mrb[0].mxu0
        %v4702 = vadd.f32 0.0, %v4701
        %v4703 = vpop.f32.mrb[0].mxu0
        %v4704 = vpop.f32.mrb[0].mxu0
        %v4705 = vadd.f32 0.0, %v4704
        %v4706 = vpop.f32.mrb[0].mxu0
        %4707 = vmatprep.mubr.bf16.mxu0 0
        %4708 = vmatmul.mubr.bf16.gmra.mrb[0].mxu0 %v4654
        %v4709 = vpop.f32.mrb[0].mxu0
        %v4710 = vadd.f32 0.0, %v4709
        %v4711 = vpop.f32.mrb[0].mxu0
        %v4712 = vpop.f32.mrb[0].mxu0
        %v4713 = vadd.f32 0.0, %v4712
        %v4714 = vpop.f32.mrb[0].mxu0
        %4715 = vmatprep.mubr.bf16.mxu0 0
        %4716 = vmatmul.mubr.bf16.gmra.mrb[0].mxu0 %v4657
        %v4717 = vpop.f32.mrb[0].mxu0
        %v4718 = vadd.f32 0.0, %v4717
        %v4719 = vpop.f32.mrb[0].mxu0
        %v4720 = vpop.f32.mrb[0].mxu0
        %v4721 = vadd.f32 0.0, %v4720
        %v4722 = vpop.f32.mrb[0].mxu0
        %4723 = vdwg.mxu0
        %v4724 = vadd.f32 %v4585, %v4694
        %v4725 = vadd.f32 %v4588, %v4697
        %v4726 = vadd.f32 %v4593, %v4702
        %v4727 = vadd.f32 %v4596, %v4705
        %v4728 = vadd.f32 %v4601, %v4710
        %v4729 = vadd.f32 %v4604, %v4713
        %v4730 = vadd.f32 %v4609, %v4718
        %v4731 = vadd.f32 %v4612, %v4721
        %v4732 = vld [vmem:[%s914] sm:$0xf]
        %v4733 = vld [vmem:[%s914 + $0x4] sm:$0xf]
        %v4734 = vld [vmem:[%s914 + $0x8] sm:$0xf]
        %v4735 = vld [vmem:[%s914 + $0xc] sm:$0xf]
        %v4736 = vld [vmem:[%s914 + $0x10] sm:$0xf]
        %v4737 = vld [vmem:[%s914 + $0x14] sm:$0xf]
        %v4738 = vld [vmem:[%s914 + $0x18] sm:$0xf]
        %v4739 = vld [vmem:[%s914 + $0x1c] sm:$0xf]
        %v4748 = vunpack.c.l.b16 %v4732
        %v4749 = vunpack.c.l.b16 %v4733
        %v4750 = vunpack.c.l.b16 %v4734
        %v4751 = vunpack.c.l.b16 %v4735
        %v4752 = vunpack.c.l.b16 %v4736
        %v4753 = vunpack.c.l.b16 %v4737
        %v4754 = vunpack.c.l.b16 %v4738
        %v4755 = vunpack.c.l.b16 %v4739
        %v4756 = vpack.c.b16 %v4749, %v4748
        %v4757 = vpack.c.b16 %v4751, %v4750
        %v4758 = vpack.c.b16 %v4753, %v4752
        %v4759 = vpack.c.b16 %v4755, %v4754
        %v4765 = vsel %vm1484, %v3881, 0
        %v4768 = vsel %vm1484, %v3882, 0
        %v4771 = vsel %vm1484, %v3883, 0
        %v4774 = vsel %vm1484, %v3884, 0
        %4776 = vmatprep.subr.bf16.mxu0 0
        %4777 = vmatpush1.bf16.msra.mxu0 %v4756
        %4778 = vmatprep.subr.bf16.mxu0 0
        %4779 = vmatpush1.bf16.msra.mxu0 %v4757
        %4780 = vmatprep.subr.bf16.mxu0 0
        %4781 = vmatpush1.bf16.msra.mxu0 %v4758
        %4782 = vmatprep.subr.bf16.mxu0 0
        %4783 = vmatpush1.bf16.msra.mxu0 %v4759
        %4784 = vmatprep.subr.bf16.mxu0 0
        %4785 = vmatpush1.bf16.msra.mxu0 0
        %4786 = vmatprep.subr.bf16.mxu0 0
        %4787 = vmatpush1.bf16.msra.mxu0 0
        %4788 = vmatprep.subr.bf16.mxu0 0
        %4789 = vmatpush1.bf16.msra.mxu0 0
        %4790 = vmatprep.subr.bf16.mxu0 0
        %4791 = vmatpush1.bf16.msra.mxu0 0
        %4792 = vmatprep.subr.bf16.mxu0 0
        %4793 = vmatpush1.bf16.msra.mxu0 0
        %4794 = vmatprep.subr.bf16.mxu0 0
        %4795 = vmatpush1.bf16.msra.mxu0 0
        %4796 = vmatprep.subr.bf16.mxu0 0
        %4797 = vmatpush1.bf16.msra.mxu0 0
        %4798 = vmatprep.subr.bf16.mxu0 0
        %4799 = vmatpush1.bf16.msra.mxu0 0
        %4800 = vmatprep.subr.bf16.mxu0 0
        %4801 = vmatpush1.bf16.msra.mxu0 0
        %4802 = vmatprep.subr.bf16.mxu0 0
        %4803 = vmatpush1.bf16.msra.mxu0 0
        %4804 = vmatprep.subr.bf16.mxu0 0
        %4805 = vmatpush1.bf16.msra.mxu0 0
        %4806 = vmatprep.subr.bf16.mxu0 0
        %4807 = vmatpush1.bf16.msra.mxu0 0
        %4808 = vmatprep.mubr.bf16.mxu0 0
        %4809 = vmatmul.mubr.bf16.gmra.mrb[0].mxu0 %v4765
        %v4810 = vpop.f32.mrb[0].mxu0
        %v4811 = vadd.f32 0.0, %v4810
        %v4812 = vpop.f32.mrb[0].mxu0
        %v4813 = vpop.f32.mrb[0].mxu0
        %v4814 = vadd.f32 0.0, %v4813
        %v4815 = vpop.f32.mrb[0].mxu0
        %4816 = vmatprep.mubr.bf16.mxu0 0
        %4817 = vmatmul.mubr.bf16.gmra.mrb[0].mxu0 %v4768
        %v4818 = vpop.f32.mrb[0].mxu0
        %v4819 = vadd.f32 0.0, %v4818
        %v4820 = vpop.f32.mrb[0].mxu0
        %v4821 = vpop.f32.mrb[0].mxu0
        %v4822 = vadd.f32 0.0, %v4821
        %v4823 = vpop.f32.mrb[0].mxu0
        %4824 = vmatprep.mubr.bf16.mxu0 0
        %4825 = vmatmul.mubr.bf16.gmra.mrb[0].mxu0 %v4771
        %v4826 = vpop.f32.mrb[0].mxu0
        %v4827 = vadd.f32 0.0, %v4826
        %v4828 = vpop.f32.mrb[0].mxu0
        %v4829 = vpop.f32.mrb[0].mxu0
        %v4830 = vadd.f32 0.0, %v4829
        %v4831 = vpop.f32.mrb[0].mxu0
        %4832 = vmatprep.mubr.bf16.mxu0 0
        %4833 = vmatmul.mubr.bf16.gmra.mrb[0].mxu0 %v4774
        %v4834 = vpop.f32.mrb[0].mxu0
        %v4835 = vadd.f32 0.0, %v4834
        %v4836 = vpop.f32.mrb[0].mxu0
        %v4837 = vpop.f32.mrb[0].mxu0
        %v4838 = vadd.f32 0.0, %v4837
        %v4839 = vpop.f32.mrb[0].mxu0
        %4840 = vdwg.mxu0
        %v4841 = vadd.f32 %v4724, %v4811
        %v4842 = vadd.f32 %v4725, %v4814
        %v4843 = vadd.f32 %v4726, %v4819
        %v4844 = vadd.f32 %v4727, %v4822
        %v4845 = vadd.f32 %v4728, %v4827
        %v4846 = vadd.f32 %v4729, %v4830
        %v4847 = vadd.f32 %v4730, %v4835
        %v4848 = vadd.f32 %v4731, %v4838
        %v4849 = vld [vmem:[%s917] sm:$0x1]
        %v4851 = vlaneseq
        %v4852 = vshrl.u32 %v4851, 7
        %v4853 = vsub.s32 0, %v4852
        %v4854 = vrot.slane %v4849, %v4853
        %v4856 = vadd.f32 %v4841, %v4854
        %v4857 = vadd.f32 %v4842, %v4854
        %v4858 = vadd.f32 %v4843, %v4854
        %v4859 = vadd.f32 %v4844, %v4854
        %v4860 = vadd.f32 %v4845, %v4854
        %v4861 = vadd.f32 %v4846, %v4854
        %v4862 = vadd.f32 %v4847, %v4854
        %v4863 = vadd.f32 %v4848, %v4854
        %v4864 = vsub.f32 0.0, %v4856
        %v4865 = vsub.f32 0.0, %v4857
        %v4866 = vsub.f32 0.0, %v4858
        %v4867 = vsub.f32 0.0, %v4859
        %v4868 = vsub.f32 0.0, %v4860
        %v4869 = vsub.f32 0.0, %v4861
        %v4870 = vsub.f32 0.0, %v4862
        %v4871 = vsub.f32 0.0, %v4863
        %4880 = vrot.lane.b32.xlu0 %v4864, 32
        %v4881 = vpop.permute.xlu0 %4880
        %4882 = vrot.lane.b32.xlu0 %v4865, 32
        %v4883 = vpop.permute.xlu0 %4882
        %4884 = vrot.lane.b32.xlu0 %v4866, 32
        %v4885 = vpop.permute.xlu0 %4884
        %4886 = vrot.lane.b32.xlu0 %v4867, 32
        %v4887 = vpop.permute.xlu0 %4886
        %4888 = vrot.lane.b32.xlu0 %v4868, 32
        %v4889 = vpop.permute.xlu0 %4888
        %4890 = vrot.lane.b32.xlu0 %v4869, 32
        %v4891 = vpop.permute.xlu0 %4890
        %4892 = vrot.lane.b32.xlu0 %v4870, 32
        %v4893 = vpop.permute.xlu0 %4892
        %4894 = vrot.lane.b32.xlu0 %v4871, 32
        %v4895 = vpop.permute.xlu0 %4894
        %v4904 = vsel %vm1043, %v4856, %v4881
        %v4905 = vsel %vm1043, %v4857, %v4883
        %v4906 = vsel %vm1043, %v4858, %v4885
        %v4907 = vsel %vm1043, %v4859, %v4887
        %v4908 = vsel %vm1043, %v4860, %v4889
        %v4909 = vsel %vm1043, %v4861, %v4891
        %v4910 = vsel %vm1043, %v4862, %v4893
        %v4911 = vsel %vm1043, %v4863, %v4895
        %vm4912 = vcmp.gt.f32.partialorder %v4904, 0.0
        %vm4913 = vcmp.gt.f32.partialorder %v4905, 0.0
        %vm4914 = vcmp.gt.f32.partialorder %v4906, 0.0
        %vm4915 = vcmp.gt.f32.partialorder %v4907, 0.0
        %vm4916 = vcmp.gt.f32.partialorder %v4908, 0.0
        %vm4917 = vcmp.gt.f32.partialorder %v4909, 0.0
        %vm4918 = vcmp.gt.f32.partialorder %v4910, 0.0
        %vm4919 = vcmp.gt.f32.partialorder %v4911, 0.0
        %v4920 = vmin.f32 %v4904, 0.0
        %v4921 = vmin.f32 %v4905, 0.0
        %v4922 = vmin.f32 %v4906, 0.0
        %v4923 = vmin.f32 %v4907, 0.0
        %v4924 = vmin.f32 %v4908, 0.0
        %v4925 = vmin.f32 %v4909, 0.0
        %v4926 = vmin.f32 %v4910, 0.0
        %v4927 = vmin.f32 %v4911, 0.0
        %v4928 = vmul.f32 %v4920, 1.442695
        %v4929 = vpow.pop %v4928
        %v4930 = vmul.f32 %v4921, 1.442695
        %v4931 = vpow.pop %v4930
        %v4932 = vmul.f32 %v4922, 1.442695
        %v4933 = vpow.pop %v4932
        %v4934 = vmul.f32 %v4923, 1.442695
        %v4935 = vpow.pop %v4934
        %v4936 = vmul.f32 %v4924, 1.442695
        %v4937 = vpow.pop %v4936
        %v4938 = vmul.f32 %v4925, 1.442695
        %v4939 = vpow.pop %v4938
        %v4940 = vmul.f32 %v4926, 1.442695
        %v4941 = vpow.pop %v4940
        %v4942 = vmul.f32 %v4927, 1.442695
        %v4943 = vpow.pop %v4942
        %v4944 = vsub.f32 %v4929, 1.0
        %v4945 = vsub.f32 %v4931, 1.0
        %v4946 = vsub.f32 %v4933, 1.0
        %v4947 = vsub.f32 %v4935, 1.0
        %v4948 = vsub.f32 %v4937, 1.0
        %v4949 = vsub.f32 %v4939, 1.0
        %v4950 = vsub.f32 %v4941, 1.0
        %v4951 = vsub.f32 %v4943, 1.0
        %v4952 = vsel %vm4912, %v4904, %v4944
        %v4953 = vsel %vm4913, %v4905, %v4945
        %v4954 = vsel %vm4914, %v4906, %v4946
        %v4955 = vsel %vm4915, %v4907, %v4947
        %v4956 = vsel %vm4916, %v4908, %v4948
        %v4957 = vsel %vm4917, %v4909, %v4949
        %v4958 = vsel %vm4918, %v4910, %v4950
        %v4959 = vsel %vm4919, %v4911, %v4951
        %v4960 = vpack.c.bf16 %v4952, %v4952
        %v4961 = vpack.c.bf16 %v4953, %v4953
        %v4962 = vpack.c.bf16 %v4954, %v4954
        %v4963 = vpack.c.bf16 %v4955, %v4955
        %v4964 = vpack.c.bf16 %v4956, %v4956
        %v4965 = vpack.c.bf16 %v4957, %v4957
        %v4966 = vpack.c.bf16 %v4958, %v4958
        %v4967 = vpack.c.bf16 %v4959, %v4959
        %4968 = vst.msk [vmem:[%s1216 + $0x4] sm:$0xf] %vm1217, %v4960
        %4969 = vst.msk [vmem:[%s1216 + $0x10] sm:$0xf] %vm1217, %v4961
        %4970 = vst.msk [vmem:[%s1216 + $0x1c] sm:$0xf] %vm1217, %v4962
        %4971 = vst.msk [vmem:[%s1216 + $0x28] sm:$0xf] %vm1217, %v4963
        %4972 = vst.msk [vmem:[%s1216 + $0x34] sm:$0xf] %vm1217, %v4964
        %4973 = vst.msk [vmem:[%s1216 + $0x40] sm:$0xf] %vm1217, %v4965
        %4974 = vst.msk [vmem:[%s1216 + $0x4c] sm:$0xf] %vm1217, %v4966
        %4975 = vst.msk [vmem:[%s1216 + $0x58] sm:$0xf] %vm1217, %v4967
        %v4976 = vld [vmem:[#allocation2] sm:$0x8]
        %v4977 = vld [vmem:[#allocation2 + $0x4] sm:$0xf]
        %v4978 = vld [vmem:[#allocation2 + $0xc] sm:$0x8]
        %v4979 = vld [vmem:[#allocation2 + $0x10] sm:$0xf]
        %v4980 = vld [vmem:[#allocation2 + $0x18] sm:$0x8]
        %v4981 = vld [vmem:[#allocation2 + $0x1c] sm:$0xf]
        %v4982 = vld [vmem:[#allocation2 + $0x24] sm:$0x8]
        %v4983 = vld [vmem:[#allocation2 + $0x28] sm:$0xf]
        %v4984 = vld [vmem:[#allocation2 + $0x30] sm:$0x8]
        %v4985 = vld [vmem:[#allocation2 + $0x34] sm:$0xf]
        %v4986 = vld [vmem:[#allocation2 + $0x3c] sm:$0x8]
        %v4987 = vld [vmem:[#allocation2 + $0x40] sm:$0xf]
        %v4988 = vld [vmem:[#allocation2 + $0x48] sm:$0x8]
        %v4989 = vld [vmem:[#allocation2 + $0x4c] sm:$0xf]
        %v4990 = vld [vmem:[#allocation2 + $0x54] sm:$0x8]
        %v4991 = vld [vmem:[#allocation2 + $0x58] sm:$0xf]
        %v4993 = vshrl.u32 %v4976, 16
        %v4995 = vrot.slane %v4993, 7
        %v4996 = vrot.slane %v4995, 4
        %v4998 = vshrl.u32 %v4977, 16
        %v5000 = vrot.slane %v4998, 7
        %v5001 = vshll.u32 %v4977, 16
        %v5003 = vor.u32 %v5000, %v5001
        %v5004 = vsel %vm1244, %v4996, %v5003
        %v5006 = vshrl.u32 %v4978, 16
        %v5008 = vrot.slane %v5006, 7
        %v5009 = vrot.slane %v5008, 4
        %v5011 = vshrl.u32 %v4979, 16
        %v5013 = vrot.slane %v5011, 7
        %v5014 = vshll.u32 %v4979, 16
        %v5016 = vor.u32 %v5013, %v5014
        %v5017 = vsel %vm1244, %v5009, %v5016
        %v5019 = vshrl.u32 %v4980, 16
        %v5021 = vrot.slane %v5019, 7
        %v5022 = vrot.slane %v5021, 4
        %v5024 = vshrl.u32 %v4981, 16
        %v5026 = vrot.slane %v5024, 7
        %v5027 = vshll.u32 %v4981, 16
        %v5029 = vor.u32 %v5026, %v5027
        %v5030 = vsel %vm1244, %v5022, %v5029
        %v5032 = vshrl.u32 %v4982, 16
        %v5034 = vrot.slane %v5032, 7
        %v5035 = vrot.slane %v5034, 4
        %v5037 = vshrl.u32 %v4983, 16
        %v5039 = vrot.slane %v5037, 7
        %v5040 = vshll.u32 %v4983, 16
        %v5042 = vor.u32 %v5039, %v5040
        %v5043 = vsel %vm1244, %v5035, %v5042
        %v5045 = vshrl.u32 %v4984, 16
        %v5047 = vrot.slane %v5045, 7
        %v5048 = vrot.slane %v5047, 4
        %v5050 = vshrl.u32 %v4985, 16
        %v5052 = vrot.slane %v5050, 7
        %v5053 = vshll.u32 %v4985, 16
        %v5055 = vor.u32 %v5052, %v5053
        %v5056 = vsel %vm1244, %v5048, %v5055
        %v5058 = vshrl.u32 %v4986, 16
        %v5060 = vrot.slane %v5058, 7
        %v5061 = vrot.slane %v5060, 4
        %v5063 = vshrl.u32 %v4987, 16
        %v5065 = vrot.slane %v5063, 7
        %v5066 = vshll.u32 %v4987, 16
        %v5068 = vor.u32 %v5065, %v5066
        %v5069 = vsel %vm1244, %v5061, %v5068
        %v5071 = vshrl.u32 %v4988, 16
        %v5073 = vrot.slane %v5071, 7
        %v5074 = vrot.slane %v5073, 4
        %v5076 = vshrl.u32 %v4989, 16
        %v5078 = vrot.slane %v5076, 7
        %v5079 = vshll.u32 %v4989, 16
        %v5081 = vor.u32 %v5078, %v5079
        %v5082 = vsel %vm1244, %v5074, %v5081
        %v5084 = vshrl.u32 %v4990, 16
        %v5086 = vrot.slane %v5084, 7
        %v5087 = vrot.slane %v5086, 4
        %v5089 = vshrl.u32 %v4991, 16
        %v5091 = vrot.slane %v5089, 7
        %v5092 = vshll.u32 %v4991, 16
        %v5094 = vor.u32 %v5091, %v5092
        %v5095 = vsel %vm1244, %v5087, %v5094
        %v5096 = vunpack.c.l.b16 %v5004
        %v5097 = vunpack.c.l.b16 %v5017
        %v5098 = vunpack.c.l.b16 %v5030
        %v5099 = vunpack.c.l.b16 %v5043
        %v5100 = vunpack.c.l.b16 %v5056
        %v5101 = vunpack.c.l.b16 %v5069
        %v5102 = vunpack.c.l.b16 %v5082
        %v5103 = vunpack.c.l.b16 %v5095
        %v5104 = vpack.c.b16 %v5097, %v5096
        %v5105 = vpack.c.b16 %v5099, %v5098
        %v5106 = vpack.c.b16 %v5101, %v5100
        %v5107 = vpack.c.b16 %v5103, %v5102
        %v5116 = vunpack.c.l.b16 %v4977
        %v5117 = vunpack.c.l.b16 %v4979
        %v5118 = vunpack.c.l.b16 %v4981
        %v5119 = vunpack.c.l.b16 %v4983
        %v5120 = vunpack.c.l.b16 %v4985
        %v5121 = vunpack.c.l.b16 %v4987
        %v5122 = vunpack.c.l.b16 %v4989
        %v5123 = vunpack.c.l.b16 %v4991
        %v5124 = vpack.c.b16 %v5117, %v5116
        %v5125 = vpack.c.b16 %v5119, %v5118
        %v5126 = vpack.c.b16 %v5121, %v5120
        %v5127 = vpack.c.b16 %v5123, %v5122
        %5128 = vrot.lane.b32.xlu0 %v5124, 64
        %v5129 = vpop.permute.xlu0 %5128
        %5130 = vrot.lane.b32.xlu0 %v5125, 64
        %v5131 = vpop.permute.xlu0 %5130
        %5132 = vrot.lane.b32.xlu0 %v5126, 64
        %v5133 = vpop.permute.xlu0 %5132
        %5134 = vrot.lane.b32.xlu0 %v5127, 64
        %v5135 = vpop.permute.xlu0 %5134
        %v5138 = vsel %vm1484, %v5104, %v5129
        %v5142 = vsel %vm1484, %v5105, %v5131
        %v5146 = vsel %vm1484, %v5106, %v5133
        %v5150 = vsel %vm1484, %v5107, %v5135
        %v5152 = vld [vmem:[%s1216] sm:$0x8]
        %v5153 = vld [vmem:[%s1216 + $0x4] sm:$0xf]
        %v5154 = vld [vmem:[%s1216 + $0xc] sm:$0x8]
        %v5155 = vld [vmem:[%s1216 + $0x10] sm:$0xf]
        %v5156 = vld [vmem:[%s1216 + $0x18] sm:$0x8]
        %v5157 = vld [vmem:[%s1216 + $0x1c] sm:$0xf]
        %v5158 = vld [vmem:[%s1216 + $0x24] sm:$0x8]
        %v5159 = vld [vmem:[%s1216 + $0x28] sm:$0xf]
        %v5160 = vld [vmem:[%s1216 + $0x30] sm:$0x8]
        %v5161 = vld [vmem:[%s1216 + $0x34] sm:$0xf]
        %v5162 = vld [vmem:[%s1216 + $0x3c] sm:$0x8]
        %v5163 = vld [vmem:[%s1216 + $0x40] sm:$0xf]
        %v5164 = vld [vmem:[%s1216 + $0x48] sm:$0x8]
        %v5165 = vld [vmem:[%s1216 + $0x4c] sm:$0xf]
        %v5166 = vld [vmem:[%s1216 + $0x54] sm:$0x8]
        %v5167 = vld [vmem:[%s1216 + $0x58] sm:$0xf]
        %v5169 = vshrl.u32 %v5152, 16
        %v5171 = vrot.slane %v5169, 7
        %v5172 = vrot.slane %v5171, 4
        %v5174 = vshrl.u32 %v5153, 16
        %v5176 = vrot.slane %v5174, 7
        %v5177 = vshll.u32 %v5153, 16
        %v5179 = vor.u32 %v5176, %v5177
        %v5180 = vsel %vm1244, %v5172, %v5179
        %v5182 = vshrl.u32 %v5154, 16
        %v5184 = vrot.slane %v5182, 7
        %v5185 = vrot.slane %v5184, 4
        %v5187 = vshrl.u32 %v5155, 16
        %v5189 = vrot.slane %v5187, 7
        %v5190 = vshll.u32 %v5155, 16
        %v5192 = vor.u32 %v5189, %v5190
        %v5193 = vsel %vm1244, %v5185, %v5192
        %v5195 = vshrl.u32 %v5156, 16
        %v5197 = vrot.slane %v5195, 7
        %v5198 = vrot.slane %v5197, 4
        %v5200 = vshrl.u32 %v5157, 16
        %v5202 = vrot.slane %v5200, 7
        %v5203 = vshll.u32 %v5157, 16
        %v5205 = vor.u32 %v5202, %v5203
        %v5206 = vsel %vm1244, %v5198, %v5205
        %v5208 = vshrl.u32 %v5158, 16
        %v5210 = vrot.slane %v5208, 7
        %v5211 = vrot.slane %v5210, 4
        %v5213 = vshrl.u32 %v5159, 16
        %v5215 = vrot.slane %v5213, 7
        %v5216 = vshll.u32 %v5159, 16
        %v5218 = vor.u32 %v5215, %v5216
        %v5219 = vsel %vm1244, %v5211, %v5218
        %v5221 = vshrl.u32 %v5160, 16
        %v5223 = vrot.slane %v5221, 7
        %v5224 = vrot.slane %v5223, 4
        %v5226 = vshrl.u32 %v5161, 16
        %v5228 = vrot.slane %v5226, 7
        %v5229 = vshll.u32 %v5161, 16
        %v5231 = vor.u32 %v5228, %v5229
        %v5232 = vsel %vm1244, %v5224, %v5231
        %v5234 = vshrl.u32 %v5162, 16
        %v5236 = vrot.slane %v5234, 7
        %v5237 = vrot.slane %v5236, 4
        %v5239 = vshrl.u32 %v5163, 16
        %v5241 = vrot.slane %v5239, 7
        %v5242 = vshll.u32 %v5163, 16
        %v5244 = vor.u32 %v5241, %v5242
        %v5245 = vsel %vm1244, %v5237, %v5244
        %v5247 = vshrl.u32 %v5164, 16
        %v5249 = vrot.slane %v5247, 7
        %v5250 = vrot.slane %v5249, 4
        %v5252 = vshrl.u32 %v5165, 16
        %v5254 = vrot.slane %v5252, 7
        %v5255 = vshll.u32 %v5165, 16
        %v5257 = vor.u32 %v5254, %v5255
        %v5258 = vsel %vm1244, %v5250, %v5257
        %v5260 = vshrl.u32 %v5166, 16
        %v5262 = vrot.slane %v5260, 7
        %v5263 = vrot.slane %v5262, 4
        %v5265 = vshrl.u32 %v5167, 16
        %v5267 = vrot.slane %v5265, 7
        %v5268 = vshll.u32 %v5167, 16
        %v5270 = vor.u32 %v5267, %v5268
        %v5271 = vsel %vm1244, %v5263, %v5270
        %v5272 = vunpack.c.l.b16 %v5180
        %v5273 = vunpack.c.l.b16 %v5193
        %v5274 = vunpack.c.l.b16 %v5206
        %v5275 = vunpack.c.l.b16 %v5219
        %v5276 = vunpack.c.l.b16 %v5232
        %v5277 = vunpack.c.l.b16 %v5245
        %v5278 = vunpack.c.l.b16 %v5258
        %v5279 = vunpack.c.l.b16 %v5271
        %v5280 = vpack.c.b16 %v5273, %v5272
        %v5281 = vpack.c.b16 %v5275, %v5274
        %v5282 = vpack.c.b16 %v5277, %v5276
        %v5283 = vpack.c.b16 %v5279, %v5278
        %v5292 = vunpack.c.l.b16 %v5153
        %v5293 = vunpack.c.l.b16 %v5155
        %v5294 = vunpack.c.l.b16 %v5157
        %v5295 = vunpack.c.l.b16 %v5159
        %v5296 = vunpack.c.l.b16 %v5161
        %v5297 = vunpack.c.l.b16 %v5163
        %v5298 = vunpack.c.l.b16 %v5165
        %v5299 = vunpack.c.l.b16 %v5167
        %v5300 = vpack.c.b16 %v5293, %v5292
        %v5301 = vpack.c.b16 %v5295, %v5294
        %v5302 = vpack.c.b16 %v5297, %v5296
        %v5303 = vpack.c.b16 %v5299, %v5298
        %5304 = vrot.lane.b32.xlu0 %v5300, 64
        %v5305 = vpop.permute.xlu0 %5304
        %5306 = vrot.lane.b32.xlu0 %v5301, 64
        %v5307 = vpop.permute.xlu0 %5306
        %5308 = vrot.lane.b32.xlu0 %v5302, 64
        %v5309 = vpop.permute.xlu0 %5308
        %5310 = vrot.lane.b32.xlu0 %v5303, 64
        %v5311 = vpop.permute.xlu0 %5310
        %v5314 = vsel %vm1484, %v5280, %v5305
        %v5318 = vsel %vm1484, %v5281, %v5307
        %v5322 = vsel %vm1484, %v5282, %v5309
        %v5326 = vsel %vm1484, %v5283, %v5311
        %v5328 = vld [vmem:[%s922] sm:$0xf]
        %v5329 = vld [vmem:[%s922 + $0x4] sm:$0xf]
        %v5330 = vld [vmem:[%s922 + $0x8] sm:$0xf]
        %v5331 = vld [vmem:[%s922 + $0xc] sm:$0xf]
        %v5332 = vld [vmem:[%s922 + $0x10] sm:$0xf]
        %v5333 = vld [vmem:[%s922 + $0x14] sm:$0xf]
        %v5334 = vld [vmem:[%s922 + $0x18] sm:$0xf]
        %v5335 = vld [vmem:[%s922 + $0x1c] sm:$0xf]
        %v5336 = vld [vmem:[%s922 + $0x20] sm:$0xf]
        %v5337 = vld [vmem:[%s922 + $0x24] sm:$0xf]
        %v5338 = vld [vmem:[%s922 + $0x28] sm:$0xf]
        %v5339 = vld [vmem:[%s922 + $0x2c] sm:$0xf]
        %v5340 = vld [vmem:[%s922 + $0x30] sm:$0xf]
        %v5341 = vld [vmem:[%s922 + $0x34] sm:$0xf]
        %v5342 = vld [vmem:[%s922 + $0x38] sm:$0xf]
        %v5343 = vld [vmem:[%s922 + $0x3c] sm:$0xf]
        %s5344 = scalar_lea.vmem %s922, 128
        %v5345 = vld [vmem:[%s5344] sm:$0xf]
        %v5346 = vld [vmem:[%s5344 + $0x4] sm:$0xf]
        %v5347 = vld [vmem:[%s5344 + $0x8] sm:$0xf]
        %v5348 = vld [vmem:[%s5344 + $0xc] sm:$0xf]
        %v5349 = vld [vmem:[%s5344 + $0x10] sm:$0xf]
        %v5350 = vld [vmem:[%s5344 + $0x14] sm:$0xf]
        %v5351 = vld [vmem:[%s5344 + $0x18] sm:$0xf]
        %v5352 = vld [vmem:[%s5344 + $0x1c] sm:$0xf]
        %v5353 = vld [vmem:[%s5344 + $0x20] sm:$0xf]
        %v5354 = vld [vmem:[%s5344 + $0x24] sm:$0xf]
        %v5355 = vld [vmem:[%s5344 + $0x28] sm:$0xf]
        %v5356 = vld [vmem:[%s5344 + $0x2c] sm:$0xf]
        %v5357 = vld [vmem:[%s5344 + $0x30] sm:$0xf]
        %v5358 = vld [vmem:[%s5344 + $0x34] sm:$0xf]
        %v5359 = vld [vmem:[%s5344 + $0x38] sm:$0xf]
        %v5360 = vld [vmem:[%s5344 + $0x3c] sm:$0xf]
        %v5377 = vunpack.c.l.b16 %v5345
        %v5378 = vunpack.c.l.b16 %v5346
        %v5379 = vunpack.c.l.b16 %v5347
        %v5380 = vunpack.c.l.b16 %v5348
        %v5381 = vunpack.c.l.b16 %v5349
        %v5382 = vunpack.c.l.b16 %v5350
        %v5383 = vunpack.c.l.b16 %v5351
        %v5384 = vunpack.c.l.b16 %v5352
        %v5385 = vunpack.c.l.b16 %v5353
        %v5386 = vunpack.c.l.b16 %v5354
        %v5387 = vunpack.c.l.b16 %v5355
        %v5388 = vunpack.c.l.b16 %v5356
        %v5389 = vunpack.c.l.b16 %v5357
        %v5390 = vunpack.c.l.b16 %v5358
        %v5391 = vunpack.c.l.b16 %v5359
        %v5392 = vunpack.c.l.b16 %v5360
        %v5393 = vpack.c.b16 %v5378, %v5377
        %v5394 = vpack.c.b16 %v5380, %v5379
        %v5395 = vpack.c.b16 %v5382, %v5381
        %v5396 = vpack.c.b16 %v5384, %v5383
        %v5397 = vpack.c.b16 %v5386, %v5385
        %v5398 = vpack.c.b16 %v5388, %v5387
        %v5399 = vpack.c.b16 %v5390, %v5389
        %v5400 = vpack.c.b16 %v5392, %v5391
        %5409 = vmatprep.subr.bf16.mxu0 0
        %5410 = vmatpush1.bf16.msra.mxu0 %v5393
        %5411 = vmatprep.subr.bf16.mxu0 0
        %5412 = vmatpush1.bf16.msra.mxu0 %v5394
        %5413 = vmatprep.subr.bf16.mxu0 0
        %5414 = vmatpush1.bf16.msra.mxu0 %v5395
        %5415 = vmatprep.subr.bf16.mxu0 0
        %5416 = vmatpush1.bf16.msra.mxu0 %v5396
        %5417 = vmatprep.subr.bf16.mxu0 0
        %5418 = vmatpush1.bf16.msra.mxu0 %v5397
        %5419 = vmatprep.subr.bf16.mxu0 0
        %5420 = vmatpush1.bf16.msra.mxu0 %v5398
        %5421 = vmatprep.subr.bf16.mxu0 0
        %5422 = vmatpush1.bf16.msra.mxu0 %v5399
        %5423 = vmatprep.subr.bf16.mxu0 0
        %5424 = vmatpush1.bf16.msra.mxu0 %v5400
        %5425 = vmatprep.subr.bf16.mxu0 0
        %5426 = vmatpush1.bf16.msra.mxu0 0
        %5427 = vmatprep.subr.bf16.mxu0 0
        %5428 = vmatpush1.bf16.msra.mxu0 0
        %5429 = vmatprep.subr.bf16.mxu0 0
        %5430 = vmatpush1.bf16.msra.mxu0 0
        %5431 = vmatprep.subr.bf16.mxu0 0
        %5432 = vmatpush1.bf16.msra.mxu0 0
        %5433 = vmatprep.subr.bf16.mxu0 0
        %5434 = vmatpush1.bf16.msra.mxu0 0
        %5435 = vmatprep.subr.bf16.mxu0 0
        %5436 = vmatpush1.bf16.msra.mxu0 0
        %5437 = vmatprep.subr.bf16.mxu0 0
        %5438 = vmatpush1.bf16.msra.mxu0 0
        %5439 = vmatprep.subr.bf16.mxu0 0
        %5440 = vmatpush1.bf16.msra.mxu0 0
        %5441 = vmatprep.mubr.bf16.mxu0 0
        %5442 = vmatmul.mubr.bf16.gmra.mrb[0].mxu0 %v5314
        %v5443 = vpop.f32.mrb[0].mxu0
        %v5444 = vadd.f32 0.0, %v5443
        %v5445 = vpop.f32.mrb[0].mxu0
        %v5446 = vpop.f32.mrb[0].mxu0
        %v5447 = vadd.f32 0.0, %v5446
        %v5448 = vpop.f32.mrb[0].mxu0
        %5449 = vmatprep.mubr.bf16.mxu0 0
        %5450 = vmatmul.mubr.bf16.gmra.mrb[0].mxu0 %v5318
        %v5451 = vpop.f32.mrb[0].mxu0
        %v5452 = vadd.f32 0.0, %v5451
        %v5453 = vpop.f32.mrb[0].mxu0
        %v5454 = vpop.f32.mrb[0].mxu0
        %v5455 = vadd.f32 0.0, %v5454
        %v5456 = vpop.f32.mrb[0].mxu0
        %5457 = vmatprep.mubr.bf16.mxu0 0
        %5458 = vmatmul.mubr.bf16.gmra.mrb[0].mxu0 %v5322
        %v5459 = vpop.f32.mrb[0].mxu0
        %v5460 = vadd.f32 0.0, %v5459
        %v5461 = vpop.f32.mrb[0].mxu0
        %v5462 = vpop.f32.mrb[0].mxu0
        %v5463 = vadd.f32 0.0, %v5462
        %v5464 = vpop.f32.mrb[0].mxu0
        %5465 = vmatprep.mubr.bf16.mxu0 0
        %5466 = vmatmul.mubr.bf16.gmra.mrb[0].mxu0 %v5326
        %v5467 = vpop.f32.mrb[0].mxu0
        %v5468 = vadd.f32 0.0, %v5467
        %v5469 = vpop.f32.mrb[0].mxu0
        %v5470 = vpop.f32.mrb[0].mxu0
        %v5471 = vadd.f32 0.0, %v5470
        %v5472 = vpop.f32.mrb[0].mxu0
        %5473 = vdwg.mxu0
        %v5490 = vunpack.c.l.b16 %v5328
        %v5491 = vunpack.c.l.b16 %v5329
        %v5492 = vunpack.c.l.b16 %v5330
        %v5493 = vunpack.c.l.b16 %v5331
        %v5494 = vunpack.c.l.b16 %v5332
        %v5495 = vunpack.c.l.b16 %v5333
        %v5496 = vunpack.c.l.b16 %v5334
        %v5497 = vunpack.c.l.b16 %v5335
        %v5498 = vunpack.c.l.b16 %v5336
        %v5499 = vunpack.c.l.b16 %v5337
        %v5500 = vunpack.c.l.b16 %v5338
        %v5501 = vunpack.c.l.b16 %v5339
        %v5502 = vunpack.c.l.b16 %v5340
        %v5503 = vunpack.c.l.b16 %v5341
        %v5504 = vunpack.c.l.b16 %v5342
        %v5505 = vunpack.c.l.b16 %v5343
        %v5506 = vpack.c.b16 %v5491, %v5490
        %v5507 = vpack.c.b16 %v5493, %v5492
        %v5508 = vpack.c.b16 %v5495, %v5494
        %v5509 = vpack.c.b16 %v5497, %v5496
        %v5510 = vpack.c.b16 %v5499, %v5498
        %v5511 = vpack.c.b16 %v5501, %v5500
        %v5512 = vpack.c.b16 %v5503, %v5502
        %v5513 = vpack.c.b16 %v5505, %v5504
        %5522 = vmatprep.subr.bf16.mxu0 0
        %5523 = vmatpush1.bf16.msra.mxu0 %v5506
        %5524 = vmatprep.subr.bf16.mxu0 0
        %5525 = vmatpush1.bf16.msra.mxu0 %v5507
        %5526 = vmatprep.subr.bf16.mxu0 0
        %5527 = vmatpush1.bf16.msra.mxu0 %v5508
        %5528 = vmatprep.subr.bf16.mxu0 0
        %5529 = vmatpush1.bf16.msra.mxu0 %v5509
        %5530 = vmatprep.subr.bf16.mxu0 0
        %5531 = vmatpush1.bf16.msra.mxu0 %v5510
        %5532 = vmatprep.subr.bf16.mxu0 0
        %5533 = vmatpush1.bf16.msra.mxu0 %v5511
        %5534 = vmatprep.subr.bf16.mxu0 0
        %5535 = vmatpush1.bf16.msra.mxu0 %v5512
        %5536 = vmatprep.subr.bf16.mxu0 0
        %5537 = vmatpush1.bf16.msra.mxu0 %v5513
        %5538 = vmatprep.subr.bf16.mxu0 0
        %5539 = vmatpush1.bf16.msra.mxu0 0
        %5540 = vmatprep.subr.bf16.mxu0 0
        %5541 = vmatpush1.bf16.msra.mxu0 0
        %5542 = vmatprep.subr.bf16.mxu0 0
        %5543 = vmatpush1.bf16.msra.mxu0 0
        %5544 = vmatprep.subr.bf16.mxu0 0
        %5545 = vmatpush1.bf16.msra.mxu0 0
        %5546 = vmatprep.subr.bf16.mxu0 0
        %5547 = vmatpush1.bf16.msra.mxu0 0
        %5548 = vmatprep.subr.bf16.mxu0 0
        %5549 = vmatpush1.bf16.msra.mxu0 0
        %5550 = vmatprep.subr.bf16.mxu0 0
        %5551 = vmatpush1.bf16.msra.mxu0 0
        %5552 = vmatprep.subr.bf16.mxu0 0
        %5553 = vmatpush1.bf16.msra.mxu0 0
        %5554 = vmatprep.mubr.bf16.mxu0 0
        %5555 = vmatmul.mubr.bf16.gmra.mrb[0].mxu0 %v5138
        %v5556 = vpop.f32.mrb[0].mxu0
        %v5557 = vadd.f32 %v5444, %v5556
        %v5558 = vpop.f32.mrb[0].mxu0
        %v5559 = vpop.f32.mrb[0].mxu0
        %v5560 = vadd.f32 %v5447, %v5559
        %v5561 = vpop.f32.mrb[0].mxu0
        %5562 = vmatprep.mubr.bf16.mxu0 0
        %5563 = vmatmul.mubr.bf16.gmra.mrb[0].mxu0 %v5142
        %v5564 = vpop.f32.mrb[0].mxu0
        %v5565 = vadd.f32 %v5452, %v5564
        %v5566 = vpop.f32.mrb[0].mxu0
        %v5567 = vpop.f32.mrb[0].mxu0
        %v5568 = vadd.f32 %v5455, %v5567
        %v5569 = vpop.f32.mrb[0].mxu0
        %5570 = vmatprep.mubr.bf16.mxu0 0
        %5571 = vmatmul.mubr.bf16.gmra.mrb[0].mxu0 %v5146
        %v5572 = vpop.f32.mrb[0].mxu0
        %v5573 = vadd.f32 %v5460, %v5572
        %v5574 = vpop.f32.mrb[0].mxu0
        %v5575 = vpop.f32.mrb[0].mxu0
        %v5576 = vadd.f32 %v5463, %v5575
        %v5577 = vpop.f32.mrb[0].mxu0
        %5578 = vmatprep.mubr.bf16.mxu0 0
        %5579 = vmatmul.mubr.bf16.gmra.mrb[0].mxu0 %v5150
        %v5580 = vpop.f32.mrb[0].mxu0
        %v5581 = vadd.f32 %v5468, %v5580
        %v5582 = vpop.f32.mrb[0].mxu0
        %v5583 = vpop.f32.mrb[0].mxu0
        %v5584 = vadd.f32 %v5471, %v5583
        %v5585 = vpop.f32.mrb[0].mxu0
        %5586 = vdwg.mxu0
        %v5587 = vld [vmem:[%s926] sm:$0x1]
        %v5589 = vlaneseq
        %v5590 = vshrl.u32 %v5589, 7
        %v5591 = vsub.s32 0, %v5590
        %v5592 = vrot.slane %v5587, %v5591
        %v5594 = vadd.f32 %v5557, %v5592
        %v5595 = vadd.f32 %v5560, %v5592
        %v5596 = vadd.f32 %v5565, %v5592
        %v5597 = vadd.f32 %v5568, %v5592
        %v5598 = vadd.f32 %v5573, %v5592
        %v5599 = vadd.f32 %v5576, %v5592
        %v5600 = vadd.f32 %v5581, %v5592
        %v5601 = vadd.f32 %v5584, %v5592
        %s5602 = scalar_lea.vmem %s922, 64
        %v5603 = vld [vmem:[%s5602] sm:$0xf]
        %v5604 = vld [vmem:[%s5602 + $0x4] sm:$0xf]
        %v5605 = vld [vmem:[%s5602 + $0x8] sm:$0xf]
        %v5606 = vld [vmem:[%s5602 + $0xc] sm:$0xf]
        %v5607 = vld [vmem:[%s5602 + $0x10] sm:$0xf]
        %v5608 = vld [vmem:[%s5602 + $0x14] sm:$0xf]
        %v5609 = vld [vmem:[%s5602 + $0x18] sm:$0xf]
        %v5610 = vld [vmem:[%s5602 + $0x1c] sm:$0xf]
        %v5611 = vld [vmem:[%s5602 + $0x20] sm:$0xf]
        %v5612 = vld [vmem:[%s5602 + $0x24] sm:$0xf]
        %v5613 = vld [vmem:[%s5602 + $0x28] sm:$0xf]
        %v5614 = vld [vmem:[%s5602 + $0x2c] sm:$0xf]
        %v5615 = vld [vmem:[%s5602 + $0x30] sm:$0xf]
        %v5616 = vld [vmem:[%s5602 + $0x34] sm:$0xf]
        %v5617 = vld [vmem:[%s5602 + $0x38] sm:$0xf]
        %v5618 = vld [vmem:[%s5602 + $0x3c] sm:$0xf]
        %s5619 = scalar_lea.vmem %s922, 192
        %v5620 = vld [vmem:[%s5619] sm:$0xf]
        %v5621 = vld [vmem:[%s5619 + $0x4] sm:$0xf]
        %v5622 = vld [vmem:[%s5619 + $0x8] sm:$0xf]
        %v5623 = vld [vmem:[%s5619 + $0xc] sm:$0xf]
        %v5624 = vld [vmem:[%s5619 + $0x10] sm:$0xf]
        %v5625 = vld [vmem:[%s5619 + $0x14] sm:$0xf]
        %v5626 = vld [vmem:[%s5619 + $0x18] sm:$0xf]
        %v5627 = vld [vmem:[%s5619 + $0x1c] sm:$0xf]
        %v5628 = vld [vmem:[%s5619 + $0x20] sm:$0xf]
        %v5629 = vld [vmem:[%s5619 + $0x24] sm:$0xf]
        %v5630 = vld [vmem:[%s5619 + $0x28] sm:$0xf]
        %v5631 = vld [vmem:[%s5619 + $0x2c] sm:$0xf]
        %v5632 = vld [vmem:[%s5619 + $0x30] sm:$0xf]
        %v5633 = vld [vmem:[%s5619 + $0x34] sm:$0xf]
        %v5634 = vld [vmem:[%s5619 + $0x38] sm:$0xf]
        %v5635 = vld [vmem:[%s5619 + $0x3c] sm:$0xf]
        %v5652 = vunpack.c.l.b16 %v5620
        %v5653 = vunpack.c.l.b16 %v5621
        %v5654 = vunpack.c.l.b16 %v5622
        %v5655 = vunpack.c.l.b16 %v5623
        %v5656 = vunpack.c.l.b16 %v5624
        %v5657 = vunpack.c.l.b16 %v5625
        %v5658 = vunpack.c.l.b16 %v5626
        %v5659 = vunpack.c.l.b16 %v5627
        %v5660 = vunpack.c.l.b16 %v5628
        %v5661 = vunpack.c.l.b16 %v5629
        %v5662 = vunpack.c.l.b16 %v5630
        %v5663 = vunpack.c.l.b16 %v5631
        %v5664 = vunpack.c.l.b16 %v5632
        %v5665 = vunpack.c.l.b16 %v5633
        %v5666 = vunpack.c.l.b16 %v5634
        %v5667 = vunpack.c.l.b16 %v5635
        %v5668 = vpack.c.b16 %v5653, %v5652
        %v5669 = vpack.c.b16 %v5655, %v5654
        %v5670 = vpack.c.b16 %v5657, %v5656
        %v5671 = vpack.c.b16 %v5659, %v5658
        %v5672 = vpack.c.b16 %v5661, %v5660
        %v5673 = vpack.c.b16 %v5663, %v5662
        %v5674 = vpack.c.b16 %v5665, %v5664
        %v5675 = vpack.c.b16 %v5667, %v5666
        %5684 = vmatprep.subr.bf16.mxu0 0
        %5685 = vmatpush1.bf16.msra.mxu0 %v5668
        %5686 = vmatprep.subr.bf16.mxu0 0
        %5687 = vmatpush1.bf16.msra.mxu0 %v5669
        %5688 = vmatprep.subr.bf16.mxu0 0
        %5689 = vmatpush1.bf16.msra.mxu0 %v5670
        %5690 = vmatprep.subr.bf16.mxu0 0
        %5691 = vmatpush1.bf16.msra.mxu0 %v5671
        %5692 = vmatprep.subr.bf16.mxu0 0
        %5693 = vmatpush1.bf16.msra.mxu0 %v5672
        %5694 = vmatprep.subr.bf16.mxu0 0
        %5695 = vmatpush1.bf16.msra.mxu0 %v5673
        %5696 = vmatprep.subr.bf16.mxu0 0
        %5697 = vmatpush1.bf16.msra.mxu0 %v5674
        %5698 = vmatprep.subr.bf16.mxu0 0
        %5699 = vmatpush1.bf16.msra.mxu0 %v5675
        %5700 = vmatprep.subr.bf16.mxu0 0
        %5701 = vmatpush1.bf16.msra.mxu0 0
        %5702 = vmatprep.subr.bf16.mxu0 0
        %5703 = vmatpush1.bf16.msra.mxu0 0
        %5704 = vmatprep.subr.bf16.mxu0 0
        %5705 = vmatpush1.bf16.msra.mxu0 0
        %5706 = vmatprep.subr.bf16.mxu0 0
        %5707 = vmatpush1.bf16.msra.mxu0 0
        %5708 = vmatprep.subr.bf16.mxu0 0
        %5709 = vmatpush1.bf16.msra.mxu0 0
        %5710 = vmatprep.subr.bf16.mxu0 0
        %5711 = vmatpush1.bf16.msra.mxu0 0
        %5712 = vmatprep.subr.bf16.mxu0 0
        %5713 = vmatpush1.bf16.msra.mxu0 0
        %5714 = vmatprep.subr.bf16.mxu0 0
        %5715 = vmatpush1.bf16.msra.mxu0 0
        %5716 = vmatprep.mubr.bf16.mxu0 0
        %5717 = vmatmul.mubr.bf16.gmra.mrb[0].mxu0 %v5314
        %v5718 = vpop.f32.mrb[0].mxu0
        %v5719 = vadd.f32 0.0, %v5718
        %v5720 = vpop.f32.mrb[0].mxu0
        %v5721 = vpop.f32.mrb[0].mxu0
        %v5722 = vadd.f32 0.0, %v5721
        %v5723 = vpop.f32.mrb[0].mxu0
        %5724 = vmatprep.mubr.bf16.mxu0 0
        %5725 = vmatmul.mubr.bf16.gmra.mrb[0].mxu0 %v5318
        %v5726 = vpop.f32.mrb[0].mxu0
        %v5727 = vadd.f32 0.0, %v5726
        %v5728 = vpop.f32.mrb[0].mxu0
        %v5729 = vpop.f32.mrb[0].mxu0
        %v5730 = vadd.f32 0.0, %v5729
        %v5731 = vpop.f32.mrb[0].mxu0
        %5732 = vmatprep.mubr.bf16.mxu0 0
        %5733 = vmatmul.mubr.bf16.gmra.mrb[0].mxu0 %v5322
        %v5734 = vpop.f32.mrb[0].mxu0
        %v5735 = vadd.f32 0.0, %v5734
        %v5736 = vpop.f32.mrb[0].mxu0
        %v5737 = vpop.f32.mrb[0].mxu0
        %v5738 = vadd.f32 0.0, %v5737
        %v5739 = vpop.f32.mrb[0].mxu0
        %5740 = vmatprep.mubr.bf16.mxu0 0
        %5741 = vmatmul.mubr.bf16.gmra.mrb[0].mxu0 %v5326
        %v5742 = vpop.f32.mrb[0].mxu0
        %v5743 = vadd.f32 0.0, %v5742
        %v5744 = vpop.f32.mrb[0].mxu0
        %v5745 = vpop.f32.mrb[0].mxu0
        %v5746 = vadd.f32 0.0, %v5745
        %v5747 = vpop.f32.mrb[0].mxu0
        %5748 = vdwg.mxu0
        %v5765 = vunpack.c.l.b16 %v5603
        %v5766 = vunpack.c.l.b16 %v5604
        %v5767 = vunpack.c.l.b16 %v5605
        %v5768 = vunpack.c.l.b16 %v5606
        %v5769 = vunpack.c.l.b16 %v5607
        %v5770 = vunpack.c.l.b16 %v5608
        %v5771 = vunpack.c.l.b16 %v5609
        %v5772 = vunpack.c.l.b16 %v5610
        %v5773 = vunpack.c.l.b16 %v5611
        %v5774 = vunpack.c.l.b16 %v5612
        %v5775 = vunpack.c.l.b16 %v5613
        %v5776 = vunpack.c.l.b16 %v5614
        %v5777 = vunpack.c.l.b16 %v5615
        %v5778 = vunpack.c.l.b16 %v5616
        %v5779 = vunpack.c.l.b16 %v5617
        %v5780 = vunpack.c.l.b16 %v5618
        %v5781 = vpack.c.b16 %v5766, %v5765
        %v5782 = vpack.c.b16 %v5768, %v5767
        %v5783 = vpack.c.b16 %v5770, %v5769
        %v5784 = vpack.c.b16 %v5772, %v5771
        %v5785 = vpack.c.b16 %v5774, %v5773
        %v5786 = vpack.c.b16 %v5776, %v5775
        %v5787 = vpack.c.b16 %v5778, %v5777
        %v5788 = vpack.c.b16 %v5780, %v5779
        %5797 = vmatprep.subr.bf16.mxu0 0
        %5798 = vmatpush1.bf16.msra.mxu0 %v5781
        %5799 = vmatprep.subr.bf16.mxu0 0
        %5800 = vmatpush1.bf16.msra.mxu0 %v5782
        %5801 = vmatprep.subr.bf16.mxu0 0
        %5802 = vmatpush1.bf16.msra.mxu0 %v5783
        %5803 = vmatprep.subr.bf16.mxu0 0
        %5804 = vmatpush1.bf16.msra.mxu0 %v5784
        %5805 = vmatprep.subr.bf16.mxu0 0
        %5806 = vmatpush1.bf16.msra.mxu0 %v5785
        %5807 = vmatprep.subr.bf16.mxu0 0
        %5808 = vmatpush1.bf16.msra.mxu0 %v5786
        %5809 = vmatprep.subr.bf16.mxu0 0
        %5810 = vmatpush1.bf16.msra.mxu0 %v5787
        %5811 = vmatprep.subr.bf16.mxu0 0
        %5812 = vmatpush1.bf16.msra.mxu0 %v5788
        %5813 = vmatprep.subr.bf16.mxu0 0
        %5814 = vmatpush1.bf16.msra.mxu0 0
        %5815 = vmatprep.subr.bf16.mxu0 0
        %5816 = vmatpush1.bf16.msra.mxu0 0
        %5817 = vmatprep.subr.bf16.mxu0 0
        %5818 = vmatpush1.bf16.msra.mxu0 0
        %5819 = vmatprep.subr.bf16.mxu0 0
        %5820 = vmatpush1.bf16.msra.mxu0 0
        %5821 = vmatprep.subr.bf16.mxu0 0
        %5822 = vmatpush1.bf16.msra.mxu0 0
        %5823 = vmatprep.subr.bf16.mxu0 0
        %5824 = vmatpush1.bf16.msra.mxu0 0
        %5825 = vmatprep.subr.bf16.mxu0 0
        %5826 = vmatpush1.bf16.msra.mxu0 0
        %5827 = vmatprep.subr.bf16.mxu0 0
        %5828 = vmatpush1.bf16.msra.mxu0 0
        %5829 = vmatprep.mubr.bf16.mxu0 0
        %5830 = vmatmul.mubr.bf16.gmra.mrb[0].mxu0 %v5138
        %v5831 = vpop.f32.mrb[0].mxu0
        %v5832 = vadd.f32 %v5719, %v5831
        %v5833 = vpop.f32.mrb[0].mxu0
        %v5834 = vpop.f32.mrb[0].mxu0
        %v5835 = vadd.f32 %v5722, %v5834
        %v5836 = vpop.f32.mrb[0].mxu0
        %5837 = vmatprep.mubr.bf16.mxu0 0
        %5838 = vmatmul.mubr.bf16.gmra.mrb[0].mxu0 %v5142
        %v5839 = vpop.f32.mrb[0].mxu0
        %v5840 = vadd.f32 %v5727, %v5839
        %v5841 = vpop.f32.mrb[0].mxu0
        %v5842 = vpop.f32.mrb[0].mxu0
        %v5843 = vadd.f32 %v5730, %v5842
        %v5844 = vpop.f32.mrb[0].mxu0
        %5845 = vmatprep.mubr.bf16.mxu0 0
        %5846 = vmatmul.mubr.bf16.gmra.mrb[0].mxu0 %v5146
        %v5847 = vpop.f32.mrb[0].mxu0
        %v5848 = vadd.f32 %v5735, %v5847
        %v5849 = vpop.f32.mrb[0].mxu0
        %v5850 = vpop.f32.mrb[0].mxu0
        %v5851 = vadd.f32 %v5738, %v5850
        %v5852 = vpop.f32.mrb[0].mxu0
        %5853 = vmatprep.mubr.bf16.mxu0 0
        %5854 = vmatmul.mubr.bf16.gmra.mrb[0].mxu0 %v5150
        %v5855 = vpop.f32.mrb[0].mxu0
        %v5856 = vadd.f32 %v5743, %v5855
        %v5857 = vpop.f32.mrb[0].mxu0
        %v5858 = vpop.f32.mrb[0].mxu0
        %v5859 = vadd.f32 %v5746, %v5858
        %v5860 = vpop.f32.mrb[0].mxu0
        %5861 = vdwg.mxu0
        %s5862 = scalar_lea.vmem %s926, 1
        %v5863 = vld [vmem:[%s5862] sm:$0x1]
        %v5865 = vlaneseq
        %v5866 = vshrl.u32 %v5865, 7
        %v5867 = vsub.s32 0, %v5866
        %v5868 = vrot.slane %v5863, %v5867
        %v5870 = vadd.f32 %v5832, %v5868
        %v5871 = vadd.f32 %v5835, %v5868
        %v5872 = vadd.f32 %v5840, %v5868
        %v5873 = vadd.f32 %v5843, %v5868
        %v5874 = vadd.f32 %v5848, %v5868
        %v5875 = vadd.f32 %v5851, %v5868
        %v5876 = vadd.f32 %v5856, %v5868
        %v5877 = vadd.f32 %v5859, %v5868
        %v5878 = vxor.u32 %v5870, 2147483648
        %v5879 = vxor.u32 %v5871, 2147483648
        %v5880 = vxor.u32 %v5872, 2147483648
        %v5881 = vxor.u32 %v5873, 2147483648
        %v5882 = vxor.u32 %v5874, 2147483648
        %v5883 = vxor.u32 %v5875, 2147483648
        %v5884 = vxor.u32 %v5876, 2147483648
        %v5885 = vxor.u32 %v5877, 2147483648
        %v5886 = vmul.f32 %v5878, 1.442695
        %v5887 = vpow.pop %v5886
        %v5888 = vmul.f32 %v5879, 1.442695
        %v5889 = vpow.pop %v5888
        %v5890 = vmul.f32 %v5880, 1.442695
        %v5891 = vpow.pop %v5890
        %v5892 = vmul.f32 %v5881, 1.442695
        %v5893 = vpow.pop %v5892
        %v5894 = vmul.f32 %v5882, 1.442695
        %v5895 = vpow.pop %v5894
        %v5896 = vmul.f32 %v5883, 1.442695
        %v5897 = vpow.pop %v5896
        %v5898 = vmul.f32 %v5884, 1.442695
        %v5899 = vpow.pop %v5898
        %v5900 = vmul.f32 %v5885, 1.442695
        %v5901 = vpow.pop %v5900
        %v5902 = vadd.f32 %v5887, 1.0
        %v5903 = vadd.f32 %v5889, 1.0
        %v5904 = vadd.f32 %v5891, 1.0
        %v5905 = vadd.f32 %v5893, 1.0
        %v5906 = vadd.f32 %v5895, 1.0
        %v5907 = vadd.f32 %v5897, 1.0
        %v5908 = vadd.f32 %v5899, 1.0
        %v5909 = vadd.f32 %v5901, 1.0
        %v5910 = vrcp.pop %v5902
        %v5911 = vmul.f32 1.0, %v5910
        %v5912 = vrcp.pop %v5903
        %v5913 = vmul.f32 1.0, %v5912
        %v5914 = vrcp.pop %v5904
        %v5915 = vmul.f32 1.0, %v5914
        %v5916 = vrcp.pop %v5905
        %v5917 = vmul.f32 1.0, %v5916
        %v5918 = vrcp.pop %v5906
        %v5919 = vmul.f32 1.0, %v5918
        %v5920 = vrcp.pop %v5907
        %v5921 = vmul.f32 1.0, %v5920
        %v5922 = vrcp.pop %v5908
        %v5923 = vmul.f32 1.0, %v5922
        %v5924 = vrcp.pop %v5909
        %v5925 = vmul.f32 1.0, %v5924
        %v5926 = vmul.f32 %v5594, %v5911
        %v5927 = vmul.f32 %v5595, %v5913
        %v5928 = vmul.f32 %v5596, %v5915
        %v5929 = vmul.f32 %v5597, %v5917
        %v5930 = vmul.f32 %v5598, %v5919
        %v5931 = vmul.f32 %v5599, %v5921
        %v5932 = vmul.f32 %v5600, %v5923
        %v5933 = vmul.f32 %v5601, %v5925
        %v5934 = vadd.f32 %v3885, %v5926
        %v5935 = vadd.f32 %v3886, %v5927
        %v5936 = vadd.f32 %v3887, %v5928
        %v5937 = vadd.f32 %v3888, %v5929
        %v5938 = vadd.f32 %v3889, %v5930
        %v5939 = vadd.f32 %v3890, %v5931
        %v5940 = vadd.f32 %v3891, %v5932
        %v5941 = vadd.f32 %v3892, %v5933
        %5942 = vst.msk [vmem:[%s839] sm:$0xff] %vm1043, %v5934
        %5943 = vst.msk [vmem:[%s839 + $0x8] sm:$0xff] %vm1043, %v5935
        %5944 = vst.msk [vmem:[%s839 + $0x10] sm:$0xff] %vm1043, %v5936
        %5945 = vst.msk [vmem:[%s839 + $0x18] sm:$0xff] %vm1043, %v5937
        %5946 = vst.msk [vmem:[%s839 + $0x20] sm:$0xff] %vm1043, %v5938
        %5947 = vst.msk [vmem:[%s839 + $0x28] sm:$0xff] %vm1043, %v5939
        %5948 = vst.msk [vmem:[%s839 + $0x30] sm:$0xff] %vm1043, %v5940
        %5949 = vst.msk [vmem:[%s839 + $0x38] sm:$0xff] %vm1043, %v5941
        %s5950 = sand.u32 %s502, 1
        %s5951 = scalar_lea.sflag [#allocation4], %s5950
        %s5952 = sand.u32 %s502, 1
        %s5953 = smul.addr %s5952, 64
        %s5954 = scalar_lea.vmem [#allocation3], %s5953
        %s5955 = sand.u32 %s528, 1
        %s5956 = scalar_lea.sflag [#allocation6], %s5955
        %s5957 = sand.u32 %s528, 1
        %s5958 = smul.addr %s5957, 64
        %s5959 = scalar_lea.vmem [#allocation5], %s5958
        // Predicated region
        $region93: #{pixelcnn_layer_down.1} parent=87 // pred_check
          %p5960 = pneg %p512
        $region94: #{pixelcnn_layer_down.1} parent=87 // pred_check_branch
          %5962 = sbr.rel (%p5960) target = $region96
        $region95: #{pixelcnn_layer_down.1} parent=87 // pred_region
          %s5964 = ssub.s32 1024, 1024
          %5965 = vsyncadd %s5951, %s5964
          %s5966 = smul.addr %s40, 8
          %s5967 = smul.addr %s5966, 128
          %s5968 = scalar_lea.hbm %s17, %s5967
          %s5969 = sshll.u32 %s5954, 4
          %s5970 = int_to_ptr.vmem [resolvable:$true] %s5969
          %5975 = dma.vmem_to_hbm [thread:$0]  %s5970, 1024, %s5968, %s5951, 128, 128, 8
        $region96: #{pixelcnn_layer_down.1} parent=87 // pred_fallthru
          _
        // Predicated region
        $region97: #{pixelcnn_layer_down.1} parent=87 // pred_check
          %p5976 = pneg %p538
        $region98: #{pixelcnn_layer_down.1} parent=87 // pred_check_branch
          %5978 = sbr.rel (%p5976) target = $region100
        $region99: #{pixelcnn_layer_down.1} parent=87 // pred_region
          %s5980 = ssub.s32 1024, 1024
          %5981 = vsyncadd %s5956, %s5980
          %s5982 = smul.addr %s40, 8
          %s5983 = smul.addr %s5982, 128
          %s5984 = scalar_lea.hbm %s18, %s5983
          %s5985 = sshll.u32 %s5959, 4
          %s5986 = int_to_ptr.vmem [resolvable:$true] %s5985
          %5991 = dma.vmem_to_hbm [thread:$0]  %s5986, 1024, %s5984, %s5956, 128, 128, 8
        $region100: #{pixelcnn_layer_down.1} parent=87 // pred_fallthru
          _
      $region88: #{pixelcnn_layer_down.1} parent=5 // pred_fallthru
        _
      %p5992 = scmp.le.s32.totalorder 2, %s31
      // Predicated region
      $region101: #{pixelcnn_layer_down.1} parent=5 // pred_check
        %p5993 = pneg %p5992
      $region102: #{pixelcnn_layer_down.1} parent=5 // pred_check_branch
        %5995 = sbr.rel (%p5993) target = $region104
      $region103: #{pixelcnn_layer_down.1} parent=5 // pred_region
        %s5996 = ssub.s32 %s31, 2
        // Predicated region
        $region105: #{pixelcnn_layer_down.1} parent=103 // pred_check
          %p5997 = pneg %p518
        $region106: #{pixelcnn_layer_down.1} parent=103 // pred_check_branch
          %5999 = sbr.rel (%p5997) target = $region108
        $region107: #{pixelcnn_layer_down.1} parent=103 // pred_region
          %s6000 = sand.u32 %s503, 1
          %s6001 = scalar_lea.sflag [#allocation4], %s6000
          %s6002 = sand.u32 %s503, 1
          %s6003 = smul.addr %s6002, 64
          %s6004 = scalar_lea.vmem [#allocation3], %s6003
          %6005 = dma.done %s6001, 1024
        $region108: #{pixelcnn_layer_down.1} parent=103 // pred_fallthru
          _
        // Predicated region
        $region109: #{pixelcnn_layer_down.1} parent=103 // pred_check
          %p6006 = pneg %p544
        $region110: #{pixelcnn_layer_down.1} parent=103 // pred_check_branch
          %6008 = sbr.rel (%p6006) target = $region112
        $region111: #{pixelcnn_layer_down.1} parent=103 // pred_region
          %s6009 = sand.u32 %s529, 1
          %s6010 = scalar_lea.sflag [#allocation6], %s6009
          %s6011 = sand.u32 %s529, 1
          %s6012 = smul.addr %s6011, 64
          %s6013 = scalar_lea.vmem [#allocation5], %s6012
          %6014 = dma.done %s6010, 1024
        $region112: #{pixelcnn_layer_down.1} parent=103 // pred_fallthru
          _
      $region104: #{pixelcnn_layer_down.1} parent=5 // pred_fallthru
        _
    $region6: #{pixelcnn_layer_down.1} parent=1 // loop_footer
      %s35 = sadd.s32 1, %s31
    $region7: #{pixelcnn_layer_down.1} parent=1 // loop_footer_branch
      %30 = sbr.rel target = $region3
    $region8: #{pixelcnn_layer_down.1} parent=1 // loop_exit
      _
    %6015 = vsyncpa [#allocation4], 1
    %s6016 = scalar_lea.sflag [#allocation4], 1
    %6017 = vsyncpa %s6016, 1
    %6018 = vsyncpa [#allocation6], 1
    %s6019 = scalar_lea.sflag [#allocation6], 1
    %6020 = vsyncpa %s6019, 1

</llo_original>
